<compile_context>
chip_gen: v7x
topology: tpu7x:2x2x1
jax: 0.10.0
libtpu: 0.0.40
codegen_flags: <defaults>
</compile_context>

<pallas_src>
import functools

import jax
import jax.numpy as jnp
import numpy as np
from jax.experimental import pallas as pl
from jax.experimental.pallas import tpu as pltpu


def _gru_generator_kernel(tokens_ref, emb_ref, wih_ref, whh_ref, bih_ref,
                          bhh_ref, wout_ref, bout_ref, out_ref,
                          gi0_scr, hall_scr,
                          *, num_layers, hidden_dim, seq_len, batch, vocab):
    """Whole-sequence GRU generator: single invocation, time loop inside."""
    T, B, H, V, L = seq_len, batch, hidden_dim, vocab, num_layers

    # ---- fused embedding lookup: one_hot(token) @ emb_table on the MXU ------
    ids = tokens_ref[...]                                            # [T, B] int32
    iota_v = jax.lax.broadcasted_iota(jnp.int32, (T, B, V), 2)
    onehot = (ids[:, :, None] == iota_v).astype(jnp.float32)         # [T, B, V]
    onehot = onehot.reshape(T * B, V)                                 # lane dim kept
    emb = jnp.dot(onehot, emb_ref[...],
                  preferred_element_type=jnp.float32)                # [T*B, H]

    # ---- layer-0 input-to-hidden transform hoisted out of the recurrence ----
    gi0 = jnp.dot(emb, wih_ref[0],
                  preferred_element_type=jnp.float32) + bih_ref[0]   # [T*B, 3H]
    gi0_scr[...] = gi0.reshape(T, B, 3 * H)

    # ---- serial GRU recurrence over time (hidden state carried as values) ---
    def step(t, hs):
        new_hs = []
        out = None
        for layer in range(L):                                       # small static L
            h = hs[layer]                                            # [B, H]
            if layer == 0:
                gi = gi0_scr[t]                                      # precomputed [B, 3H]
            else:
                gi = jnp.dot(out, wih_ref[layer],
                             preferred_element_type=jnp.float32) + bih_ref[layer]
            gh = jnp.dot(h, whh_ref[layer],
                         preferred_element_type=jnp.float32) + bhh_ref[layer]
            r = jax.nn.sigmoid(gi[:, 0 * H:1 * H] + gh[:, 0 * H:1 * H])
            z = jax.nn.sigmoid(gi[:, 1 * H:2 * H] + gh[:, 1 * H:2 * H])
            n = jnp.tanh(gi[:, 2 * H:3 * H] + r * gh[:, 2 * H:3 * H])
            h_new = (1.0 - z) * n + z * h                            # PyTorch GRU update
            new_hs.append(h_new)
            out = h_new
        hall_scr[t] = out                                            # park final hidden
        return tuple(new_hs)

    h0 = tuple(jnp.zeros((B, H), jnp.float32) for _ in range(L))     # zero init hidden
    _ = jax.lax.fori_loop(0, T, step, h0, unroll=True)

    # ---- batched output projection (alpha already folded into wout/bout) ----
    h_flat = hall_scr[...].reshape(T * B, H)
    logits = jnp.dot(h_flat, wout_ref[...],
                     preferred_element_type=jnp.float32) + bout_ref[...]
    out_ref[...] = logits.reshape(T, B, V).astype(out_ref.dtype)


def generator_forward(x_tokens, params, *, alpha):
    """x_tokens: int32 [B, T] (teacher forcing). Returns (logits [B,T,V], words=[])."""
    emb_table = params["embedding"].astype(jnp.float32)   # [vocab, H]
    wih = params["wih"]                # [L, H, 3H]   (pre-transposed)
    whh = params["whh"]                # [L, H, 3H]
    bih = params["bih"]                # [L, 1, 3H]
    bhh = params["bhh"]                # [L, 1, 3H]
    wout = params["wout"] * alpha      # [H, V]  alpha folded into projection
    bout = params["bout"] * alpha      # [1, V]

    B, T = x_tokens.shape
    L, H, _ = wih.shape
    V = wout.shape[1]

    tokens_tb = jnp.transpose(x_tokens.astype(jnp.int32))  # [T, B] tiny int32

    kernel = functools.partial(_gru_generator_kernel, num_layers=L,
                               hidden_dim=H, seq_len=T, batch=B, vocab=V)

    logits_tbv = pl.pallas_call(
        kernel,
        out_shape=jax.ShapeDtypeStruct((T, B, V), jnp.float32),
        grid_spec=pltpu.PrefetchScalarGridSpec(
            num_scalar_prefetch=0,
            grid=(1,),                                      # whole sequence in one step
            in_specs=[
                pl.BlockSpec((T, B), lambda i: (0, 0)),              # token ids
                pl.BlockSpec((V, H), lambda i: (0, 0)),              # embedding table
                pl.BlockSpec((L, H, 3 * H), lambda i: (0, 0, 0)),    # W_ih (all layers)
                pl.BlockSpec((L, H, 3 * H), lambda i: (0, 0, 0)),    # W_hh
                pl.BlockSpec((L, 1, 3 * H), lambda i: (0, 0, 0)),    # b_ih
                pl.BlockSpec((L, 1, 3 * H), lambda i: (0, 0, 0)),    # b_hh
                pl.BlockSpec((H, V), lambda i: (0, 0)),              # output W (alpha-scaled)
                pl.BlockSpec((1, V), lambda i: (0, 0)),              # output b (alpha-scaled)
            ],
            out_specs=pl.BlockSpec((T, B, V), lambda i: (0, 0, 0)),
            scratch_shapes=[
                pltpu.VMEM((T, B, 3 * H), jnp.float32),   # hoisted layer-0 gates
                pltpu.VMEM((T, B, H), jnp.float32),       # per-step final hidden
            ],
        ),
        compiler_params=pltpu.CompilerParams(
            dimension_semantics=("arbitrary",)),          # single serial step
    )(tokens_tb, emb_table, wih, whh, bih, bhh, wout, bout)

    logits = jnp.transpose(logits_tbv, (1, 0, 2))         # back to batch_first
    words = []                                            # teacher forcing
    return logits, words


def _reference_forward(x_tokens, params, alpha):
    """Pure-JAX reference mirroring the PyTorch semantics."""
    emb = params["embedding"][x_tokens].astype(jnp.float32)          # [B, T, H]
    B, T, H = emb.shape
    L = params["wih"].shape[0]
    h = jnp.zeros((L, B, H), jnp.float32)
    outs = []
    for t in range(T):
        o = emb[:, t]
        new_h = []
        for layer in range(L):
            gi = o @ params["wih"][layer] + params["bih"][layer]
            gh = h[layer] @ params["whh"][layer] + params["bhh"][layer]
            r = jax.nn.sigmoid(gi[:, :H] + gh[:, :H])
            z = jax.nn.sigmoid(gi[:, H:2 * H] + gh[:, H:2 * H])
            n = jnp.tanh(gi[:, 2 * H:] + r * gh[:, 2 * H:])
            hn = (1.0 - z) * n + z * h[layer]
            new_h.append(hn)
            o = hn
        h = jnp.stack(new_h)
        outs.append((o @ params["wout"] + params["bout"]) * alpha)
    return jnp.stack(outs, axis=1)                                   # [B, T, V]


def _init_params(key, vocab_size, hidden_dim, num_layers):
    H = hidden_dim
    scale = 1.0 / np.sqrt(H)
    keys = jax.random.split(key, 7)
    params = {
        "embedding": jax.random.normal(keys[0], (vocab_size, H), jnp.float32) * 0.1,
        "wih": jax.random.uniform(keys[1], (num_layers, H, 3 * H), jnp.float32,
                                  -scale, scale),
        "whh": jax.random.uniform(keys[2], (num_layers, H, 3 * H), jnp.float32,
                                  -scale, scale),
        "bih": jax.random.uniform(keys[3], (num_layers, 1, 3 * H), jnp.float32,
                                  -scale, scale),
        "bhh": jax.random.uniform(keys[4], (num_layers, 1, 3 * H), jnp.float32,
                                  -scale, scale),
        "wout": jax.random.uniform(keys[5], (H, vocab_size), jnp.float32,
                                   -scale, scale),
        "bout": jax.random.uniform(keys[6], (1, vocab_size), jnp.float32,
                                   -scale, scale),
    }
    return params


if __name__ == "__main__":
    # args: vocab_size=16, hidden_dim_gen=32, num_layers_gen=2, rnn='GRU',
    #       leak_info=False, var_dropout_p_gen=0.5 (eval => no-op),
    #       alpha_test=2.0, is_oracle=False.
    B, T = 4, 8
    VOCAB, HIDDEN, LAYERS = 16, 32, 2
    ALPHA_TEST = 2.0

    key = jax.random.PRNGKey(0)
    pkey, xkey = jax.random.split(key)
    params = _init_params(pkey, VOCAB, HIDDEN, LAYERS)

    # token ids; column 0 is the SOS token (id 0)
    x = jax.random.randint(xkey, (B, T), 0, VOCAB, dtype=jnp.int32)
    x = x.at[:, 0].set(0)

    logits, words = generator_forward(x, params, alpha=ALPHA_TEST)
    logits = jax.block_until_ready(logits)

    ref = _reference_forward(x, params, ALPHA_TEST)
    np.testing.assert_allclose(np.asarray(logits), np.asarray(ref),
                               rtol=1e-4, atol=1e-4)
    assert logits.shape == (B, T, VOCAB)
    assert words == []

    print("KERNEL_OK")
</pallas_src>

<mosaic_0001>
module attributes {stable_mosaic.version = 11 : i64} {
  func.func @_gru_generator_kernel(%arg0: i32, %arg1: memref<8x4xi32, #tpu.memory_space<vmem>>, %arg2: memref<16x32xf32, #tpu.memory_space<vmem>>, %arg3: memref<2x32x96xf32, #tpu.memory_space<vmem>>, %arg4: memref<2x32x96xf32, #tpu.memory_space<vmem>>, %arg5: memref<2x1x96xf32, #tpu.memory_space<vmem>>, %arg6: memref<2x1x96xf32, #tpu.memory_space<vmem>>, %arg7: memref<32x16xf32, #tpu.memory_space<vmem>>, %arg8: memref<1x16xf32, #tpu.memory_space<vmem>>, %arg9: memref<8x4x16xf32, #tpu.memory_space<vmem>>, %arg10: memref<8x4x96xf32, #tpu.memory_space<vmem>>, %arg11: memref<8x4x32xf32, #tpu.memory_space<vmem>>) attributes {dimension_semantics = [#tpu.dimension_semantics<arbitrary>], iteration_bounds = array<i64: 1>, scalar_prefetch = 0 : i64, scratch_operands = 2 : i64, tpu.core_type = #tpu.core_type<tc>, window_params = [{pipeline_mode = #tpu.pipeline_mode<synchronous>, transform_indices = @transform_0, window_bounds = array<i64: 8, 4>}, {pipeline_mode = #tpu.pipeline_mode<synchronous>, transform_indices = @transform_1, window_bounds = array<i64: 16, 32>}, {pipeline_mode = #tpu.pipeline_mode<synchronous>, transform_indices = @transform_2, window_bounds = array<i64: 2, 32, 96>}, {pipeline_mode = #tpu.pipeline_mode<synchronous>, transform_indices = @transform_3, window_bounds = array<i64: 2, 32, 96>}, {pipeline_mode = #tpu.pipeline_mode<synchronous>, transform_indices = @transform_4, window_bounds = array<i64: 2, 1, 96>}, {pipeline_mode = #tpu.pipeline_mode<synchronous>, transform_indices = @transform_5, window_bounds = array<i64: 2, 1, 96>}, {pipeline_mode = #tpu.pipeline_mode<synchronous>, transform_indices = @transform_6, window_bounds = array<i64: 32, 16>}, {pipeline_mode = #tpu.pipeline_mode<synchronous>, transform_indices = @transform_7, window_bounds = array<i64: 1, 16>}, {pipeline_mode = #tpu.pipeline_mode<synchronous>, transform_indices = @transform_8, window_bounds = array<i64: 8, 4, 16>}]} {
    %c0 = arith.constant 0 : index
    %c0_0 = arith.constant 0 : index
    %0 = vector.load %arg1[%c0, %c0_0] : memref<8x4xi32, #tpu.memory_space<vmem>>, vector<8x4xi32>
    %1 = tpu.iota {dimensions = array<i32: 2>} : vector<8x4x16xi32>
    %2 = vector.shape_cast %0 : vector<8x4xi32> to vector<8x4x1xi32>
    %3 = vector.broadcast %2 : vector<8x4x1xi32> to vector<8x4x16xi32>
    %4 = arith.cmpi eq, %3, %1 : vector<8x4x16xi32>
    %5 = arith.extui %4 : vector<8x4x16xi1> to vector<8x4x16xi32>
    %6 = arith.sitofp %5 : vector<8x4x16xi32> to vector<8x4x16xf32>
    %7 = vector.shape_cast %6 : vector<8x4x16xf32> to vector<32x16xf32>
    %c0_1 = arith.constant 0 : index
    %c0_2 = arith.constant 0 : index
    %8 = vector.load %arg2[%c0_1, %c0_2] : memref<16x32xf32, #tpu.memory_space<vmem>>, vector<16x32xf32>
    %cst = arith.constant dense<0.000000e+00> : vector<32x32xf32>
    %9 = tpu.matmul %7, %8, %cst {dimension_numbers = #tpu.dot_dimension_numbers<[1], [0], [0], [1], [0, 0, 1, 1], [], []>} : vector<32x16xf32>, vector<16x32xf32>, vector<32x32xf32> -> vector<32x32xf32>
    %c0_3 = arith.constant 0 : index
    %c0_4 = arith.constant 0 : index
    %c0_5 = arith.constant 0 : index
    %10 = vector.load %arg3[%c0_3, %c0_4, %c0_5] : memref<2x32x96xf32, #tpu.memory_space<vmem>>, vector<1x32x96xf32>
    %11 = vector.shape_cast %10 : vector<1x32x96xf32> to vector<32x96xf32>
    %cst_6 = arith.constant dense<0.000000e+00> : vector<32x96xf32>
    %12 = tpu.matmul %9, %11, %cst_6 {dimension_numbers = #tpu.dot_dimension_numbers<[1], [0], [0], [1], [0, 0, 1, 1], [], []>} : vector<32x32xf32>, vector<32x96xf32>, vector<32x96xf32> -> vector<32x96xf32>
    %c0_7 = arith.constant 0 : index
    %c0_8 = arith.constant 0 : index
    %c0_9 = arith.constant 0 : index
    %13 = vector.load %arg5[%c0_7, %c0_8, %c0_9] : memref<2x1x96xf32, #tpu.memory_space<vmem>>, vector<1x1x96xf32>
    %14 = vector.shape_cast %13 : vector<1x1x96xf32> to vector<1x96xf32>
    %15 = vector.broadcast %14 : vector<1x96xf32> to vector<32x96xf32>
    %16 = arith.addf %12, %15 : vector<32x96xf32>
    %17 = vector.shape_cast %16 : vector<32x96xf32> to vector<8x4x96xf32>
    %c0_10 = arith.constant 0 : index
    %c0_11 = arith.constant 0 : index
    %c0_12 = arith.constant 0 : index
    %18 = vector.load %arg10[%c0_10, %c0_11, %c0_12] : memref<8x4x96xf32, #tpu.memory_space<vmem>>, vector<8x4x96xf32>
    tpu.vector_store %arg10[%c0_10, %c0_11, %c0_12], %17 {strides = array<i32>} : memref<8x4x96xf32, #tpu.memory_space<vmem>>, vector<8x4x96xf32>,
    %cst_13 = arith.constant 0.000000e+00 : f32
    %19 = vector.broadcast %cst_13 : f32 to vector<4x32xf32>
    %cst_14 = arith.constant 0.000000e+00 : f32
    %20 = vector.broadcast %cst_14 : f32 to vector<4x32xf32>
    %c0_i32 = arith.constant 0 : i32
    %21 = arith.index_cast %c0_i32 : i32 to index
    %c0_15 = arith.constant 0 : index
    %c0_16 = arith.constant 0 : index
    %22 = vector.load %arg10[%21, %c0_15, %c0_16] : memref<8x4x96xf32, #tpu.memory_space<vmem>>, vector<1x4x96xf32>
    %23 = vector.shape_cast %22 : vector<1x4x96xf32> to vector<4x96xf32>
    %c0_17 = arith.constant 0 : index
    %c0_18 = arith.constant 0 : index
    %c0_19 = arith.constant 0 : index
    %24 = vector.load %arg4[%c0_17, %c0_18, %c0_19] : memref<2x32x96xf32, #tpu.memory_space<vmem>>, vector<1x32x96xf32>
    %25 = vector.shape_cast %24 : vector<1x32x96xf32> to vector<32x96xf32>
    %cst_20 = arith.constant dense<0.000000e+00> : vector<4x96xf32>
    %26 = tpu.matmul %19, %25, %cst_20 {dimension_numbers = #tpu.dot_dimension_numbers<[1], [0], [0], [1], [0, 0, 1, 1], [], []>} : vector<4x32xf32>, vector<32x96xf32>, vector<4x96xf32> -> vector<4x96xf32>
    %c0_21 = arith.constant 0 : index
    %c0_22 = arith.constant 0 : index
    %c0_23 = arith.constant 0 : index
    %27 = vector.load %arg6[%c0_21, %c0_22, %c0_23] : memref<2x1x96xf32, #tpu.memory_space<vmem>>, vector<1x1x96xf32>
    %28 = vector.shape_cast %27 : vector<1x1x96xf32> to vector<1x96xf32>
    %29 = vector.broadcast %28 : vector<1x96xf32> to vector<4x96xf32>
    %30 = arith.addf %26, %29 : vector<4x96xf32>
    %31 = vector.extract_strided_slice %23 {offsets = [0, 0], sizes = [4, 32], strides = [1, 1]} : vector<4x96xf32> to vector<4x32xf32>
    %32 = vector.extract_strided_slice %30 {offsets = [0, 0], sizes = [4, 32], strides = [1, 1]} : vector<4x96xf32> to vector<4x32xf32>
    %33 = arith.addf %31, %32 : vector<4x32xf32>
    %34 = arith.negf %33 : vector<4x32xf32>
    %35 = math.exp %34 : vector<4x32xf32>
    %cst_24 = arith.constant 1.000000e+00 : f32
    %36 = vector.broadcast %cst_24 : f32 to vector<4x32xf32>
    %37 = arith.addf %36, %35 : vector<4x32xf32>
    %38 = arith.divf %36, %37 : vector<4x32xf32>
    %39 = vector.extract_strided_slice %23 {offsets = [0, 32], sizes = [4, 32], strides = [1, 1]} : vector<4x96xf32> to vector<4x32xf32>
    %40 = vector.extract_strided_slice %30 {offsets = [0, 32], sizes = [4, 32], strides = [1, 1]} : vector<4x96xf32> to vector<4x32xf32>
    %41 = arith.addf %39, %40 : vector<4x32xf32>
    %42 = arith.negf %41 : vector<4x32xf32>
    %43 = math.exp %42 : vector<4x32xf32>
    %cst_25 = arith.constant 1.000000e+00 : f32
    %44 = vector.broadcast %cst_25 : f32 to vector<4x32xf32>
    %45 = arith.addf %44, %43 : vector<4x32xf32>
    %46 = arith.divf %44, %45 : vector<4x32xf32>
    %47 = vector.extract_strided_slice %23 {offsets = [0, 64], sizes = [4, 32], strides = [1, 1]} : vector<4x96xf32> to vector<4x32xf32>
    %48 = vector.extract_strided_slice %30 {offsets = [0, 64], sizes = [4, 32], strides = [1, 1]} : vector<4x96xf32> to vector<4x32xf32>
    %49 = arith.mulf %38, %48 : vector<4x32xf32>
    %50 = arith.addf %47, %49 : vector<4x32xf32>
    %51 = math.tanh %50 : vector<4x32xf32>
    %cst_26 = arith.constant 1.000000e+00 : f32
    %52 = vector.broadcast %cst_26 : f32 to vector<4x32xf32>
    %53 = arith.subf %52, %46 : vector<4x32xf32>
    %54 = arith.mulf %53, %51 : vector<4x32xf32>
    %55 = arith.mulf %46, %19 : vector<4x32xf32>
    %56 = arith.addf %54, %55 : vector<4x32xf32>
    %c1 = arith.constant 1 : index
    %c0_27 = arith.constant 0 : index
    %c0_28 = arith.constant 0 : index
    %57 = vector.load %arg3[%c1, %c0_27, %c0_28] : memref<2x32x96xf32, #tpu.memory_space<vmem>>, vector<1x32x96xf32>
    %58 = vector.shape_cast %57 : vector<1x32x96xf32> to vector<32x96xf32>
    %cst_29 = arith.constant dense<0.000000e+00> : vector<4x96xf32>
    %59 = tpu.matmul %56, %58, %cst_29 {dimension_numbers = #tpu.dot_dimension_numbers<[1], [0], [0], [1], [0, 0, 1, 1], [], []>} : vector<4x32xf32>, vector<32x96xf32>, vector<4x96xf32> -> vector<4x96xf32>
    %c1_30 = arith.constant 1 : index
    %c0_31 = arith.constant 0 : index
    %c0_32 = arith.constant 0 : index
    %60 = vector.load %arg5[%c1_30, %c0_31, %c0_32] : memref<2x1x96xf32, #tpu.memory_space<vmem>>, vector<1x1x96xf32>
    %61 = vector.shape_cast %60 : vector<1x1x96xf32> to vector<1x96xf32>
    %62 = vector.broadcast %61 : vector<1x96xf32> to vector<4x96xf32>
    %63 = arith.addf %59, %62 : vector<4x96xf32>
    %c1_33 = arith.constant 1 : index
    %c0_34 = arith.constant 0 : index
    %c0_35 = arith.constant 0 : index
    %64 = vector.load %arg4[%c1_33, %c0_34, %c0_35] : memref<2x32x96xf32, #tpu.memory_space<vmem>>, vector<1x32x96xf32>
    %65 = vector.shape_cast %64 : vector<1x32x96xf32> to vector<32x96xf32>
    %cst_36 = arith.constant dense<0.000000e+00> : vector<4x96xf32>
    %66 = tpu.matmul %20, %65, %cst_36 {dimension_numbers = #tpu.dot_dimension_numbers<[1], [0], [0], [1], [0, 0, 1, 1], [], []>} : vector<4x32xf32>, vector<32x96xf32>, vector<4x96xf32> -> vector<4x96xf32>
    %c1_37 = arith.constant 1 : index
    %c0_38 = arith.constant 0 : index
    %c0_39 = arith.constant 0 : index
    %67 = vector.load %arg6[%c1_37, %c0_38, %c0_39] : memref<2x1x96xf32, #tpu.memory_space<vmem>>, vector<1x1x96xf32>
    %68 = vector.shape_cast %67 : vector<1x1x96xf32> to vector<1x96xf32>
    %69 = vector.broadcast %68 : vector<1x96xf32> to vector<4x96xf32>
    %70 = arith.addf %66, %69 : vector<4x96xf32>
    %71 = vector.extract_strided_slice %63 {offsets = [0, 0], sizes = [4, 32], strides = [1, 1]} : vector<4x96xf32> to vector<4x32xf32>
    %72 = vector.extract_strided_slice %70 {offsets = [0, 0], sizes = [4, 32], strides = [1, 1]} : vector<4x96xf32> to vector<4x32xf32>
    %73 = arith.addf %71, %72 : vector<4x32xf32>
    %74 = arith.negf %73 : vector<4x32xf32>
    %75 = math.exp %74 : vector<4x32xf32>
    %cst_40 = arith.constant 1.000000e+00 : f32
    %76 = vector.broadcast %cst_40 : f32 to vector<4x32xf32>
    %77 = arith.addf %76, %75 : vector<4x32xf32>
    %78 = arith.divf %76, %77 : vector<4x32xf32>
    %79 = vector.extract_strided_slice %63 {offsets = [0, 32], sizes = [4, 32], strides = [1, 1]} : vector<4x96xf32> to vector<4x32xf32>
    %80 = vector.extract_strided_slice %70 {offsets = [0, 32], sizes = [4, 32], strides = [1, 1]} : vector<4x96xf32> to vector<4x32xf32>
    %81 = arith.addf %79, %80 : vector<4x32xf32>
    %82 = arith.negf %81 : vector<4x32xf32>
    %83 = math.exp %82 : vector<4x32xf32>
    %cst_41 = arith.constant 1.000000e+00 : f32
    %84 = vector.broadcast %cst_41 : f32 to vector<4x32xf32>
    %85 = arith.addf %84, %83 : vector<4x32xf32>
    %86 = arith.divf %84, %85 : vector<4x32xf32>
    %87 = vector.extract_strided_slice %63 {offsets = [0, 64], sizes = [4, 32], strides = [1, 1]} : vector<4x96xf32> to vector<4x32xf32>
    %88 = vector.extract_strided_slice %70 {offsets = [0, 64], sizes = [4, 32], strides = [1, 1]} : vector<4x96xf32> to vector<4x32xf32>
    %89 = arith.mulf %78, %88 : vector<4x32xf32>
    %90 = arith.addf %87, %89 : vector<4x32xf32>
    %91 = math.tanh %90 : vector<4x32xf32>
    %cst_42 = arith.constant 1.000000e+00 : f32
    %92 = vector.broadcast %cst_42 : f32 to vector<4x32xf32>
    %93 = arith.subf %92, %86 : vector<4x32xf32>
    %94 = arith.mulf %93, %91 : vector<4x32xf32>
    %95 = arith.mulf %86, %20 : vector<4x32xf32>
    %96 = arith.addf %94, %95 : vector<4x32xf32>
    %97 = arith.index_cast %c0_i32 : i32 to index
    %c0_43 = arith.constant 0 : index
    %c0_44 = arith.constant 0 : index
    %98 = vector.load %arg11[%97, %c0_43, %c0_44] : memref<8x4x32xf32, #tpu.memory_space<vmem>>, vector<1x4x32xf32>
    %99 = vector.shape_cast %98 : vector<1x4x32xf32> to vector<4x32xf32>
    %100 = vector.shape_cast %96 : vector<4x32xf32> to vector<1x4x32xf32>
    tpu.vector_store %arg11[%97, %c0_43, %c0_44], %100 {strides = array<i32>} : memref<8x4x32xf32, #tpu.memory_space<vmem>>, vector<1x4x32xf32>,
    %c1_i32 = arith.constant 1 : i32
    %101 = arith.index_cast %c1_i32 : i32 to index
    %c0_45 = arith.constant 0 : index
    %c0_46 = arith.constant 0 : index
    %102 = vector.load %arg10[%101, %c0_45, %c0_46] : memref<8x4x96xf32, #tpu.memory_space<vmem>>, vector<1x4x96xf32>
    %103 = vector.shape_cast %102 : vector<1x4x96xf32> to vector<4x96xf32>
    %c0_47 = arith.constant 0 : index
    %c0_48 = arith.constant 0 : index
    %c0_49 = arith.constant 0 : index
    %104 = vector.load %arg4[%c0_47, %c0_48, %c0_49] : memref<2x32x96xf32, #tpu.memory_space<vmem>>, vector<1x32x96xf32>
    %105 = vector.shape_cast %104 : vector<1x32x96xf32> to vector<32x96xf32>
    %cst_50 = arith.constant dense<0.000000e+00> : vector<4x96xf32>
    %106 = tpu.matmul %56, %105, %cst_50 {dimension_numbers = #tpu.dot_dimension_numbers<[1], [0], [0], [1], [0, 0, 1, 1], [], []>} : vector<4x32xf32>, vector<32x96xf32>, vector<4x96xf32> -> vector<4x96xf32>
    %c0_51 = arith.constant 0 : index
    %c0_52 = arith.constant 0 : index
    %c0_53 = arith.constant 0 : index
    %107 = vector.load %arg6[%c0_51, %c0_52, %c0_53] : memref<2x1x96xf32, #tpu.memory_space<vmem>>, vector<1x1x96xf32>
    %108 = vector.shape_cast %107 : vector<1x1x96xf32> to vector<1x96xf32>
    %109 = vector.broadcast %108 : vector<1x96xf32> to vector<4x96xf32>
    %110 = arith.addf %106, %109 : vector<4x96xf32>
    %111 = vector.extract_strided_slice %103 {offsets = [0, 0], sizes = [4, 32], strides = [1, 1]} : vector<4x96xf32> to vector<4x32xf32>
    %112 = vector.extract_strided_slice %110 {offsets = [0, 0], sizes = [4, 32], strides = [1, 1]} : vector<4x96xf32> to vector<4x32xf32>
    %113 = arith.addf %111, %112 : vector<4x32xf32>
    %114 = arith.negf %113 : vector<4x32xf32>
    %115 = math.exp %114 : vector<4x32xf32>
    %cst_54 = arith.constant 1.000000e+00 : f32
    %116 = vector.broadcast %cst_54 : f32 to vector<4x32xf32>
    %117 = arith.addf %116, %115 : vector<4x32xf32>
    %118 = arith.divf %116, %117 : vector<4x32xf32>
    %119 = vector.extract_strided_slice %103 {offsets = [0, 32], sizes = [4, 32], strides = [1, 1]} : vector<4x96xf32> to vector<4x32xf32>
    %120 = vector.extract_strided_slice %110 {offsets = [0, 32], sizes = [4, 32], strides = [1, 1]} : vector<4x96xf32> to vector<4x32xf32>
    %121 = arith.addf %119, %120 : vector<4x32xf32>
    %122 = arith.negf %121 : vector<4x32xf32>
    %123 = math.exp %122 : vector<4x32xf32>
    %cst_55 = arith.constant 1.000000e+00 : f32
    %124 = vector.broadcast %cst_55 : f32 to vector<4x32xf32>
    %125 = arith.addf %124, %123 : vector<4x32xf32>
    %126 = arith.divf %124, %125 : vector<4x32xf32>
    %127 = vector.extract_strided_slice %103 {offsets = [0, 64], sizes = [4, 32], strides = [1, 1]} : vector<4x96xf32> to vector<4x32xf32>
    %128 = vector.extract_strided_slice %110 {offsets = [0, 64], sizes = [4, 32], strides = [1, 1]} : vector<4x96xf32> to vector<4x32xf32>
    %129 = arith.mulf %118, %128 : vector<4x32xf32>
    %130 = arith.addf %127, %129 : vector<4x32xf32>
    %131 = math.tanh %130 : vector<4x32xf32>
    %cst_56 = arith.constant 1.000000e+00 : f32
    %132 = vector.broadcast %cst_56 : f32 to vector<4x32xf32>
    %133 = arith.subf %132, %126 : vector<4x32xf32>
    %134 = arith.mulf %133, %131 : vector<4x32xf32>
    %135 = arith.mulf %126, %56 : vector<4x32xf32>
    %136 = arith.addf %134, %135 : vector<4x32xf32>
    %c1_57 = arith.constant 1 : index
    %c0_58 = arith.constant 0 : index
    %c0_59 = arith.constant 0 : index
    %137 = vector.load %arg3[%c1_57, %c0_58, %c0_59] : memref<2x32x96xf32, #tpu.memory_space<vmem>>, vector<1x32x96xf32>
    %138 = vector.shape_cast %137 : vector<1x32x96xf32> to vector<32x96xf32>
    %cst_60 = arith.constant dense<0.000000e+00> : vector<4x96xf32>
    %139 = tpu.matmul %136, %138, %cst_60 {dimension_numbers = #tpu.dot_dimension_numbers<[1], [0], [0], [1], [0, 0, 1, 1], [], []>} : vector<4x32xf32>, vector<32x96xf32>, vector<4x96xf32> -> vector<4x96xf32>
    %c1_61 = arith.constant 1 : index
    %c0_62 = arith.constant 0 : index
    %c0_63 = arith.constant 0 : index
    %140 = vector.load %arg5[%c1_61, %c0_62, %c0_63] : memref<2x1x96xf32, #tpu.memory_space<vmem>>, vector<1x1x96xf32>
    %141 = vector.shape_cast %140 : vector<1x1x96xf32> to vector<1x96xf32>
    %142 = vector.broadcast %141 : vector<1x96xf32> to vector<4x96xf32>
    %143 = arith.addf %139, %142 : vector<4x96xf32>
    %c1_64 = arith.constant 1 : index
    %c0_65 = arith.constant 0 : index
    %c0_66 = arith.constant 0 : index
    %144 = vector.load %arg4[%c1_64, %c0_65, %c0_66] : memref<2x32x96xf32, #tpu.memory_space<vmem>>, vector<1x32x96xf32>
    %145 = vector.shape_cast %144 : vector<1x32x96xf32> to vector<32x96xf32>
    %cst_67 = arith.constant dense<0.000000e+00> : vector<4x96xf32>
    %146 = tpu.matmul %96, %145, %cst_67 {dimension_numbers = #tpu.dot_dimension_numbers<[1], [0], [0], [1], [0, 0, 1, 1], [], []>} : vector<4x32xf32>, vector<32x96xf32>, vector<4x96xf32> -> vector<4x96xf32>
    %c1_68 = arith.constant 1 : index
    %c0_69 = arith.constant 0 : index
    %c0_70 = arith.constant 0 : index
    %147 = vector.load %arg6[%c1_68, %c0_69, %c0_70] : memref<2x1x96xf32, #tpu.memory_space<vmem>>, vector<1x1x96xf32>
    %148 = vector.shape_cast %147 : vector<1x1x96xf32> to vector<1x96xf32>
    %149 = vector.broadcast %148 : vector<1x96xf32> to vector<4x96xf32>
    %150 = arith.addf %146, %149 : vector<4x96xf32>
    %151 = vector.extract_strided_slice %143 {offsets = [0, 0], sizes = [4, 32], strides = [1, 1]} : vector<4x96xf32> to vector<4x32xf32>
    %152 = vector.extract_strided_slice %150 {offsets = [0, 0], sizes = [4, 32], strides = [1, 1]} : vector<4x96xf32> to vector<4x32xf32>
    %153 = arith.addf %151, %152 : vector<4x32xf32>
    %154 = arith.negf %153 : vector<4x32xf32>
    %155 = math.exp %154 : vector<4x32xf32>
    %cst_71 = arith.constant 1.000000e+00 : f32
    %156 = vector.broadcast %cst_71 : f32 to vector<4x32xf32>
    %157 = arith.addf %156, %155 : vector<4x32xf32>
    %158 = arith.divf %156, %157 : vector<4x32xf32>
    %159 = vector.extract_strided_slice %143 {offsets = [0, 32], sizes = [4, 32], strides = [1, 1]} : vector<4x96xf32> to vector<4x32xf32>
    %160 = vector.extract_strided_slice %150 {offsets = [0, 32], sizes = [4, 32], strides = [1, 1]} : vector<4x96xf32> to vector<4x32xf32>
    %161 = arith.addf %159, %160 : vector<4x32xf32>
    %162 = arith.negf %161 : vector<4x32xf32>
    %163 = math.exp %162 : vector<4x32xf32>
    %cst_72 = arith.constant 1.000000e+00 : f32
    %164 = vector.broadcast %cst_72 : f32 to vector<4x32xf32>
    %165 = arith.addf %164, %163 : vector<4x32xf32>
    %166 = arith.divf %164, %165 : vector<4x32xf32>
    %167 = vector.extract_strided_slice %143 {offsets = [0, 64], sizes = [4, 32], strides = [1, 1]} : vector<4x96xf32> to vector<4x32xf32>
    %168 = vector.extract_strided_slice %150 {offsets = [0, 64], sizes = [4, 32], strides = [1, 1]} : vector<4x96xf32> to vector<4x32xf32>
    %169 = arith.mulf %158, %168 : vector<4x32xf32>
    %170 = arith.addf %167, %169 : vector<4x32xf32>
    %171 = math.tanh %170 : vector<4x32xf32>
    %cst_73 = arith.constant 1.000000e+00 : f32
    %172 = vector.broadcast %cst_73 : f32 to vector<4x32xf32>
    %173 = arith.subf %172, %166 : vector<4x32xf32>
    %174 = arith.mulf %173, %171 : vector<4x32xf32>
    %175 = arith.mulf %166, %96 : vector<4x32xf32>
    %176 = arith.addf %174, %175 : vector<4x32xf32>
    %177 = arith.index_cast %c1_i32 : i32 to index
    %c0_74 = arith.constant 0 : index
    %c0_75 = arith.constant 0 : index
    %178 = vector.load %arg11[%177, %c0_74, %c0_75] : memref<8x4x32xf32, #tpu.memory_space<vmem>>, vector<1x4x32xf32>
    %179 = vector.shape_cast %178 : vector<1x4x32xf32> to vector<4x32xf32>
    %180 = vector.shape_cast %176 : vector<4x32xf32> to vector<1x4x32xf32>
    tpu.vector_store %arg11[%177, %c0_74, %c0_75], %180 {strides = array<i32>} : memref<8x4x32xf32, #tpu.memory_space<vmem>>, vector<1x4x32xf32>,
    %c2_i32 = arith.constant 2 : i32
    %181 = arith.index_cast %c2_i32 : i32 to index
    %c0_76 = arith.constant 0 : index
    %c0_77 = arith.constant 0 : index
    %182 = vector.load %arg10[%181, %c0_76, %c0_77] : memref<8x4x96xf32, #tpu.memory_space<vmem>>, vector<1x4x96xf32>
    %183 = vector.shape_cast %182 : vector<1x4x96xf32> to vector<4x96xf32>
    %c0_78 = arith.constant 0 : index
    %c0_79 = arith.constant 0 : index
    %c0_80 = arith.constant 0 : index
    %184 = vector.load %arg4[%c0_78, %c0_79, %c0_80] : memref<2x32x96xf32, #tpu.memory_space<vmem>>, vector<1x32x96xf32>
    %185 = vector.shape_cast %184 : vector<1x32x96xf32> to vector<32x96xf32>
    %cst_81 = arith.constant dense<0.000000e+00> : vector<4x96xf32>
    %186 = tpu.matmul %136, %185, %cst_81 {dimension_numbers = #tpu.dot_dimension_numbers<[1], [0], [0], [1], [0, 0, 1, 1], [], []>} : vector<4x32xf32>, vector<32x96xf32>, vector<4x96xf32> -> vector<4x96xf32>
    %c0_82 = arith.constant 0 : index
    %c0_83 = arith.constant 0 : index
    %c0_84 = arith.constant 0 : index
    %187 = vector.load %arg6[%c0_82, %c0_83, %c0_84] : memref<2x1x96xf32, #tpu.memory_space<vmem>>, vector<1x1x96xf32>
    %188 = vector.shape_cast %187 : vector<1x1x96xf32> to vector<1x96xf32>
    %189 = vector.broadcast %188 : vector<1x96xf32> to vector<4x96xf32>
    %190 = arith.addf %186, %189 : vector<4x96xf32>
    %191 = vector.extract_strided_slice %183 {offsets = [0, 0], sizes = [4, 32], strides = [1, 1]} : vector<4x96xf32> to vector<4x32xf32>
    %192 = vector.extract_strided_slice %190 {offsets = [0, 0], sizes = [4, 32], strides = [1, 1]} : vector<4x96xf32> to vector<4x32xf32>
    %193 = arith.addf %191, %192 : vector<4x32xf32>
    %194 = arith.negf %193 : vector<4x32xf32>
    %195 = math.exp %194 : vector<4x32xf32>
    %cst_85 = arith.constant 1.000000e+00 : f32
    %196 = vector.broadcast %cst_85 : f32 to vector<4x32xf32>
    %197 = arith.addf %196, %195 : vector<4x32xf32>
    %198 = arith.divf %196, %197 : vector<4x32xf32>
    %199 = vector.extract_strided_slice %183 {offsets = [0, 32], sizes = [4, 32], strides = [1, 1]} : vector<4x96xf32> to vector<4x32xf32>
    %200 = vector.extract_strided_slice %190 {offsets = [0, 32], sizes = [4, 32], strides = [1, 1]} : vector<4x96xf32> to vector<4x32xf32>
    %201 = arith.addf %199, %200 : vector<4x32xf32>
    %202 = arith.negf %201 : vector<4x32xf32>
    %203 = math.exp %202 : vector<4x32xf32>
    %cst_86 = arith.constant 1.000000e+00 : f32
    %204 = vector.broadcast %cst_86 : f32 to vector<4x32xf32>
    %205 = arith.addf %204, %203 : vector<4x32xf32>
    %206 = arith.divf %204, %205 : vector<4x32xf32>
    %207 = vector.extract_strided_slice %183 {offsets = [0, 64], sizes = [4, 32], strides = [1, 1]} : vector<4x96xf32> to vector<4x32xf32>
    %208 = vector.extract_strided_slice %190 {offsets = [0, 64], sizes = [4, 32], strides = [1, 1]} : vector<4x96xf32> to vector<4x32xf32>
    %209 = arith.mulf %198, %208 : vector<4x32xf32>
    %210 = arith.addf %207, %209 : vector<4x32xf32>
    %211 = math.tanh %210 : vector<4x32xf32>
    %cst_87 = arith.constant 1.000000e+00 : f32
    %212 = vector.broadcast %cst_87 : f32 to vector<4x32xf32>
    %213 = arith.subf %212, %206 : vector<4x32xf32>
    %214 = arith.mulf %213, %211 : vector<4x32xf32>
    %215 = arith.mulf %206, %136 : vector<4x32xf32>
    %216 = arith.addf %214, %215 : vector<4x32xf32>
    %c1_88 = arith.constant 1 : index
    %c0_89 = arith.constant 0 : index
    %c0_90 = arith.constant 0 : index
    %217 = vector.load %arg3[%c1_88, %c0_89, %c0_90] : memref<2x32x96xf32, #tpu.memory_space<vmem>>, vector<1x32x96xf32>
    %218 = vector.shape_cast %217 : vector<1x32x96xf32> to vector<32x96xf32>
    %cst_91 = arith.constant dense<0.000000e+00> : vector<4x96xf32>
    %219 = tpu.matmul %216, %218, %cst_91 {dimension_numbers = #tpu.dot_dimension_numbers<[1], [0], [0], [1], [0, 0, 1, 1], [], []>} : vector<4x32xf32>, vector<32x96xf32>, vector<4x96xf32> -> vector<4x96xf32>
    %c1_92 = arith.constant 1 : index
    %c0_93 = arith.constant 0 : index
    %c0_94 = arith.constant 0 : index
    %220 = vector.load %arg5[%c1_92, %c0_93, %c0_94] : memref<2x1x96xf32, #tpu.memory_space<vmem>>, vector<1x1x96xf32>
    %221 = vector.shape_cast %220 : vector<1x1x96xf32> to vector<1x96xf32>
    %222 = vector.broadcast %221 : vector<1x96xf32> to vector<4x96xf32>
    %223 = arith.addf %219, %222 : vector<4x96xf32>
    %c1_95 = arith.constant 1 : index
    %c0_96 = arith.constant 0 : index
    %c0_97 = arith.constant 0 : index
    %224 = vector.load %arg4[%c1_95, %c0_96, %c0_97] : memref<2x32x96xf32, #tpu.memory_space<vmem>>, vector<1x32x96xf32>
    %225 = vector.shape_cast %224 : vector<1x32x96xf32> to vector<32x96xf32>
    %cst_98 = arith.constant dense<0.000000e+00> : vector<4x96xf32>
    %226 = tpu.matmul %176, %225, %cst_98 {dimension_numbers = #tpu.dot_dimension_numbers<[1], [0], [0], [1], [0, 0, 1, 1], [], []>} : vector<4x32xf32>, vector<32x96xf32>, vector<4x96xf32> -> vector<4x96xf32>
    %c1_99 = arith.constant 1 : index
    %c0_100 = arith.constant 0 : index
    %c0_101 = arith.constant 0 : index
    %227 = vector.load %arg6[%c1_99, %c0_100, %c0_101] : memref<2x1x96xf32, #tpu.memory_space<vmem>>, vector<1x1x96xf32>
    %228 = vector.shape_cast %227 : vector<1x1x96xf32> to vector<1x96xf32>
    %229 = vector.broadcast %228 : vector<1x96xf32> to vector<4x96xf32>
    %230 = arith.addf %226, %229 : vector<4x96xf32>
    %231 = vector.extract_strided_slice %223 {offsets = [0, 0], sizes = [4, 32], strides = [1, 1]} : vector<4x96xf32> to vector<4x32xf32>
    %232 = vector.extract_strided_slice %230 {offsets = [0, 0], sizes = [4, 32], strides = [1, 1]} : vector<4x96xf32> to vector<4x32xf32>
    %233 = arith.addf %231, %232 : vector<4x32xf32>
    %234 = arith.negf %233 : vector<4x32xf32>
    %235 = math.exp %234 : vector<4x32xf32>
    %cst_102 = arith.constant 1.000000e+00 : f32
    %236 = vector.broadcast %cst_102 : f32 to vector<4x32xf32>
    %237 = arith.addf %236, %235 : vector<4x32xf32>
    %238 = arith.divf %236, %237 : vector<4x32xf32>
    %239 = vector.extract_strided_slice %223 {offsets = [0, 32], sizes = [4, 32], strides = [1, 1]} : vector<4x96xf32> to vector<4x32xf32>
    %240 = vector.extract_strided_slice %230 {offsets = [0, 32], sizes = [4, 32], strides = [1, 1]} : vector<4x96xf32> to vector<4x32xf32>
    %241 = arith.addf %239, %240 : vector<4x32xf32>
    %242 = arith.negf %241 : vector<4x32xf32>
    %243 = math.exp %242 : vector<4x32xf32>
    %cst_103 = arith.constant 1.000000e+00 : f32
    %244 = vector.broadcast %cst_103 : f32 to vector<4x32xf32>
    %245 = arith.addf %244, %243 : vector<4x32xf32>
    %246 = arith.divf %244, %245 : vector<4x32xf32>
    %247 = vector.extract_strided_slice %223 {offsets = [0, 64], sizes = [4, 32], strides = [1, 1]} : vector<4x96xf32> to vector<4x32xf32>
    %248 = vector.extract_strided_slice %230 {offsets = [0, 64], sizes = [4, 32], strides = [1, 1]} : vector<4x96xf32> to vector<4x32xf32>
    %249 = arith.mulf %238, %248 : vector<4x32xf32>
    %250 = arith.addf %247, %249 : vector<4x32xf32>
    %251 = math.tanh %250 : vector<4x32xf32>
    %cst_104 = arith.constant 1.000000e+00 : f32
    %252 = vector.broadcast %cst_104 : f32 to vector<4x32xf32>
    %253 = arith.subf %252, %246 : vector<4x32xf32>
    %254 = arith.mulf %253, %251 : vector<4x32xf32>
    %255 = arith.mulf %246, %176 : vector<4x32xf32>
    %256 = arith.addf %254, %255 : vector<4x32xf32>
    %257 = arith.index_cast %c2_i32 : i32 to index
    %c0_105 = arith.constant 0 : index
    %c0_106 = arith.constant 0 : index
    %258 = vector.load %arg11[%257, %c0_105, %c0_106] : memref<8x4x32xf32, #tpu.memory_space<vmem>>, vector<1x4x32xf32>
    %259 = vector.shape_cast %258 : vector<1x4x32xf32> to vector<4x32xf32>
    %260 = vector.shape_cast %256 : vector<4x32xf32> to vector<1x4x32xf32>
    tpu.vector_store %arg11[%257, %c0_105, %c0_106], %260 {strides = array<i32>} : memref<8x4x32xf32, #tpu.memory_space<vmem>>, vector<1x4x32xf32>,
    %c3_i32 = arith.constant 3 : i32
    %261 = arith.index_cast %c3_i32 : i32 to index
    %c0_107 = arith.constant 0 : index
    %c0_108 = arith.constant 0 : index
    %262 = vector.load %arg10[%261, %c0_107, %c0_108] : memref<8x4x96xf32, #tpu.memory_space<vmem>>, vector<1x4x96xf32>
    %263 = vector.shape_cast %262 : vector<1x4x96xf32> to vector<4x96xf32>
    %c0_109 = arith.constant 0 : index
    %c0_110 = arith.constant 0 : index
    %c0_111 = arith.constant 0 : index
    %264 = vector.load %arg4[%c0_109, %c0_110, %c0_111] : memref<2x32x96xf32, #tpu.memory_space<vmem>>, vector<1x32x96xf32>
    %265 = vector.shape_cast %264 : vector<1x32x96xf32> to vector<32x96xf32>
    %cst_112 = arith.constant dense<0.000000e+00> : vector<4x96xf32>
    %266 = tpu.matmul %216, %265, %cst_112 {dimension_numbers = #tpu.dot_dimension_numbers<[1], [0], [0], [1], [0, 0, 1, 1], [], []>} : vector<4x32xf32>, vector<32x96xf32>, vector<4x96xf32> -> vector<4x96xf32>
    %c0_113 = arith.constant 0 : index
    %c0_114 = arith.constant 0 : index
    %c0_115 = arith.constant 0 : index
    %267 = vector.load %arg6[%c0_113, %c0_114, %c0_115] : memref<2x1x96xf32, #tpu.memory_space<vmem>>, vector<1x1x96xf32>
    %268 = vector.shape_cast %267 : vector<1x1x96xf32> to vector<1x96xf32>
    %269 = vector.broadcast %268 : vector<1x96xf32> to vector<4x96xf32>
    %270 = arith.addf %266, %269 : vector<4x96xf32>
    %271 = vector.extract_strided_slice %263 {offsets = [0, 0], sizes = [4, 32], strides = [1, 1]} : vector<4x96xf32> to vector<4x32xf32>
    %272 = vector.extract_strided_slice %270 {offsets = [0, 0], sizes = [4, 32], strides = [1, 1]} : vector<4x96xf32> to vector<4x32xf32>
    %273 = arith.addf %271, %272 : vector<4x32xf32>
    %274 = arith.negf %273 : vector<4x32xf32>
    %275 = math.exp %274 : vector<4x32xf32>
    %cst_116 = arith.constant 1.000000e+00 : f32
    %276 = vector.broadcast %cst_116 : f32 to vector<4x32xf32>
    %277 = arith.addf %276, %275 : vector<4x32xf32>
    %278 = arith.divf %276, %277 : vector<4x32xf32>
    %279 = vector.extract_strided_slice %263 {offsets = [0, 32], sizes = [4, 32], strides = [1, 1]} : vector<4x96xf32> to vector<4x32xf32>
    %280 = vector.extract_strided_slice %270 {offsets = [0, 32], sizes = [4, 32], strides = [1, 1]} : vector<4x96xf32> to vector<4x32xf32>
    %281 = arith.addf %279, %280 : vector<4x32xf32>
    %282 = arith.negf %281 : vector<4x32xf32>
    %283 = math.exp %282 : vector<4x32xf32>
    %cst_117 = arith.constant 1.000000e+00 : f32
    %284 = vector.broadcast %cst_117 : f32 to vector<4x32xf32>
    %285 = arith.addf %284, %283 : vector<4x32xf32>
    %286 = arith.divf %284, %285 : vector<4x32xf32>
    %287 = vector.extract_strided_slice %263 {offsets = [0, 64], sizes = [4, 32], strides = [1, 1]} : vector<4x96xf32> to vector<4x32xf32>
    %288 = vector.extract_strided_slice %270 {offsets = [0, 64], sizes = [4, 32], strides = [1, 1]} : vector<4x96xf32> to vector<4x32xf32>
    %289 = arith.mulf %278, %288 : vector<4x32xf32>
    %290 = arith.addf %287, %289 : vector<4x32xf32>
    %291 = math.tanh %290 : vector<4x32xf32>
    %cst_118 = arith.constant 1.000000e+00 : f32
    %292 = vector.broadcast %cst_118 : f32 to vector<4x32xf32>
    %293 = arith.subf %292, %286 : vector<4x32xf32>
    %294 = arith.mulf %293, %291 : vector<4x32xf32>
    %295 = arith.mulf %286, %216 : vector<4x32xf32>
    %296 = arith.addf %294, %295 : vector<4x32xf32>
    %c1_119 = arith.constant 1 : index
    %c0_120 = arith.constant 0 : index
    %c0_121 = arith.constant 0 : index
    %297 = vector.load %arg3[%c1_119, %c0_120, %c0_121] : memref<2x32x96xf32, #tpu.memory_space<vmem>>, vector<1x32x96xf32>
    %298 = vector.shape_cast %297 : vector<1x32x96xf32> to vector<32x96xf32>
    %cst_122 = arith.constant dense<0.000000e+00> : vector<4x96xf32>
    %299 = tpu.matmul %296, %298, %cst_122 {dimension_numbers = #tpu.dot_dimension_numbers<[1], [0], [0], [1], [0, 0, 1, 1], [], []>} : vector<4x32xf32>, vector<32x96xf32>, vector<4x96xf32> -> vector<4x96xf32>
    %c1_123 = arith.constant 1 : index
    %c0_124 = arith.constant 0 : index
    %c0_125 = arith.constant 0 : index
    %300 = vector.load %arg5[%c1_123, %c0_124, %c0_125] : memref<2x1x96xf32, #tpu.memory_space<vmem>>, vector<1x1x96xf32>
    %301 = vector.shape_cast %300 : vector<1x1x96xf32> to vector<1x96xf32>
    %302 = vector.broadcast %301 : vector<1x96xf32> to vector<4x96xf32>
    %303 = arith.addf %299, %302 : vector<4x96xf32>
    %c1_126 = arith.constant 1 : index
    %c0_127 = arith.constant 0 : index
    %c0_128 = arith.constant 0 : index
    %304 = vector.load %arg4[%c1_126, %c0_127, %c0_128] : memref<2x32x96xf32, #tpu.memory_space<vmem>>, vector<1x32x96xf32>
    %305 = vector.shape_cast %304 : vector<1x32x96xf32> to vector<32x96xf32>
    %cst_129 = arith.constant dense<0.000000e+00> : vector<4x96xf32>
    %306 = tpu.matmul %256, %305, %cst_129 {dimension_numbers = #tpu.dot_dimension_numbers<[1], [0], [0], [1], [0, 0, 1, 1], [], []>} : vector<4x32xf32>, vector<32x96xf32>, vector<4x96xf32> -> vector<4x96xf32>
    %c1_130 = arith.constant 1 : index
    %c0_131 = arith.constant 0 : index
    %c0_132 = arith.constant 0 : index
    %307 = vector.load %arg6[%c1_130, %c0_131, %c0_132] : memref<2x1x96xf32, #tpu.memory_space<vmem>>, vector<1x1x96xf32>
    %308 = vector.shape_cast %307 : vector<1x1x96xf32> to vector<1x96xf32>
    %309 = vector.broadcast %308 : vector<1x96xf32> to vector<4x96xf32>
    %310 = arith.addf %306, %309 : vector<4x96xf32>
    %311 = vector.extract_strided_slice %303 {offsets = [0, 0], sizes = [4, 32], strides = [1, 1]} : vector<4x96xf32> to vector<4x32xf32>
    %312 = vector.extract_strided_slice %310 {offsets = [0, 0], sizes = [4, 32], strides = [1, 1]} : vector<4x96xf32> to vector<4x32xf32>
    %313 = arith.addf %311, %312 : vector<4x32xf32>
    %314 = arith.negf %313 : vector<4x32xf32>
    %315 = math.exp %314 : vector<4x32xf32>
    %cst_133 = arith.constant 1.000000e+00 : f32
    %316 = vector.broadcast %cst_133 : f32 to vector<4x32xf32>
    %317 = arith.addf %316, %315 : vector<4x32xf32>
    %318 = arith.divf %316, %317 : vector<4x32xf32>
    %319 = vector.extract_strided_slice %303 {offsets = [0, 32], sizes = [4, 32], strides = [1, 1]} : vector<4x96xf32> to vector<4x32xf32>
    %320 = vector.extract_strided_slice %310 {offsets = [0, 32], sizes = [4, 32], strides = [1, 1]} : vector<4x96xf32> to vector<4x32xf32>
    %321 = arith.addf %319, %320 : vector<4x32xf32>
    %322 = arith.negf %321 : vector<4x32xf32>
    %323 = math.exp %322 : vector<4x32xf32>
    %cst_134 = arith.constant 1.000000e+00 : f32
    %324 = vector.broadcast %cst_134 : f32 to vector<4x32xf32>
    %325 = arith.addf %324, %323 : vector<4x32xf32>
    %326 = arith.divf %324, %325 : vector<4x32xf32>
    %327 = vector.extract_strided_slice %303 {offsets = [0, 64], sizes = [4, 32], strides = [1, 1]} : vector<4x96xf32> to vector<4x32xf32>
    %328 = vector.extract_strided_slice %310 {offsets = [0, 64], sizes = [4, 32], strides = [1, 1]} : vector<4x96xf32> to vector<4x32xf32>
    %329 = arith.mulf %318, %328 : vector<4x32xf32>
    %330 = arith.addf %327, %329 : vector<4x32xf32>
    %331 = math.tanh %330 : vector<4x32xf32>
    %cst_135 = arith.constant 1.000000e+00 : f32
    %332 = vector.broadcast %cst_135 : f32 to vector<4x32xf32>
    %333 = arith.subf %332, %326 : vector<4x32xf32>
    %334 = arith.mulf %333, %331 : vector<4x32xf32>
    %335 = arith.mulf %326, %256 : vector<4x32xf32>
    %336 = arith.addf %334, %335 : vector<4x32xf32>
    %337 = arith.index_cast %c3_i32 : i32 to index
    %c0_136 = arith.constant 0 : index
    %c0_137 = arith.constant 0 : index
    %338 = vector.load %arg11[%337, %c0_136, %c0_137] : memref<8x4x32xf32, #tpu.memory_space<vmem>>, vector<1x4x32xf32>
    %339 = vector.shape_cast %338 : vector<1x4x32xf32> to vector<4x32xf32>
    %340 = vector.shape_cast %336 : vector<4x32xf32> to vector<1x4x32xf32>
    tpu.vector_store %arg11[%337, %c0_136, %c0_137], %340 {strides = array<i32>} : memref<8x4x32xf32, #tpu.memory_space<vmem>>, vector<1x4x32xf32>,
    %c4_i32 = arith.constant 4 : i32
    %341 = arith.index_cast %c4_i32 : i32 to index
    %c0_138 = arith.constant 0 : index
    %c0_139 = arith.constant 0 : index
    %342 = vector.load %arg10[%341, %c0_138, %c0_139] : memref<8x4x96xf32, #tpu.memory_space<vmem>>, vector<1x4x96xf32>
    %343 = vector.shape_cast %342 : vector<1x4x96xf32> to vector<4x96xf32>
    %c0_140 = arith.constant 0 : index
    %c0_141 = arith.constant 0 : index
    %c0_142 = arith.constant 0 : index
    %344 = vector.load %arg4[%c0_140, %c0_141, %c0_142] : memref<2x32x96xf32, #tpu.memory_space<vmem>>, vector<1x32x96xf32>
    %345 = vector.shape_cast %344 : vector<1x32x96xf32> to vector<32x96xf32>
    %cst_143 = arith.constant dense<0.000000e+00> : vector<4x96xf32>
    %346 = tpu.matmul %296, %345, %cst_143 {dimension_numbers = #tpu.dot_dimension_numbers<[1], [0], [0], [1], [0, 0, 1, 1], [], []>} : vector<4x32xf32>, vector<32x96xf32>, vector<4x96xf32> -> vector<4x96xf32>
    %c0_144 = arith.constant 0 : index
    %c0_145 = arith.constant 0 : index
    %c0_146 = arith.constant 0 : index
    %347 = vector.load %arg6[%c0_144, %c0_145, %c0_146] : memref<2x1x96xf32, #tpu.memory_space<vmem>>, vector<1x1x96xf32>
    %348 = vector.shape_cast %347 : vector<1x1x96xf32> to vector<1x96xf32>
    %349 = vector.broadcast %348 : vector<1x96xf32> to vector<4x96xf32>
    %350 = arith.addf %346, %349 : vector<4x96xf32>
    %351 = vector.extract_strided_slice %343 {offsets = [0, 0], sizes = [4, 32], strides = [1, 1]} : vector<4x96xf32> to vector<4x32xf32>
    %352 = vector.extract_strided_slice %350 {offsets = [0, 0], sizes = [4, 32], strides = [1, 1]} : vector<4x96xf32> to vector<4x32xf32>
    %353 = arith.addf %351, %352 : vector<4x32xf32>
    %354 = arith.negf %353 : vector<4x32xf32>
    %355 = math.exp %354 : vector<4x32xf32>
    %cst_147 = arith.constant 1.000000e+00 : f32
    %356 = vector.broadcast %cst_147 : f32 to vector<4x32xf32>
    %357 = arith.addf %356, %355 : vector<4x32xf32>
    %358 = arith.divf %356, %357 : vector<4x32xf32>
    %359 = vector.extract_strided_slice %343 {offsets = [0, 32], sizes = [4, 32], strides = [1, 1]} : vector<4x96xf32> to vector<4x32xf32>
    %360 = vector.extract_strided_slice %350 {offsets = [0, 32], sizes = [4, 32], strides = [1, 1]} : vector<4x96xf32> to vector<4x32xf32>
    %361 = arith.addf %359, %360 : vector<4x32xf32>
    %362 = arith.negf %361 : vector<4x32xf32>
    %363 = math.exp %362 : vector<4x32xf32>
    %cst_148 = arith.constant 1.000000e+00 : f32
    %364 = vector.broadcast %cst_148 : f32 to vector<4x32xf32>
    %365 = arith.addf %364, %363 : vector<4x32xf32>
    %366 = arith.divf %364, %365 : vector<4x32xf32>
    %367 = vector.extract_strided_slice %343 {offsets = [0, 64], sizes = [4, 32], strides = [1, 1]} : vector<4x96xf32> to vector<4x32xf32>
    %368 = vector.extract_strided_slice %350 {offsets = [0, 64], sizes = [4, 32], strides = [1, 1]} : vector<4x96xf32> to vector<4x32xf32>
    %369 = arith.mulf %358, %368 : vector<4x32xf32>
    %370 = arith.addf %367, %369 : vector<4x32xf32>
    %371 = math.tanh %370 : vector<4x32xf32>
    %cst_149 = arith.constant 1.000000e+00 : f32
    %372 = vector.broadcast %cst_149 : f32 to vector<4x32xf32>
    %373 = arith.subf %372, %366 : vector<4x32xf32>
    %374 = arith.mulf %373, %371 : vector<4x32xf32>
    %375 = arith.mulf %366, %296 : vector<4x32xf32>
    %376 = arith.addf %374, %375 : vector<4x32xf32>
    %c1_150 = arith.constant 1 : index
    %c0_151 = arith.constant 0 : index
    %c0_152 = arith.constant 0 : index
    %377 = vector.load %arg3[%c1_150, %c0_151, %c0_152] : memref<2x32x96xf32, #tpu.memory_space<vmem>>, vector<1x32x96xf32>
    %378 = vector.shape_cast %377 : vector<1x32x96xf32> to vector<32x96xf32>
    %cst_153 = arith.constant dense<0.000000e+00> : vector<4x96xf32>
    %379 = tpu.matmul %376, %378, %cst_153 {dimension_numbers = #tpu.dot_dimension_numbers<[1], [0], [0], [1], [0, 0, 1, 1], [], []>} : vector<4x32xf32>, vector<32x96xf32>, vector<4x96xf32> -> vector<4x96xf32>
    %c1_154 = arith.constant 1 : index
    %c0_155 = arith.constant 0 : index
    %c0_156 = arith.constant 0 : index
    %380 = vector.load %arg5[%c1_154, %c0_155, %c0_156] : memref<2x1x96xf32, #tpu.memory_space<vmem>>, vector<1x1x96xf32>
    %381 = vector.shape_cast %380 : vector<1x1x96xf32> to vector<1x96xf32>
    %382 = vector.broadcast %381 : vector<1x96xf32> to vector<4x96xf32>
    %383 = arith.addf %379, %382 : vector<4x96xf32>
    %c1_157 = arith.constant 1 : index
    %c0_158 = arith.constant 0 : index
    %c0_159 = arith.constant 0 : index
    %384 = vector.load %arg4[%c1_157, %c0_158, %c0_159] : memref<2x32x96xf32, #tpu.memory_space<vmem>>, vector<1x32x96xf32>
    %385 = vector.shape_cast %384 : vector<1x32x96xf32> to vector<32x96xf32>
    %cst_160 = arith.constant dense<0.000000e+00> : vector<4x96xf32>
    %386 = tpu.matmul %336, %385, %cst_160 {dimension_numbers = #tpu.dot_dimension_numbers<[1], [0], [0], [1], [0, 0, 1, 1], [], []>} : vector<4x32xf32>, vector<32x96xf32>, vector<4x96xf32> -> vector<4x96xf32>
    %c1_161 = arith.constant 1 : index
    %c0_162 = arith.constant 0 : index
    %c0_163 = arith.constant 0 : index
    %387 = vector.load %arg6[%c1_161, %c0_162, %c0_163] : memref<2x1x96xf32, #tpu.memory_space<vmem>>, vector<1x1x96xf32>
    %388 = vector.shape_cast %387 : vector<1x1x96xf32> to vector<1x96xf32>
    %389 = vector.broadcast %388 : vector<1x96xf32> to vector<4x96xf32>
    %390 = arith.addf %386, %389 : vector<4x96xf32>
    %391 = vector.extract_strided_slice %383 {offsets = [0, 0], sizes = [4, 32], strides = [1, 1]} : vector<4x96xf32> to vector<4x32xf32>
    %392 = vector.extract_strided_slice %390 {offsets = [0, 0], sizes = [4, 32], strides = [1, 1]} : vector<4x96xf32> to vector<4x32xf32>
    %393 = arith.addf %391, %392 : vector<4x32xf32>
    %394 = arith.negf %393 : vector<4x32xf32>
    %395 = math.exp %394 : vector<4x32xf32>
    %cst_164 = arith.constant 1.000000e+00 : f32
    %396 = vector.broadcast %cst_164 : f32 to vector<4x32xf32>
    %397 = arith.addf %396, %395 : vector<4x32xf32>
    %398 = arith.divf %396, %397 : vector<4x32xf32>
    %399 = vector.extract_strided_slice %383 {offsets = [0, 32], sizes = [4, 32], strides = [1, 1]} : vector<4x96xf32> to vector<4x32xf32>
    %400 = vector.extract_strided_slice %390 {offsets = [0, 32], sizes = [4, 32], strides = [1, 1]} : vector<4x96xf32> to vector<4x32xf32>
    %401 = arith.addf %399, %400 : vector<4x32xf32>
    %402 = arith.negf %401 : vector<4x32xf32>
    %403 = math.exp %402 : vector<4x32xf32>
    %cst_165 = arith.constant 1.000000e+00 : f32
    %404 = vector.broadcast %cst_165 : f32 to vector<4x32xf32>
    %405 = arith.addf %404, %403 : vector<4x32xf32>
    %406 = arith.divf %404, %405 : vector<4x32xf32>
    %407 = vector.extract_strided_slice %383 {offsets = [0, 64], sizes = [4, 32], strides = [1, 1]} : vector<4x96xf32> to vector<4x32xf32>
    %408 = vector.extract_strided_slice %390 {offsets = [0, 64], sizes = [4, 32], strides = [1, 1]} : vector<4x96xf32> to vector<4x32xf32>
    %409 = arith.mulf %398, %408 : vector<4x32xf32>
    %410 = arith.addf %407, %409 : vector<4x32xf32>
    %411 = math.tanh %410 : vector<4x32xf32>
    %cst_166 = arith.constant 1.000000e+00 : f32
    %412 = vector.broadcast %cst_166 : f32 to vector<4x32xf32>
    %413 = arith.subf %412, %406 : vector<4x32xf32>
    %414 = arith.mulf %413, %411 : vector<4x32xf32>
    %415 = arith.mulf %406, %336 : vector<4x32xf32>
    %416 = arith.addf %414, %415 : vector<4x32xf32>
    %417 = arith.index_cast %c4_i32 : i32 to index
    %c0_167 = arith.constant 0 : index
    %c0_168 = arith.constant 0 : index
    %418 = vector.load %arg11[%417, %c0_167, %c0_168] : memref<8x4x32xf32, #tpu.memory_space<vmem>>, vector<1x4x32xf32>
    %419 = vector.shape_cast %418 : vector<1x4x32xf32> to vector<4x32xf32>
    %420 = vector.shape_cast %416 : vector<4x32xf32> to vector<1x4x32xf32>
    tpu.vector_store %arg11[%417, %c0_167, %c0_168], %420 {strides = array<i32>} : memref<8x4x32xf32, #tpu.memory_space<vmem>>, vector<1x4x32xf32>,
    %c5_i32 = arith.constant 5 : i32
    %421 = arith.index_cast %c5_i32 : i32 to index
    %c0_169 = arith.constant 0 : index
    %c0_170 = arith.constant 0 : index
    %422 = vector.load %arg10[%421, %c0_169, %c0_170] : memref<8x4x96xf32, #tpu.memory_space<vmem>>, vector<1x4x96xf32>
    %423 = vector.shape_cast %422 : vector<1x4x96xf32> to vector<4x96xf32>
    %c0_171 = arith.constant 0 : index
    %c0_172 = arith.constant 0 : index
    %c0_173 = arith.constant 0 : index
    %424 = vector.load %arg4[%c0_171, %c0_172, %c0_173] : memref<2x32x96xf32, #tpu.memory_space<vmem>>, vector<1x32x96xf32>
    %425 = vector.shape_cast %424 : vector<1x32x96xf32> to vector<32x96xf32>
    %cst_174 = arith.constant dense<0.000000e+00> : vector<4x96xf32>
    %426 = tpu.matmul %376, %425, %cst_174 {dimension_numbers = #tpu.dot_dimension_numbers<[1], [0], [0], [1], [0, 0, 1, 1], [], []>} : vector<4x32xf32>, vector<32x96xf32>, vector<4x96xf32> -> vector<4x96xf32>
    %c0_175 = arith.constant 0 : index
    %c0_176 = arith.constant 0 : index
    %c0_177 = arith.constant 0 : index
    %427 = vector.load %arg6[%c0_175, %c0_176, %c0_177] : memref<2x1x96xf32, #tpu.memory_space<vmem>>, vector<1x1x96xf32>
    %428 = vector.shape_cast %427 : vector<1x1x96xf32> to vector<1x96xf32>
    %429 = vector.broadcast %428 : vector<1x96xf32> to vector<4x96xf32>
    %430 = arith.addf %426, %429 : vector<4x96xf32>
    %431 = vector.extract_strided_slice %423 {offsets = [0, 0], sizes = [4, 32], strides = [1, 1]} : vector<4x96xf32> to vector<4x32xf32>
    %432 = vector.extract_strided_slice %430 {offsets = [0, 0], sizes = [4, 32], strides = [1, 1]} : vector<4x96xf32> to vector<4x32xf32>
    %433 = arith.addf %431, %432 : vector<4x32xf32>
    %434 = arith.negf %433 : vector<4x32xf32>
    %435 = math.exp %434 : vector<4x32xf32>
    %cst_178 = arith.constant 1.000000e+00 : f32
    %436 = vector.broadcast %cst_178 : f32 to vector<4x32xf32>
    %437 = arith.addf %436, %435 : vector<4x32xf32>
    %438 = arith.divf %436, %437 : vector<4x32xf32>
    %439 = vector.extract_strided_slice %423 {offsets = [0, 32], sizes = [4, 32], strides = [1, 1]} : vector<4x96xf32> to vector<4x32xf32>
    %440 = vector.extract_strided_slice %430 {offsets = [0, 32], sizes = [4, 32], strides = [1, 1]} : vector<4x96xf32> to vector<4x32xf32>
    %441 = arith.addf %439, %440 : vector<4x32xf32>
    %442 = arith.negf %441 : vector<4x32xf32>
    %443 = math.exp %442 : vector<4x32xf32>
    %cst_179 = arith.constant 1.000000e+00 : f32
    %444 = vector.broadcast %cst_179 : f32 to vector<4x32xf32>
    %445 = arith.addf %444, %443 : vector<4x32xf32>
    %446 = arith.divf %444, %445 : vector<4x32xf32>
    %447 = vector.extract_strided_slice %423 {offsets = [0, 64], sizes = [4, 32], strides = [1, 1]} : vector<4x96xf32> to vector<4x32xf32>
    %448 = vector.extract_strided_slice %430 {offsets = [0, 64], sizes = [4, 32], strides = [1, 1]} : vector<4x96xf32> to vector<4x32xf32>
    %449 = arith.mulf %438, %448 : vector<4x32xf32>
    %450 = arith.addf %447, %449 : vector<4x32xf32>
    %451 = math.tanh %450 : vector<4x32xf32>
    %cst_180 = arith.constant 1.000000e+00 : f32
    %452 = vector.broadcast %cst_180 : f32 to vector<4x32xf32>
    %453 = arith.subf %452, %446 : vector<4x32xf32>
    %454 = arith.mulf %453, %451 : vector<4x32xf32>
    %455 = arith.mulf %446, %376 : vector<4x32xf32>
    %456 = arith.addf %454, %455 : vector<4x32xf32>
    %c1_181 = arith.constant 1 : index
    %c0_182 = arith.constant 0 : index
    %c0_183 = arith.constant 0 : index
    %457 = vector.load %arg3[%c1_181, %c0_182, %c0_183] : memref<2x32x96xf32, #tpu.memory_space<vmem>>, vector<1x32x96xf32>
    %458 = vector.shape_cast %457 : vector<1x32x96xf32> to vector<32x96xf32>
    %cst_184 = arith.constant dense<0.000000e+00> : vector<4x96xf32>
    %459 = tpu.matmul %456, %458, %cst_184 {dimension_numbers = #tpu.dot_dimension_numbers<[1], [0], [0], [1], [0, 0, 1, 1], [], []>} : vector<4x32xf32>, vector<32x96xf32>, vector<4x96xf32> -> vector<4x96xf32>
    %c1_185 = arith.constant 1 : index
    %c0_186 = arith.constant 0 : index
    %c0_187 = arith.constant 0 : index
    %460 = vector.load %arg5[%c1_185, %c0_186, %c0_187] : memref<2x1x96xf32, #tpu.memory_space<vmem>>, vector<1x1x96xf32>
    %461 = vector.shape_cast %460 : vector<1x1x96xf32> to vector<1x96xf32>
    %462 = vector.broadcast %461 : vector<1x96xf32> to vector<4x96xf32>
    %463 = arith.addf %459, %462 : vector<4x96xf32>
    %c1_188 = arith.constant 1 : index
    %c0_189 = arith.constant 0 : index
    %c0_190 = arith.constant 0 : index
    %464 = vector.load %arg4[%c1_188, %c0_189, %c0_190] : memref<2x32x96xf32, #tpu.memory_space<vmem>>, vector<1x32x96xf32>
    %465 = vector.shape_cast %464 : vector<1x32x96xf32> to vector<32x96xf32>
    %cst_191 = arith.constant dense<0.000000e+00> : vector<4x96xf32>
    %466 = tpu.matmul %416, %465, %cst_191 {dimension_numbers = #tpu.dot_dimension_numbers<[1], [0], [0], [1], [0, 0, 1, 1], [], []>} : vector<4x32xf32>, vector<32x96xf32>, vector<4x96xf32> -> vector<4x96xf32>
    %c1_192 = arith.constant 1 : index
    %c0_193 = arith.constant 0 : index
    %c0_194 = arith.constant 0 : index
    %467 = vector.load %arg6[%c1_192, %c0_193, %c0_194] : memref<2x1x96xf32, #tpu.memory_space<vmem>>, vector<1x1x96xf32>
    %468 = vector.shape_cast %467 : vector<1x1x96xf32> to vector<1x96xf32>
    %469 = vector.broadcast %468 : vector<1x96xf32> to vector<4x96xf32>
    %470 = arith.addf %466, %469 : vector<4x96xf32>
    %471 = vector.extract_strided_slice %463 {offsets = [0, 0], sizes = [4, 32], strides = [1, 1]} : vector<4x96xf32> to vector<4x32xf32>
    %472 = vector.extract_strided_slice %470 {offsets = [0, 0], sizes = [4, 32], strides = [1, 1]} : vector<4x96xf32> to vector<4x32xf32>
    %473 = arith.addf %471, %472 : vector<4x32xf32>
    %474 = arith.negf %473 : vector<4x32xf32>
    %475 = math.exp %474 : vector<4x32xf32>
    %cst_195 = arith.constant 1.000000e+00 : f32
    %476 = vector.broadcast %cst_195 : f32 to vector<4x32xf32>
    %477 = arith.addf %476, %475 : vector<4x32xf32>
    %478 = arith.divf %476, %477 : vector<4x32xf32>
    %479 = vector.extract_strided_slice %463 {offsets = [0, 32], sizes = [4, 32], strides = [1, 1]} : vector<4x96xf32> to vector<4x32xf32>
    %480 = vector.extract_strided_slice %470 {offsets = [0, 32], sizes = [4, 32], strides = [1, 1]} : vector<4x96xf32> to vector<4x32xf32>
    %481 = arith.addf %479, %480 : vector<4x32xf32>
    %482 = arith.negf %481 : vector<4x32xf32>
    %483 = math.exp %482 : vector<4x32xf32>
    %cst_196 = arith.constant 1.000000e+00 : f32
    %484 = vector.broadcast %cst_196 : f32 to vector<4x32xf32>
    %485 = arith.addf %484, %483 : vector<4x32xf32>
    %486 = arith.divf %484, %485 : vector<4x32xf32>
    %487 = vector.extract_strided_slice %463 {offsets = [0, 64], sizes = [4, 32], strides = [1, 1]} : vector<4x96xf32> to vector<4x32xf32>
    %488 = vector.extract_strided_slice %470 {offsets = [0, 64], sizes = [4, 32], strides = [1, 1]} : vector<4x96xf32> to vector<4x32xf32>
    %489 = arith.mulf %478, %488 : vector<4x32xf32>
    %490 = arith.addf %487, %489 : vector<4x32xf32>
    %491 = math.tanh %490 : vector<4x32xf32>
    %cst_197 = arith.constant 1.000000e+00 : f32
    %492 = vector.broadcast %cst_197 : f32 to vector<4x32xf32>
    %493 = arith.subf %492, %486 : vector<4x32xf32>
    %494 = arith.mulf %493, %491 : vector<4x32xf32>
    %495 = arith.mulf %486, %416 : vector<4x32xf32>
    %496 = arith.addf %494, %495 : vector<4x32xf32>
    %497 = arith.index_cast %c5_i32 : i32 to index
    %c0_198 = arith.constant 0 : index
    %c0_199 = arith.constant 0 : index
    %498 = vector.load %arg11[%497, %c0_198, %c0_199] : memref<8x4x32xf32, #tpu.memory_space<vmem>>, vector<1x4x32xf32>
    %499 = vector.shape_cast %498 : vector<1x4x32xf32> to vector<4x32xf32>
    %500 = vector.shape_cast %496 : vector<4x32xf32> to vector<1x4x32xf32>
    tpu.vector_store %arg11[%497, %c0_198, %c0_199], %500 {strides = array<i32>} : memref<8x4x32xf32, #tpu.memory_space<vmem>>, vector<1x4x32xf32>,
    %c6_i32 = arith.constant 6 : i32
    %501 = arith.index_cast %c6_i32 : i32 to index
    %c0_200 = arith.constant 0 : index
    %c0_201 = arith.constant 0 : index
    %502 = vector.load %arg10[%501, %c0_200, %c0_201] : memref<8x4x96xf32, #tpu.memory_space<vmem>>, vector<1x4x96xf32>
    %503 = vector.shape_cast %502 : vector<1x4x96xf32> to vector<4x96xf32>
    %c0_202 = arith.constant 0 : index
    %c0_203 = arith.constant 0 : index
    %c0_204 = arith.constant 0 : index
    %504 = vector.load %arg4[%c0_202, %c0_203, %c0_204] : memref<2x32x96xf32, #tpu.memory_space<vmem>>, vector<1x32x96xf32>
    %505 = vector.shape_cast %504 : vector<1x32x96xf32> to vector<32x96xf32>
    %cst_205 = arith.constant dense<0.000000e+00> : vector<4x96xf32>
    %506 = tpu.matmul %456, %505, %cst_205 {dimension_numbers = #tpu.dot_dimension_numbers<[1], [0], [0], [1], [0, 0, 1, 1], [], []>} : vector<4x32xf32>, vector<32x96xf32>, vector<4x96xf32> -> vector<4x96xf32>
    %c0_206 = arith.constant 0 : index
    %c0_207 = arith.constant 0 : index
    %c0_208 = arith.constant 0 : index
    %507 = vector.load %arg6[%c0_206, %c0_207, %c0_208] : memref<2x1x96xf32, #tpu.memory_space<vmem>>, vector<1x1x96xf32>
    %508 = vector.shape_cast %507 : vector<1x1x96xf32> to vector<1x96xf32>
    %509 = vector.broadcast %508 : vector<1x96xf32> to vector<4x96xf32>
    %510 = arith.addf %506, %509 : vector<4x96xf32>
    %511 = vector.extract_strided_slice %503 {offsets = [0, 0], sizes = [4, 32], strides = [1, 1]} : vector<4x96xf32> to vector<4x32xf32>
    %512 = vector.extract_strided_slice %510 {offsets = [0, 0], sizes = [4, 32], strides = [1, 1]} : vector<4x96xf32> to vector<4x32xf32>
    %513 = arith.addf %511, %512 : vector<4x32xf32>
    %514 = arith.negf %513 : vector<4x32xf32>
    %515 = math.exp %514 : vector<4x32xf32>
    %cst_209 = arith.constant 1.000000e+00 : f32
    %516 = vector.broadcast %cst_209 : f32 to vector<4x32xf32>
    %517 = arith.addf %516, %515 : vector<4x32xf32>
    %518 = arith.divf %516, %517 : vector<4x32xf32>
    %519 = vector.extract_strided_slice %503 {offsets = [0, 32], sizes = [4, 32], strides = [1, 1]} : vector<4x96xf32> to vector<4x32xf32>
    %520 = vector.extract_strided_slice %510 {offsets = [0, 32], sizes = [4, 32], strides = [1, 1]} : vector<4x96xf32> to vector<4x32xf32>
    %521 = arith.addf %519, %520 : vector<4x32xf32>
    %522 = arith.negf %521 : vector<4x32xf32>
    %523 = math.exp %522 : vector<4x32xf32>
    %cst_210 = arith.constant 1.000000e+00 : f32
    %524 = vector.broadcast %cst_210 : f32 to vector<4x32xf32>
    %525 = arith.addf %524, %523 : vector<4x32xf32>
    %526 = arith.divf %524, %525 : vector<4x32xf32>
    %527 = vector.extract_strided_slice %503 {offsets = [0, 64], sizes = [4, 32], strides = [1, 1]} : vector<4x96xf32> to vector<4x32xf32>
    %528 = vector.extract_strided_slice %510 {offsets = [0, 64], sizes = [4, 32], strides = [1, 1]} : vector<4x96xf32> to vector<4x32xf32>
    %529 = arith.mulf %518, %528 : vector<4x32xf32>
    %530 = arith.addf %527, %529 : vector<4x32xf32>
    %531 = math.tanh %530 : vector<4x32xf32>
    %cst_211 = arith.constant 1.000000e+00 : f32
    %532 = vector.broadcast %cst_211 : f32 to vector<4x32xf32>
    %533 = arith.subf %532, %526 : vector<4x32xf32>
    %534 = arith.mulf %533, %531 : vector<4x32xf32>
    %535 = arith.mulf %526, %456 : vector<4x32xf32>
    %536 = arith.addf %534, %535 : vector<4x32xf32>
    %c1_212 = arith.constant 1 : index
    %c0_213 = arith.constant 0 : index
    %c0_214 = arith.constant 0 : index
    %537 = vector.load %arg3[%c1_212, %c0_213, %c0_214] : memref<2x32x96xf32, #tpu.memory_space<vmem>>, vector<1x32x96xf32>
    %538 = vector.shape_cast %537 : vector<1x32x96xf32> to vector<32x96xf32>
    %cst_215 = arith.constant dense<0.000000e+00> : vector<4x96xf32>
    %539 = tpu.matmul %536, %538, %cst_215 {dimension_numbers = #tpu.dot_dimension_numbers<[1], [0], [0], [1], [0, 0, 1, 1], [], []>} : vector<4x32xf32>, vector<32x96xf32>, vector<4x96xf32> -> vector<4x96xf32>
    %c1_216 = arith.constant 1 : index
    %c0_217 = arith.constant 0 : index
    %c0_218 = arith.constant 0 : index
    %540 = vector.load %arg5[%c1_216, %c0_217, %c0_218] : memref<2x1x96xf32, #tpu.memory_space<vmem>>, vector<1x1x96xf32>
    %541 = vector.shape_cast %540 : vector<1x1x96xf32> to vector<1x96xf32>
    %542 = vector.broadcast %541 : vector<1x96xf32> to vector<4x96xf32>
    %543 = arith.addf %539, %542 : vector<4x96xf32>
    %c1_219 = arith.constant 1 : index
    %c0_220 = arith.constant 0 : index
    %c0_221 = arith.constant 0 : index
    %544 = vector.load %arg4[%c1_219, %c0_220, %c0_221] : memref<2x32x96xf32, #tpu.memory_space<vmem>>, vector<1x32x96xf32>
    %545 = vector.shape_cast %544 : vector<1x32x96xf32> to vector<32x96xf32>
    %cst_222 = arith.constant dense<0.000000e+00> : vector<4x96xf32>
    %546 = tpu.matmul %496, %545, %cst_222 {dimension_numbers = #tpu.dot_dimension_numbers<[1], [0], [0], [1], [0, 0, 1, 1], [], []>} : vector<4x32xf32>, vector<32x96xf32>, vector<4x96xf32> -> vector<4x96xf32>
    %c1_223 = arith.constant 1 : index
    %c0_224 = arith.constant 0 : index
    %c0_225 = arith.constant 0 : index
    %547 = vector.load %arg6[%c1_223, %c0_224, %c0_225] : memref<2x1x96xf32, #tpu.memory_space<vmem>>, vector<1x1x96xf32>
    %548 = vector.shape_cast %547 : vector<1x1x96xf32> to vector<1x96xf32>
    %549 = vector.broadcast %548 : vector<1x96xf32> to vector<4x96xf32>
    %550 = arith.addf %546, %549 : vector<4x96xf32>
    %551 = vector.extract_strided_slice %543 {offsets = [0, 0], sizes = [4, 32], strides = [1, 1]} : vector<4x96xf32> to vector<4x32xf32>
    %552 = vector.extract_strided_slice %550 {offsets = [0, 0], sizes = [4, 32], strides = [1, 1]} : vector<4x96xf32> to vector<4x32xf32>
    %553 = arith.addf %551, %552 : vector<4x32xf32>
    %554 = arith.negf %553 : vector<4x32xf32>
    %555 = math.exp %554 : vector<4x32xf32>
    %cst_226 = arith.constant 1.000000e+00 : f32
    %556 = vector.broadcast %cst_226 : f32 to vector<4x32xf32>
    %557 = arith.addf %556, %555 : vector<4x32xf32>
    %558 = arith.divf %556, %557 : vector<4x32xf32>
    %559 = vector.extract_strided_slice %543 {offsets = [0, 32], sizes = [4, 32], strides = [1, 1]} : vector<4x96xf32> to vector<4x32xf32>
    %560 = vector.extract_strided_slice %550 {offsets = [0, 32], sizes = [4, 32], strides = [1, 1]} : vector<4x96xf32> to vector<4x32xf32>
    %561 = arith.addf %559, %560 : vector<4x32xf32>
    %562 = arith.negf %561 : vector<4x32xf32>
    %563 = math.exp %562 : vector<4x32xf32>
    %cst_227 = arith.constant 1.000000e+00 : f32
    %564 = vector.broadcast %cst_227 : f32 to vector<4x32xf32>
    %565 = arith.addf %564, %563 : vector<4x32xf32>
    %566 = arith.divf %564, %565 : vector<4x32xf32>
    %567 = vector.extract_strided_slice %543 {offsets = [0, 64], sizes = [4, 32], strides = [1, 1]} : vector<4x96xf32> to vector<4x32xf32>
    %568 = vector.extract_strided_slice %550 {offsets = [0, 64], sizes = [4, 32], strides = [1, 1]} : vector<4x96xf32> to vector<4x32xf32>
    %569 = arith.mulf %558, %568 : vector<4x32xf32>
    %570 = arith.addf %567, %569 : vector<4x32xf32>
    %571 = math.tanh %570 : vector<4x32xf32>
    %cst_228 = arith.constant 1.000000e+00 : f32
    %572 = vector.broadcast %cst_228 : f32 to vector<4x32xf32>
    %573 = arith.subf %572, %566 : vector<4x32xf32>
    %574 = arith.mulf %573, %571 : vector<4x32xf32>
    %575 = arith.mulf %566, %496 : vector<4x32xf32>
    %576 = arith.addf %574, %575 : vector<4x32xf32>
    %577 = arith.index_cast %c6_i32 : i32 to index
    %c0_229 = arith.constant 0 : index
    %c0_230 = arith.constant 0 : index
    %578 = vector.load %arg11[%577, %c0_229, %c0_230] : memref<8x4x32xf32, #tpu.memory_space<vmem>>, vector<1x4x32xf32>
    %579 = vector.shape_cast %578 : vector<1x4x32xf32> to vector<4x32xf32>
    %580 = vector.shape_cast %576 : vector<4x32xf32> to vector<1x4x32xf32>
    tpu.vector_store %arg11[%577, %c0_229, %c0_230], %580 {strides = array<i32>} : memref<8x4x32xf32, #tpu.memory_space<vmem>>, vector<1x4x32xf32>,
    %c7_i32 = arith.constant 7 : i32
    %581 = arith.index_cast %c7_i32 : i32 to index
    %c0_231 = arith.constant 0 : index
    %c0_232 = arith.constant 0 : index
    %582 = vector.load %arg10[%581, %c0_231, %c0_232] : memref<8x4x96xf32, #tpu.memory_space<vmem>>, vector<1x4x96xf32>
    %583 = vector.shape_cast %582 : vector<1x4x96xf32> to vector<4x96xf32>
    %c0_233 = arith.constant 0 : index
    %c0_234 = arith.constant 0 : index
    %c0_235 = arith.constant 0 : index
    %584 = vector.load %arg4[%c0_233, %c0_234, %c0_235] : memref<2x32x96xf32, #tpu.memory_space<vmem>>, vector<1x32x96xf32>
    %585 = vector.shape_cast %584 : vector<1x32x96xf32> to vector<32x96xf32>
    %cst_236 = arith.constant dense<0.000000e+00> : vector<4x96xf32>
    %586 = tpu.matmul %536, %585, %cst_236 {dimension_numbers = #tpu.dot_dimension_numbers<[1], [0], [0], [1], [0, 0, 1, 1], [], []>} : vector<4x32xf32>, vector<32x96xf32>, vector<4x96xf32> -> vector<4x96xf32>
    %c0_237 = arith.constant 0 : index
    %c0_238 = arith.constant 0 : index
    %c0_239 = arith.constant 0 : index
    %587 = vector.load %arg6[%c0_237, %c0_238, %c0_239] : memref<2x1x96xf32, #tpu.memory_space<vmem>>, vector<1x1x96xf32>
    %588 = vector.shape_cast %587 : vector<1x1x96xf32> to vector<1x96xf32>
    %589 = vector.broadcast %588 : vector<1x96xf32> to vector<4x96xf32>
    %590 = arith.addf %586, %589 : vector<4x96xf32>
    %591 = vector.extract_strided_slice %583 {offsets = [0, 0], sizes = [4, 32], strides = [1, 1]} : vector<4x96xf32> to vector<4x32xf32>
    %592 = vector.extract_strided_slice %590 {offsets = [0, 0], sizes = [4, 32], strides = [1, 1]} : vector<4x96xf32> to vector<4x32xf32>
    %593 = arith.addf %591, %592 : vector<4x32xf32>
    %594 = arith.negf %593 : vector<4x32xf32>
    %595 = math.exp %594 : vector<4x32xf32>
    %cst_240 = arith.constant 1.000000e+00 : f32
    %596 = vector.broadcast %cst_240 : f32 to vector<4x32xf32>
    %597 = arith.addf %596, %595 : vector<4x32xf32>
    %598 = arith.divf %596, %597 : vector<4x32xf32>
    %599 = vector.extract_strided_slice %583 {offsets = [0, 32], sizes = [4, 32], strides = [1, 1]} : vector<4x96xf32> to vector<4x32xf32>
    %600 = vector.extract_strided_slice %590 {offsets = [0, 32], sizes = [4, 32], strides = [1, 1]} : vector<4x96xf32> to vector<4x32xf32>
    %601 = arith.addf %599, %600 : vector<4x32xf32>
    %602 = arith.negf %601 : vector<4x32xf32>
    %603 = math.exp %602 : vector<4x32xf32>
    %cst_241 = arith.constant 1.000000e+00 : f32
    %604 = vector.broadcast %cst_241 : f32 to vector<4x32xf32>
    %605 = arith.addf %604, %603 : vector<4x32xf32>
    %606 = arith.divf %604, %605 : vector<4x32xf32>
    %607 = vector.extract_strided_slice %583 {offsets = [0, 64], sizes = [4, 32], strides = [1, 1]} : vector<4x96xf32> to vector<4x32xf32>
    %608 = vector.extract_strided_slice %590 {offsets = [0, 64], sizes = [4, 32], strides = [1, 1]} : vector<4x96xf32> to vector<4x32xf32>
    %609 = arith.mulf %598, %608 : vector<4x32xf32>
    %610 = arith.addf %607, %609 : vector<4x32xf32>
    %611 = math.tanh %610 : vector<4x32xf32>
    %cst_242 = arith.constant 1.000000e+00 : f32
    %612 = vector.broadcast %cst_242 : f32 to vector<4x32xf32>
    %613 = arith.subf %612, %606 : vector<4x32xf32>
    %614 = arith.mulf %613, %611 : vector<4x32xf32>
    %615 = arith.mulf %606, %536 : vector<4x32xf32>
    %616 = arith.addf %614, %615 : vector<4x32xf32>
    %c1_243 = arith.constant 1 : index
    %c0_244 = arith.constant 0 : index
    %c0_245 = arith.constant 0 : index
    %617 = vector.load %arg3[%c1_243, %c0_244, %c0_245] : memref<2x32x96xf32, #tpu.memory_space<vmem>>, vector<1x32x96xf32>
    %618 = vector.shape_cast %617 : vector<1x32x96xf32> to vector<32x96xf32>
    %cst_246 = arith.constant dense<0.000000e+00> : vector<4x96xf32>
    %619 = tpu.matmul %616, %618, %cst_246 {dimension_numbers = #tpu.dot_dimension_numbers<[1], [0], [0], [1], [0, 0, 1, 1], [], []>} : vector<4x32xf32>, vector<32x96xf32>, vector<4x96xf32> -> vector<4x96xf32>
    %c1_247 = arith.constant 1 : index
    %c0_248 = arith.constant 0 : index
    %c0_249 = arith.constant 0 : index
    %620 = vector.load %arg5[%c1_247, %c0_248, %c0_249] : memref<2x1x96xf32, #tpu.memory_space<vmem>>, vector<1x1x96xf32>
    %621 = vector.shape_cast %620 : vector<1x1x96xf32> to vector<1x96xf32>
    %622 = vector.broadcast %621 : vector<1x96xf32> to vector<4x96xf32>
    %623 = arith.addf %619, %622 : vector<4x96xf32>
    %c1_250 = arith.constant 1 : index
    %c0_251 = arith.constant 0 : index
    %c0_252 = arith.constant 0 : index
    %624 = vector.load %arg4[%c1_250, %c0_251, %c0_252] : memref<2x32x96xf32, #tpu.memory_space<vmem>>, vector<1x32x96xf32>
    %625 = vector.shape_cast %624 : vector<1x32x96xf32> to vector<32x96xf32>
    %cst_253 = arith.constant dense<0.000000e+00> : vector<4x96xf32>
    %626 = tpu.matmul %576, %625, %cst_253 {dimension_numbers = #tpu.dot_dimension_numbers<[1], [0], [0], [1], [0, 0, 1, 1], [], []>} : vector<4x32xf32>, vector<32x96xf32>, vector<4x96xf32> -> vector<4x96xf32>
    %c1_254 = arith.constant 1 : index
    %c0_255 = arith.constant 0 : index
    %c0_256 = arith.constant 0 : index
    %627 = vector.load %arg6[%c1_254, %c0_255, %c0_256] : memref<2x1x96xf32, #tpu.memory_space<vmem>>, vector<1x1x96xf32>
    %628 = vector.shape_cast %627 : vector<1x1x96xf32> to vector<1x96xf32>
    %629 = vector.broadcast %628 : vector<1x96xf32> to vector<4x96xf32>
    %630 = arith.addf %626, %629 : vector<4x96xf32>
    %631 = vector.extract_strided_slice %623 {offsets = [0, 0], sizes = [4, 32], strides = [1, 1]} : vector<4x96xf32> to vector<4x32xf32>
    %632 = vector.extract_strided_slice %630 {offsets = [0, 0], sizes = [4, 32], strides = [1, 1]} : vector<4x96xf32> to vector<4x32xf32>
    %633 = arith.addf %631, %632 : vector<4x32xf32>
    %634 = arith.negf %633 : vector<4x32xf32>
    %635 = math.exp %634 : vector<4x32xf32>
    %cst_257 = arith.constant 1.000000e+00 : f32
    %636 = vector.broadcast %cst_257 : f32 to vector<4x32xf32>
    %637 = arith.addf %636, %635 : vector<4x32xf32>
    %638 = arith.divf %636, %637 : vector<4x32xf32>
    %639 = vector.extract_strided_slice %623 {offsets = [0, 32], sizes = [4, 32], strides = [1, 1]} : vector<4x96xf32> to vector<4x32xf32>
    %640 = vector.extract_strided_slice %630 {offsets = [0, 32], sizes = [4, 32], strides = [1, 1]} : vector<4x96xf32> to vector<4x32xf32>
    %641 = arith.addf %639, %640 : vector<4x32xf32>
    %642 = arith.negf %641 : vector<4x32xf32>
    %643 = math.exp %642 : vector<4x32xf32>
    %cst_258 = arith.constant 1.000000e+00 : f32
    %644 = vector.broadcast %cst_258 : f32 to vector<4x32xf32>
    %645 = arith.addf %644, %643 : vector<4x32xf32>
    %646 = arith.divf %644, %645 : vector<4x32xf32>
    %647 = vector.extract_strided_slice %623 {offsets = [0, 64], sizes = [4, 32], strides = [1, 1]} : vector<4x96xf32> to vector<4x32xf32>
    %648 = vector.extract_strided_slice %630 {offsets = [0, 64], sizes = [4, 32], strides = [1, 1]} : vector<4x96xf32> to vector<4x32xf32>
    %649 = arith.mulf %638, %648 : vector<4x32xf32>
    %650 = arith.addf %647, %649 : vector<4x32xf32>
    %651 = math.tanh %650 : vector<4x32xf32>
    %cst_259 = arith.constant 1.000000e+00 : f32
    %652 = vector.broadcast %cst_259 : f32 to vector<4x32xf32>
    %653 = arith.subf %652, %646 : vector<4x32xf32>
    %654 = arith.mulf %653, %651 : vector<4x32xf32>
    %655 = arith.mulf %646, %576 : vector<4x32xf32>
    %656 = arith.addf %654, %655 : vector<4x32xf32>
    %657 = arith.index_cast %c7_i32 : i32 to index
    %c0_260 = arith.constant 0 : index
    %c0_261 = arith.constant 0 : index
    %658 = vector.load %arg11[%657, %c0_260, %c0_261] : memref<8x4x32xf32, #tpu.memory_space<vmem>>, vector<1x4x32xf32>
    %659 = vector.shape_cast %658 : vector<1x4x32xf32> to vector<4x32xf32>
    %660 = vector.shape_cast %656 : vector<4x32xf32> to vector<1x4x32xf32>
    tpu.vector_store %arg11[%657, %c0_260, %c0_261], %660 {strides = array<i32>} : memref<8x4x32xf32, #tpu.memory_space<vmem>>, vector<1x4x32xf32>,
    %c8_i32 = arith.constant 8 : i32
    %c0_262 = arith.constant 0 : index
    %c0_263 = arith.constant 0 : index
    %c0_264 = arith.constant 0 : index
    %661 = vector.load %arg11[%c0_262, %c0_263, %c0_264] : memref<8x4x32xf32, #tpu.memory_space<vmem>>, vector<8x4x32xf32>
    %662 = vector.shape_cast %661 : vector<8x4x32xf32> to vector<32x32xf32>
    %c0_265 = arith.constant 0 : index
    %c0_266 = arith.constant 0 : index
    %663 = vector.load %arg7[%c0_265, %c0_266] : memref<32x16xf32, #tpu.memory_space<vmem>>, vector<32x16xf32>
    %cst_267 = arith.constant dense<0.000000e+00> : vector<32x16xf32>
    %664 = tpu.matmul %662, %663, %cst_267 {dimension_numbers = #tpu.dot_dimension_numbers<[1], [0], [0], [1], [0, 0, 1, 1], [], []>} : vector<32x32xf32>, vector<32x16xf32>, vector<32x16xf32> -> vector<32x16xf32>
    %c0_268 = arith.constant 0 : index
    %c0_269 = arith.constant 0 : index
    %665 = vector.load %arg8[%c0_268, %c0_269] : memref<1x16xf32, #tpu.memory_space<vmem>>, vector<1x16xf32>
    %666 = vector.broadcast %665 : vector<1x16xf32> to vector<32x16xf32>
    %667 = arith.addf %664, %666 : vector<32x16xf32>
    %668 = vector.shape_cast %667 : vector<32x16xf32> to vector<8x4x16xf32>
    %c0_270 = arith.constant 0 : index
    %c0_271 = arith.constant 0 : index
    %c0_272 = arith.constant 0 : index
    %669 = vector.load %arg9[%c0_270, %c0_271, %c0_272] : memref<8x4x16xf32, #tpu.memory_space<vmem>>, vector<8x4x16xf32>
    tpu.vector_store %arg9[%c0_270, %c0_271, %c0_272], %668 {strides = array<i32>} : memref<8x4x16xf32, #tpu.memory_space<vmem>>, vector<8x4x16xf32>,
    return
  }
  func.func @transform_0(%arg0: i32) -> (i32, i32) {
    %c0_i32 = arith.constant 0 : i32
    %c0_i32_0 = arith.constant 0 : i32
    %c0_i32_1 = arith.constant 0 : i32
    return %c0_i32, %c0_i32_0 : i32, i32
  }
  func.func @transform_1(%arg0: i32) -> (i32, i32) {
    %c0_i32 = arith.constant 0 : i32
    %c0_i32_0 = arith.constant 0 : i32
    %c0_i32_1 = arith.constant 0 : i32
    return %c0_i32, %c0_i32_0 : i32, i32
  }
  func.func @transform_2(%arg0: i32) -> (i32, i32, i32) {
    %c0_i32 = arith.constant 0 : i32
    %c0_i32_0 = arith.constant 0 : i32
    %c0_i32_1 = arith.constant 0 : i32
    %c0_i32_2 = arith.constant 0 : i32
    return %c0_i32, %c0_i32_0, %c0_i32_1 : i32, i32, i32
  }
  func.func @transform_3(%arg0: i32) -> (i32, i32, i32) {
    %c0_i32 = arith.constant 0 : i32
    %c0_i32_0 = arith.constant 0 : i32
    %c0_i32_1 = arith.constant 0 : i32
    %c0_i32_2 = arith.constant 0 : i32
    return %c0_i32, %c0_i32_0, %c0_i32_1 : i32, i32, i32
  }
  func.func @transform_4(%arg0: i32) -> (i32, i32, i32) {
    %c0_i32 = arith.constant 0 : i32
    %c0_i32_0 = arith.constant 0 : i32
    %c0_i32_1 = arith.constant 0 : i32
    %c0_i32_2 = arith.constant 0 : i32
    return %c0_i32, %c0_i32_0, %c0_i32_1 : i32, i32, i32
  }
  func.func @transform_5(%arg0: i32) -> (i32, i32, i32) {
    %c0_i32 = arith.constant 0 : i32
    %c0_i32_0 = arith.constant 0 : i32
    %c0_i32_1 = arith.constant 0 : i32
    %c0_i32_2 = arith.constant 0 : i32
    return %c0_i32, %c0_i32_0, %c0_i32_1 : i32, i32, i32
  }
  func.func @transform_6(%arg0: i32) -> (i32, i32) {
    %c0_i32 = arith.constant 0 : i32
    %c0_i32_0 = arith.constant 0 : i32
    %c0_i32_1 = arith.constant 0 : i32
    return %c0_i32, %c0_i32_0 : i32, i32
  }
  func.func @transform_7(%arg0: i32) -> (i32, i32) {
    %c0_i32 = arith.constant 0 : i32
    %c0_i32_0 = arith.constant 0 : i32
    %c0_i32_1 = arith.constant 0 : i32
    return %c0_i32, %c0_i32_0 : i32, i32
  }
  func.func @transform_8(%arg0: i32) -> (i32, i32, i32) {
    %c0_i32 = arith.constant 0 : i32
    %c0_i32_0 = arith.constant 0 : i32
    %c0_i32_1 = arith.constant 0 : i32
    %c0_i32_2 = arith.constant 0 : i32
    return %c0_i32, %c0_i32_0, %c0_i32_1 : i32, i32, i32
  }
}

</mosaic_0001>

<llo_original>
// kernel: tpu_custom_call.1
$region0: #{tpu_custom_call.1}
  #allocation0 [shape = 'u32[]', space=smem, size = 0x4, offset = 0x4, fixed_abs, tag = 'smem constant byte address 0x4 - core index']
  #allocation1 [shape = 'u32[144,128]{1,0:T(1,128)}', space=vmem, size = 0x12000, scoped, tag = 'internal scratch']
  #allocation2 [shape = 'f32[8,4,96]{2,1,0:T(4,128)}', space=vmem, size = 0x4000, scoped, tag = 'scratch operand']
  #allocation3 [shape = 'f32[8,4,32]{2,1,0:T(4,128)}', space=vmem, size = 0x4000, scoped, tag = 'scratch operand']
  %s0 = inlined_call_operand.vmem [shape: s32[8,4], index: 0, kind: input, shape index: {}]
  %s1 = inlined_call_operand.hbm [shape: f32[16,32], index: 1, kind: input, shape index: {}]
  %s2 = inlined_call_operand.vmem [shape: f32[2,32,96], index: 2, kind: input, shape index: {}]
  %s3 = inlined_call_operand.hbm [shape: f32[2,32,96], index: 3, kind: input, shape index: {}]
  %s4 = inlined_call_operand.vmem [shape: f32[2,1,96], index: 4, kind: input, shape index: {}]
  %s5 = inlined_call_operand.hbm [shape: f32[2,1,96], index: 5, kind: input, shape index: {}]
  %s6 = inlined_call_operand.vmem [shape: f32[32,16], index: 6, kind: input, shape index: {}]
  %s7 = inlined_call_operand.vmem [shape: f32[1,16], index: 7, kind: input, shape index: {}]
  %s8 = inlined_call_operand.hbm [shape: f32[8,4,16], index: 8, kind: output, shape index: {}]
  %s9 = sld [smem:[#allocation0]]
  $region54: #{tpu_custom_call.1} parent=0
    _
  %s11 = ssub.s32 1, %s9
  %s12 = scalar_select 0, %s11, %s9
  $region1: #{tpu_custom_call.1} parent=0
    #allocation4 [shape = 'u8[8192]{0}', space=vmem, size = 0x2000, scoped, tag = 'input window, operand 1, single buffered']
    #allocation5 [shape = 's32[1]{0}', space=sflag, size = 0x4, scoped, tag = 'scoped memory for tpu_custom_call.1']
    #allocation6 [shape = 's32[1]{0}', space=sflag, size = 0x4, scoped, tag = 'scoped memory for tpu_custom_call.1']
    #allocation7 [shape = 'u8[32768]{0}', space=vmem, size = 0x8000, scoped, tag = 'input window, operand 3, single buffered']
    #allocation8 [shape = 's32[1]{0}', space=sflag, size = 0x4, scoped, tag = 'scoped memory for tpu_custom_call.1']
    #allocation9 [shape = 'u8[1024]{0}', space=vmem, size = 0x400, scoped, tag = 'input window, operand 5, single buffered']
    #allocation10 [shape = 'u8[16384]{0}', space=vmem, size = 0x4000, scoped, tag = 'output window, operand 0, single buffered']
    %13 = vsyncpa [#allocation5], 0
    %14 = vsyncpa [#allocation8], 0
    %15 = vsyncpa [#allocation6], 0
    // Predicated region
    $region2: #{tpu_custom_call.1} parent=1 // pred_check
      _
    $region3: #{tpu_custom_call.1} parent=1 // pred_check_branch
      %17 = sbr.rel (0) target = $region5
    $region4: #{tpu_custom_call.1} parent=1 // pred_region
      _
    $region5: #{tpu_custom_call.1} parent=1 // pred_fallthru
      _
    // Predicated region
    $region6: #{tpu_custom_call.1} parent=1 // pred_check
      _
    $region7: #{tpu_custom_call.1} parent=1 // pred_check_branch
      %19 = sbr.rel (0) target = $region9
    $region8: #{tpu_custom_call.1} parent=1 // pred_region
      %s21 = ssub.s32 256, 256
      %22 = vsyncadd [#allocation5], %s21
      %s23 = sshll.u32 [#allocation4], 4
      %s24 = int_to_ptr.vmem [resolvable:$true] %s23
      %29 = dma.hbm_to_vmem [thread:$0]  %s1, 256, %s24, [#allocation5], 128, 128, 8
    $region9: #{tpu_custom_call.1} parent=1 // pred_fallthru
      _
    // Predicated region
    $region10: #{tpu_custom_call.1} parent=1 // pred_check
      _
    $region11: #{tpu_custom_call.1} parent=1 // pred_check_branch
      %31 = sbr.rel (0) target = $region13
    $region12: #{tpu_custom_call.1} parent=1 // pred_region
      _
    $region13: #{tpu_custom_call.1} parent=1 // pred_fallthru
      _
    // Predicated region
    $region14: #{tpu_custom_call.1} parent=1 // pred_check
      _
    $region15: #{tpu_custom_call.1} parent=1 // pred_check_branch
      %33 = sbr.rel (0) target = $region17
    $region16: #{tpu_custom_call.1} parent=1 // pred_region
      %s35 = ssub.s32 1024, 1024
      %36 = vsyncadd [#allocation8], %s35
      %s37 = sshll.u32 [#allocation7], 4
      %s38 = int_to_ptr.vmem [resolvable:$true] %s37
      %43 = dma.hbm_to_vmem [thread:$0]  %s3, 1024, %s38, [#allocation8], 128, 128, 8
    $region17: #{tpu_custom_call.1} parent=1 // pred_fallthru
      _
    // Predicated region
    $region18: #{tpu_custom_call.1} parent=1 // pred_check
      _
    $region19: #{tpu_custom_call.1} parent=1 // pred_check_branch
      %45 = sbr.rel (0) target = $region21
    $region20: #{tpu_custom_call.1} parent=1 // pred_region
      _
    $region21: #{tpu_custom_call.1} parent=1 // pred_fallthru
      _
    // Predicated region
    $region22: #{tpu_custom_call.1} parent=1 // pred_check
      _
    $region23: #{tpu_custom_call.1} parent=1 // pred_check_branch
      %47 = sbr.rel (0) target = $region25
    $region24: #{tpu_custom_call.1} parent=1 // pred_region
      %s49 = ssub.s32 32, 32
      %50 = vsyncadd [#allocation8], %s49
      %s51 = sshll.u32 [#allocation9], 4
      %s52 = int_to_ptr.vmem [resolvable:$true] %s51
      %57 = dma.hbm_to_vmem [thread:$0]  %s5, 32, %s52, [#allocation8], 16, 16, 1
    $region25: #{tpu_custom_call.1} parent=1 // pred_fallthru
      _
    // Predicated region
    $region26: #{tpu_custom_call.1} parent=1 // pred_check
      _
    $region27: #{tpu_custom_call.1} parent=1 // pred_check_branch
      %59 = sbr.rel (0) target = $region29
    $region28: #{tpu_custom_call.1} parent=1 // pred_region
      _
    $region29: #{tpu_custom_call.1} parent=1 // pred_fallthru
      _
    // Predicated region
    $region30: #{tpu_custom_call.1} parent=1 // pred_check
      _
    $region31: #{tpu_custom_call.1} parent=1 // pred_check_branch
      %61 = sbr.rel (0) target = $region33
    $region32: #{tpu_custom_call.1} parent=1 // pred_region
      _
    $region33: #{tpu_custom_call.1} parent=1 // pred_fallthru
      _
    // Predicated region
    $region34: #{tpu_custom_call.1} parent=1 // pred_check
      _
    $region35: #{tpu_custom_call.1} parent=1 // pred_check_branch
      %63 = sbr.rel (0) target = $region37
    $region36: #{tpu_custom_call.1} parent=1 // pred_region
      %64 = dma.done [#allocation5], 256
    $region37: #{tpu_custom_call.1} parent=1 // pred_fallthru
      _
    // Predicated region
    $region38: #{tpu_custom_call.1} parent=1 // pred_check
      _
    $region39: #{tpu_custom_call.1} parent=1 // pred_check_branch
      %66 = sbr.rel (0) target = $region41
    $region40: #{tpu_custom_call.1} parent=1 // pred_region
      %67 = dma.done [#allocation8], 1024
    $region41: #{tpu_custom_call.1} parent=1 // pred_fallthru
      _
    // Predicated region
    $region42: #{tpu_custom_call.1} parent=1 // pred_check
      _
    $region43: #{tpu_custom_call.1} parent=1 // pred_check_branch
      %69 = sbr.rel (0) target = $region45
    $region44: #{tpu_custom_call.1} parent=1 // pred_region
      %70 = dma.done [#allocation8], 32
    $region45: #{tpu_custom_call.1} parent=1 // pred_fallthru
      _
    %v71 = vld [vmem:[%s0] sm:$0xff]
    %v72 = vlaneseq
    %v73 = vand.u32 %v72, 127
    %v74 = vlaneseq
    %v75 = vshrl.u32 %v74, 7
    %v76 = vsub.s32 0, %v75
    %v77 = vrot.slane %v71, %v76
    %79 = vbcast.lane.b32.xlu0 %v77, 256
    %v80 = vpop.permute.xlu0 %79
    %v81 = vlaneseq
    %v82 = vshrl.u32 %v81, 7
    %v83 = vsub.s32 1, %v82
    %v84 = vrot.slane %v71, %v83
    %86 = vbcast.lane.b32.xlu0 %v84, 256
    %v87 = vpop.permute.xlu0 %86
    %v88 = vlaneseq
    %v89 = vshrl.u32 %v88, 7
    %v90 = vsub.s32 2, %v89
    %v91 = vrot.slane %v71, %v90
    %93 = vbcast.lane.b32.xlu0 %v91, 256
    %v94 = vpop.permute.xlu0 %93
    %v95 = vlaneseq
    %v96 = vshrl.u32 %v95, 7
    %v97 = vsub.s32 3, %v96
    %v98 = vrot.slane %v71, %v97
    %100 = vbcast.lane.b32.xlu0 %v98, 256
    %v101 = vpop.permute.xlu0 %100
    %v102 = vlaneseq
    %v103 = vshrl.u32 %v102, 7
    %v104 = vsub.s32 4, %v103
    %v105 = vrot.slane %v71, %v104
    %107 = vbcast.lane.b32.xlu0 %v105, 256
    %v108 = vpop.permute.xlu0 %107
    %v109 = vlaneseq
    %v110 = vshrl.u32 %v109, 7
    %v111 = vsub.s32 5, %v110
    %v112 = vrot.slane %v71, %v111
    %114 = vbcast.lane.b32.xlu0 %v112, 256
    %v115 = vpop.permute.xlu0 %114
    %v116 = vlaneseq
    %v117 = vshrl.u32 %v116, 7
    %v118 = vsub.s32 6, %v117
    %v119 = vrot.slane %v71, %v118
    %121 = vbcast.lane.b32.xlu0 %v119, 256
    %v122 = vpop.permute.xlu0 %121
    %v123 = vlaneseq
    %v124 = vshrl.u32 %v123, 7
    %v125 = vsub.s32 7, %v124
    %v126 = vrot.slane %v71, %v125
    %128 = vbcast.lane.b32.xlu0 %v126, 256
    %v129 = vpop.permute.xlu0 %128
    %vm130 = vcmp.eq.s32.totalorder %v80, %v73
    %vm131 = vcmp.eq.s32.totalorder %v87, %v73
    %vm132 = vcmp.eq.s32.totalorder %v94, %v73
    %vm133 = vcmp.eq.s32.totalorder %v101, %v73
    %vm134 = vcmp.eq.s32.totalorder %v108, %v73
    %vm135 = vcmp.eq.s32.totalorder %v115, %v73
    %vm136 = vcmp.eq.s32.totalorder %v122, %v73
    %vm137 = vcmp.eq.s32.totalorder %v129, %v73
    %v138 = vsel %vm130, 1, 0
    %v139 = vsel %vm131, 1, 0
    %v140 = vsel %vm132, 1, 0
    %v141 = vsel %vm133, 1, 0
    %v142 = vsel %vm134, 1, 0
    %v143 = vsel %vm135, 1, 0
    %v144 = vsel %vm136, 1, 0
    %v145 = vsel %vm137, 1, 0
    %v146 = vcvt.s32.f32 %v138
    %v147 = vcvt.s32.f32 %v139
    %v148 = vcvt.s32.f32 %v140
    %v149 = vcvt.s32.f32 %v141
    %v150 = vcvt.s32.f32 %v142
    %v151 = vcvt.s32.f32 %v143
    %v152 = vcvt.s32.f32 %v144
    %v153 = vcvt.s32.f32 %v145
    %v154 = vld [vmem:[#allocation4] sm:$0xff]
    %v155 = vld [vmem:[#allocation4 + $0x8] sm:$0xff]
    %v164 = vcombine.low %v146, %v147
    %v165 = vcombine.low %v148, %v149
    %v166 = vcombine.low %v150, %v151
    %v167 = vcombine.low %v152, %v153
    %vm168 = vcmask 130048
    %v169 = vsel %vm168, %v164, 0
    %v171 = vsel %vm168, %v165, 0
    %v173 = vsel %vm168, %v166, 0
    %v175 = vsel %vm168, %v167, 0
    %177 = vmatprep.subr.mxu0 0.0
    %178 = vmatpush1.msra.mxu0 %v154
    %179 = vmatprep.subr.mxu0 0.0
    %180 = vmatpush1.msra.mxu0 %v155
    %181 = vmatprep.subr.mxu0 0.0
    %182 = vmatpush1.msra.mxu0 0.0
    %183 = vmatprep.subr.mxu0 0.0
    %184 = vmatpush1.msra.mxu0 0.0
    %185 = vmatprep.subr.mxu0 0.0
    %186 = vmatpush1.msra.mxu0 0.0
    %187 = vmatprep.subr.mxu0 0.0
    %188 = vmatpush1.msra.mxu0 0.0
    %189 = vmatprep.subr.mxu0 0.0
    %190 = vmatpush1.msra.mxu0 0.0
    %191 = vmatprep.subr.mxu0 0.0
    %192 = vmatpush1.msra.mxu0 0.0
    %193 = vmatprep.subr.mxu0 0.0
    %194 = vmatpush1.msra.mxu0 0.0
    %195 = vmatprep.subr.mxu0 0.0
    %196 = vmatpush1.msra.mxu0 0.0
    %197 = vmatprep.subr.mxu0 0.0
    %198 = vmatpush1.msra.mxu0 0.0
    %199 = vmatprep.subr.mxu0 0.0
    %200 = vmatpush1.msra.mxu0 0.0
    %201 = vmatprep.subr.mxu0 0.0
    %202 = vmatpush1.msra.mxu0 0.0
    %203 = vmatprep.subr.mxu0 0.0
    %204 = vmatpush1.msra.mxu0 0.0
    %205 = vmatprep.subr.mxu0 0.0
    %206 = vmatpush1.msra.mxu0 0.0
    %207 = vmatprep.subr.mxu0 0.0
    %208 = vmatpush1.msra.mxu0 0.0
    %209 = vmatprep.subr.mxu0 0.0
    %210 = vmatpush1.msra.mxu0 0.0
    %211 = vmatprep.subr.mxu0 0.0
    %212 = vmatpush1.msra.mxu0 0.0
    %213 = vmatprep.subr.mxu0 0.0
    %214 = vmatpush1.msra.mxu0 0.0
    %215 = vmatprep.subr.mxu0 0.0
    %216 = vmatpush1.msra.mxu0 0.0
    %217 = vmatprep.subr.mxu0 0.0
    %218 = vmatpush1.msra.mxu0 0.0
    %219 = vmatprep.subr.mxu0 0.0
    %220 = vmatpush1.msra.mxu0 0.0
    %221 = vmatprep.subr.mxu0 0.0
    %222 = vmatpush1.msra.mxu0 0.0
    %223 = vmatprep.subr.mxu0 0.0
    %224 = vmatpush1.msra.mxu0 0.0
    %225 = vmatprep.subr.mxu0 0.0
    %226 = vmatpush1.msra.mxu0 0.0
    %227 = vmatprep.subr.mxu0 0.0
    %228 = vmatpush1.msra.mxu0 0.0
    %229 = vmatprep.subr.mxu0 0.0
    %230 = vmatpush1.msra.mxu0 0.0
    %231 = vmatprep.subr.mxu0 0.0
    %232 = vmatpush1.msra.mxu0 0.0
    %233 = vmatprep.subr.mxu0 0.0
    %234 = vmatpush1.msra.mxu0 0.0
    %235 = vmatprep.subr.mxu0 0.0
    %236 = vmatpush1.msra.mxu0 0.0
    %237 = vmatprep.subr.mxu0 0.0
    %238 = vmatpush1.msra.mxu0 0.0
    %239 = vmatprep.subr.mxu0 0.0
    %240 = vmatpush1.msra.mxu0 0.0
    %241 = vmatprep.mubr.f32.mxu0 0.0
    %242 = vmatmul.mubr.f32.gmra.mrb[0].mxu0 %v169
    %v243 = vpop.f32.mrb[0].mxu0
    %v244 = vadd.f32 0.0, %v243
    %v245 = vpop.f32.mrb[0].mxu0
    %246 = vmatprep.mubr.f32.mxu0 0.0
    %247 = vmatmul.mubr.f32.gmra.mrb[0].mxu0 %v171
    %v248 = vpop.f32.mrb[0].mxu0
    %v249 = vadd.f32 0.0, %v248
    %v250 = vpop.f32.mrb[0].mxu0
    %251 = vmatprep.mubr.f32.mxu0 0.0
    %252 = vmatmul.mubr.f32.gmra.mrb[0].mxu0 %v173
    %v253 = vpop.f32.mrb[0].mxu0
    %v254 = vadd.f32 0.0, %v253
    %v255 = vpop.f32.mrb[0].mxu0
    %256 = vmatprep.mubr.f32.mxu0 0.0
    %257 = vmatmul.mubr.f32.gmra.mrb[0].mxu0 %v175
    %v258 = vpop.f32.mrb[0].mxu0
    %v259 = vadd.f32 0.0, %v258
    %v260 = vpop.f32.mrb[0].mxu0
    %261 = vdwg.mxu0
    %v262 = vld [vmem:[%s2] sm:$0xff]
    %v263 = vld [vmem:[%s2 + $0x8] sm:$0xff]
    %v264 = vld [vmem:[%s2 + $0x10] sm:$0xff]
    %v265 = vld [vmem:[%s2 + $0x18] sm:$0xff]
    %v266 = vld [vmem:[%s4] sm:$0x1]
    %v268 = vlaneseq
    %v269 = vshrl.u32 %v268, 7
    %v270 = vsub.s32 0, %v269
    %v271 = vrot.slane %v266, %v270
    %vm273 = vcmask 261120
    %v275 = vsel %vm273, %v244, 0
    %v278 = vsel %vm273, %v249, 0
    %v281 = vsel %vm273, %v254, 0
    %v284 = vsel %vm273, %v259, 0
    %286 = vmatprep.subr.mxu0 0.0
    %287 = vmatpush1.msra.mxu0 %v262
    %288 = vmatprep.subr.mxu0 0.0
    %289 = vmatpush1.msra.mxu0 %v263
    %290 = vmatprep.subr.mxu0 0.0
    %291 = vmatpush1.msra.mxu0 %v264
    %292 = vmatprep.subr.mxu0 0.0
    %293 = vmatpush1.msra.mxu0 %v265
    %294 = vmatprep.subr.mxu0 0.0
    %295 = vmatpush1.msra.mxu0 0.0
    %296 = vmatprep.subr.mxu0 0.0
    %297 = vmatpush1.msra.mxu0 0.0
    %298 = vmatprep.subr.mxu0 0.0
    %299 = vmatpush1.msra.mxu0 0.0
    %300 = vmatprep.subr.mxu0 0.0
    %301 = vmatpush1.msra.mxu0 0.0
    %302 = vmatprep.subr.mxu0 0.0
    %303 = vmatpush1.msra.mxu0 0.0
    %304 = vmatprep.subr.mxu0 0.0
    %305 = vmatpush1.msra.mxu0 0.0
    %306 = vmatprep.subr.mxu0 0.0
    %307 = vmatpush1.msra.mxu0 0.0
    %308 = vmatprep.subr.mxu0 0.0
    %309 = vmatpush1.msra.mxu0 0.0
    %310 = vmatprep.subr.mxu0 0.0
    %311 = vmatpush1.msra.mxu0 0.0
    %312 = vmatprep.subr.mxu0 0.0
    %313 = vmatpush1.msra.mxu0 0.0
    %314 = vmatprep.subr.mxu0 0.0
    %315 = vmatpush1.msra.mxu0 0.0
    %316 = vmatprep.subr.mxu0 0.0
    %317 = vmatpush1.msra.mxu0 0.0
    %318 = vmatprep.subr.mxu0 0.0
    %319 = vmatpush1.msra.mxu0 0.0
    %320 = vmatprep.subr.mxu0 0.0
    %321 = vmatpush1.msra.mxu0 0.0
    %322 = vmatprep.subr.mxu0 0.0
    %323 = vmatpush1.msra.mxu0 0.0
    %324 = vmatprep.subr.mxu0 0.0
    %325 = vmatpush1.msra.mxu0 0.0
    %326 = vmatprep.subr.mxu0 0.0
    %327 = vmatpush1.msra.mxu0 0.0
    %328 = vmatprep.subr.mxu0 0.0
    %329 = vmatpush1.msra.mxu0 0.0
    %330 = vmatprep.subr.mxu0 0.0
    %331 = vmatpush1.msra.mxu0 0.0
    %332 = vmatprep.subr.mxu0 0.0
    %333 = vmatpush1.msra.mxu0 0.0
    %334 = vmatprep.subr.mxu0 0.0
    %335 = vmatpush1.msra.mxu0 0.0
    %336 = vmatprep.subr.mxu0 0.0
    %337 = vmatpush1.msra.mxu0 0.0
    %338 = vmatprep.subr.mxu0 0.0
    %339 = vmatpush1.msra.mxu0 0.0
    %340 = vmatprep.subr.mxu0 0.0
    %341 = vmatpush1.msra.mxu0 0.0
    %342 = vmatprep.subr.mxu0 0.0
    %343 = vmatpush1.msra.mxu0 0.0
    %344 = vmatprep.subr.mxu0 0.0
    %345 = vmatpush1.msra.mxu0 0.0
    %346 = vmatprep.subr.mxu0 0.0
    %347 = vmatpush1.msra.mxu0 0.0
    %348 = vmatprep.subr.mxu0 0.0
    %349 = vmatpush1.msra.mxu0 0.0
    %350 = vmatprep.mubr.f32.mxu0 0.0
    %351 = vmatmul.mubr.f32.gmra.mrb[0].mxu0 %v275
    %v352 = vpop.f32.mrb[0].mxu0
    %v353 = vadd.f32 %v271, %v352
    %v354 = vpop.f32.mrb[0].mxu0
    %355 = vmatprep.mubr.f32.mxu0 0.0
    %356 = vmatmul.mubr.f32.gmra.mrb[0].mxu0 %v278
    %v357 = vpop.f32.mrb[0].mxu0
    %v358 = vadd.f32 %v271, %v357
    %v359 = vpop.f32.mrb[0].mxu0
    %360 = vmatprep.mubr.f32.mxu0 0.0
    %361 = vmatmul.mubr.f32.gmra.mrb[0].mxu0 %v281
    %v362 = vpop.f32.mrb[0].mxu0
    %v363 = vadd.f32 %v271, %v362
    %v364 = vpop.f32.mrb[0].mxu0
    %365 = vmatprep.mubr.f32.mxu0 0.0
    %366 = vmatmul.mubr.f32.gmra.mrb[0].mxu0 %v284
    %v367 = vpop.f32.mrb[0].mxu0
    %v368 = vadd.f32 %v271, %v367
    %v369 = vpop.f32.mrb[0].mxu0
    %370 = vdwg.mxu0
    %v375 = vcombine.high %v353, %v353
    %v376 = vcombine.high %v358, %v358
    %v377 = vcombine.high %v363, %v363
    %v378 = vcombine.high %v368, %v368
    %vm383 = vcmask 781312
    %384 = vst.msk [vmem:[#allocation2] sm:$0xf] %vm383, %v353
    %385 = vst.msk [vmem:[#allocation2 + $0x4] sm:$0xf] %vm383, %v375
    %386 = vst.msk [vmem:[#allocation2 + $0x8] sm:$0xf] %vm383, %v358
    %387 = vst.msk [vmem:[#allocation2 + $0xc] sm:$0xf] %vm383, %v376
    %388 = vst.msk [vmem:[#allocation2 + $0x10] sm:$0xf] %vm383, %v363
    %389 = vst.msk [vmem:[#allocation2 + $0x14] sm:$0xf] %vm383, %v377
    %390 = vst.msk [vmem:[#allocation2 + $0x18] sm:$0xf] %vm383, %v368
    %391 = vst.msk [vmem:[#allocation2 + $0x1c] sm:$0xf] %vm383, %v378
    %v392 = vld [vmem:[#allocation2] sm:$0xf]
    %v393 = vld [vmem:[#allocation7] sm:$0xff]
    %v394 = vld [vmem:[#allocation7 + $0x8] sm:$0xff]
    %v395 = vld [vmem:[#allocation7 + $0x10] sm:$0xff]
    %v396 = vld [vmem:[#allocation7 + $0x18] sm:$0xff]
    %v397 = vld [vmem:[#allocation9] sm:$0x1]
    %v399 = vlaneseq
    %v400 = vshrl.u32 %v399, 7
    %v401 = vsub.s32 0, %v400
    %v402 = vrot.slane %v397, %v401
    %v405 = vsel %vm273, 0.0, 0
    %407 = vmatprep.subr.mxu0 0.0
    %408 = vmatpush1.msra.mxu0 %v393
    %409 = vmatprep.subr.mxu0 0.0
    %410 = vmatpush1.msra.mxu0 %v394
    %411 = vmatprep.subr.mxu0 0.0
    %412 = vmatpush1.msra.mxu0 %v395
    %413 = vmatprep.subr.mxu0 0.0
    %414 = vmatpush1.msra.mxu0 %v396
    %415 = vmatprep.subr.mxu0 0.0
    %416 = vmatpush1.msra.mxu0 0.0
    %417 = vmatprep.subr.mxu0 0.0
    %418 = vmatpush1.msra.mxu0 0.0
    %419 = vmatprep.subr.mxu0 0.0
    %420 = vmatpush1.msra.mxu0 0.0
    %421 = vmatprep.subr.mxu0 0.0
    %422 = vmatpush1.msra.mxu0 0.0
    %423 = vmatprep.subr.mxu0 0.0
    %424 = vmatpush1.msra.mxu0 0.0
    %425 = vmatprep.subr.mxu0 0.0
    %426 = vmatpush1.msra.mxu0 0.0
    %427 = vmatprep.subr.mxu0 0.0
    %428 = vmatpush1.msra.mxu0 0.0
    %429 = vmatprep.subr.mxu0 0.0
    %430 = vmatpush1.msra.mxu0 0.0
    %431 = vmatprep.subr.mxu0 0.0
    %432 = vmatpush1.msra.mxu0 0.0
    %433 = vmatprep.subr.mxu0 0.0
    %434 = vmatpush1.msra.mxu0 0.0
    %435 = vmatprep.subr.mxu0 0.0
    %436 = vmatpush1.msra.mxu0 0.0
    %437 = vmatprep.subr.mxu0 0.0
    %438 = vmatpush1.msra.mxu0 0.0
    %439 = vmatprep.subr.mxu0 0.0
    %440 = vmatpush1.msra.mxu0 0.0
    %441 = vmatprep.subr.mxu0 0.0
    %442 = vmatpush1.msra.mxu0 0.0
    %443 = vmatprep.subr.mxu0 0.0
    %444 = vmatpush1.msra.mxu0 0.0
    %445 = vmatprep.subr.mxu0 0.0
    %446 = vmatpush1.msra.mxu0 0.0
    %447 = vmatprep.subr.mxu0 0.0
    %448 = vmatpush1.msra.mxu0 0.0
    %449 = vmatprep.subr.mxu0 0.0
    %450 = vmatpush1.msra.mxu0 0.0
    %451 = vmatprep.subr.mxu0 0.0
    %452 = vmatpush1.msra.mxu0 0.0
    %453 = vmatprep.subr.mxu0 0.0
    %454 = vmatpush1.msra.mxu0 0.0
    %455 = vmatprep.subr.mxu0 0.0
    %456 = vmatpush1.msra.mxu0 0.0
    %457 = vmatprep.subr.mxu0 0.0
    %458 = vmatpush1.msra.mxu0 0.0
    %459 = vmatprep.subr.mxu0 0.0
    %460 = vmatpush1.msra.mxu0 0.0
    %461 = vmatprep.subr.mxu0 0.0
    %462 = vmatpush1.msra.mxu0 0.0
    %463 = vmatprep.subr.mxu0 0.0
    %464 = vmatpush1.msra.mxu0 0.0
    %465 = vmatprep.subr.mxu0 0.0
    %466 = vmatpush1.msra.mxu0 0.0
    %467 = vmatprep.subr.mxu0 0.0
    %468 = vmatpush1.msra.mxu0 0.0
    %469 = vmatprep.subr.mxu0 0.0
    %470 = vmatpush1.msra.mxu0 0.0
    %471 = vmatprep.mubr.f32.mxu0 0.0
    %472 = vmatmul.mubr.f32.gmra.mrb[0].mxu0 %v405
    %v473 = vpop.f32.mrb[0].mxu0
    %v474 = vadd.f32 %v402, %v473
    %v475 = vpop.f32.mrb[0].mxu0
    %476 = vdwg.mxu0
    %v477 = vadd.f32 %v392, %v474
    %v478 = vxor.u32 %v477, 2147483648
    %v479 = vmul.f32 %v478, 1.442695
    %v480 = vpow.pop %v479
    %v481 = vadd.f32 %v480, 1.0
    %v482 = vrcp.pop %v481
    %v483 = vmul.f32 1.0, %v482
    %485 = vrot.lane.b32.xlu0 %v474, 64
    %v486 = vpop.permute.xlu0 %485
    %v488 = vmul.f32 %v483, %v486
    %490 = vrot.lane.b32.xlu0 %v488, 64
    %v491 = vpop.permute.xlu0 %490
    %v493 = vadd.f32 %v392, %v491
    %v494 = vtanh.pop %v493
    %v495 = vsub.f32 1.0, %v483
    %497 = vrot.lane.b32.xlu0 %v494, 96
    %v498 = vpop.permute.xlu0 %497
    %v500 = vmul.f32 %v495, %v498
    %v501 = vmul.f32 %v483, 0.0
    %v502 = vadd.f32 %v500, %v501
    %s503 = scalar_lea.vmem %s2, 32
    %v504 = vld [vmem:[%s503] sm:$0xff]
    %v505 = vld [vmem:[%s503 + $0x8] sm:$0xff]
    %v506 = vld [vmem:[%s503 + $0x10] sm:$0xff]
    %v507 = vld [vmem:[%s503 + $0x18] sm:$0xff]
    %s508 = scalar_lea.vmem %s4, 1
    %v509 = vld [vmem:[%s508] sm:$0x1]
    %v511 = vlaneseq
    %v512 = vshrl.u32 %v511, 7
    %v513 = vsub.s32 0, %v512
    %v514 = vrot.slane %v509, %v513
    %517 = vrot.lane.b32.xlu0 %v502, 96
    %v518 = vpop.permute.xlu0 %517
    %v519 = vsel %vm273, %v518, 0
    %521 = vmatprep.subr.mxu0 0.0
    %522 = vmatpush1.msra.mxu0 %v504
    %523 = vmatprep.subr.mxu0 0.0
    %524 = vmatpush1.msra.mxu0 %v505
    %525 = vmatprep.subr.mxu0 0.0
    %526 = vmatpush1.msra.mxu0 %v506
    %527 = vmatprep.subr.mxu0 0.0
    %528 = vmatpush1.msra.mxu0 %v507
    %529 = vmatprep.subr.mxu0 0.0
    %530 = vmatpush1.msra.mxu0 0.0
    %531 = vmatprep.subr.mxu0 0.0
    %532 = vmatpush1.msra.mxu0 0.0
    %533 = vmatprep.subr.mxu0 0.0
    %534 = vmatpush1.msra.mxu0 0.0
    %535 = vmatprep.subr.mxu0 0.0
    %536 = vmatpush1.msra.mxu0 0.0
    %537 = vmatprep.subr.mxu0 0.0
    %538 = vmatpush1.msra.mxu0 0.0
    %539 = vmatprep.subr.mxu0 0.0
    %540 = vmatpush1.msra.mxu0 0.0
    %541 = vmatprep.subr.mxu0 0.0
    %542 = vmatpush1.msra.mxu0 0.0
    %543 = vmatprep.subr.mxu0 0.0
    %544 = vmatpush1.msra.mxu0 0.0
    %545 = vmatprep.subr.mxu0 0.0
    %546 = vmatpush1.msra.mxu0 0.0
    %547 = vmatprep.subr.mxu0 0.0
    %548 = vmatpush1.msra.mxu0 0.0
    %549 = vmatprep.subr.mxu0 0.0
    %550 = vmatpush1.msra.mxu0 0.0
    %551 = vmatprep.subr.mxu0 0.0
    %552 = vmatpush1.msra.mxu0 0.0
    %553 = vmatprep.subr.mxu0 0.0
    %554 = vmatpush1.msra.mxu0 0.0
    %555 = vmatprep.subr.mxu0 0.0
    %556 = vmatpush1.msra.mxu0 0.0
    %557 = vmatprep.subr.mxu0 0.0
    %558 = vmatpush1.msra.mxu0 0.0
    %559 = vmatprep.subr.mxu0 0.0
    %560 = vmatpush1.msra.mxu0 0.0
    %561 = vmatprep.subr.mxu0 0.0
    %562 = vmatpush1.msra.mxu0 0.0
    %563 = vmatprep.subr.mxu0 0.0
    %564 = vmatpush1.msra.mxu0 0.0
    %565 = vmatprep.subr.mxu0 0.0
    %566 = vmatpush1.msra.mxu0 0.0
    %567 = vmatprep.subr.mxu0 0.0
    %568 = vmatpush1.msra.mxu0 0.0
    %569 = vmatprep.subr.mxu0 0.0
    %570 = vmatpush1.msra.mxu0 0.0
    %571 = vmatprep.subr.mxu0 0.0
    %572 = vmatpush1.msra.mxu0 0.0
    %573 = vmatprep.subr.mxu0 0.0
    %574 = vmatpush1.msra.mxu0 0.0
    %575 = vmatprep.subr.mxu0 0.0
    %576 = vmatpush1.msra.mxu0 0.0
    %577 = vmatprep.subr.mxu0 0.0
    %578 = vmatpush1.msra.mxu0 0.0
    %579 = vmatprep.subr.mxu0 0.0
    %580 = vmatpush1.msra.mxu0 0.0
    %581 = vmatprep.subr.mxu0 0.0
    %582 = vmatpush1.msra.mxu0 0.0
    %583 = vmatprep.subr.mxu0 0.0
    %584 = vmatpush1.msra.mxu0 0.0
    %585 = vmatprep.mubr.f32.mxu0 0.0
    %586 = vmatmul.mubr.f32.gmra.mrb[0].mxu0 %v519
    %v587 = vpop.f32.mrb[0].mxu0
    %v588 = vadd.f32 %v514, %v587
    %v589 = vpop.f32.mrb[0].mxu0
    %590 = vdwg.mxu0
    %s591 = scalar_lea.vmem [#allocation7], 32
    %v592 = vld [vmem:[%s591] sm:$0xff]
    %v593 = vld [vmem:[%s591 + $0x8] sm:$0xff]
    %v594 = vld [vmem:[%s591 + $0x10] sm:$0xff]
    %v595 = vld [vmem:[%s591 + $0x18] sm:$0xff]
    %s596 = scalar_lea.vmem [#allocation9], 1
    %v597 = vld [vmem:[%s596] sm:$0x1]
    %v599 = vlaneseq
    %v600 = vshrl.u32 %v599, 7
    %v601 = vsub.s32 0, %v600
    %v602 = vrot.slane %v597, %v601
    %604 = vmatprep.subr.mxu0 0.0
    %605 = vmatpush1.msra.mxu0 %v592
    %606 = vmatprep.subr.mxu0 0.0
    %607 = vmatpush1.msra.mxu0 %v593
    %608 = vmatprep.subr.mxu0 0.0
    %609 = vmatpush1.msra.mxu0 %v594
    %610 = vmatprep.subr.mxu0 0.0
    %611 = vmatpush1.msra.mxu0 %v595
    %612 = vmatprep.subr.mxu0 0.0
    %613 = vmatpush1.msra.mxu0 0.0
    %614 = vmatprep.subr.mxu0 0.0
    %615 = vmatpush1.msra.mxu0 0.0
    %616 = vmatprep.subr.mxu0 0.0
    %617 = vmatpush1.msra.mxu0 0.0
    %618 = vmatprep.subr.mxu0 0.0
    %619 = vmatpush1.msra.mxu0 0.0
    %620 = vmatprep.subr.mxu0 0.0
    %621 = vmatpush1.msra.mxu0 0.0
    %622 = vmatprep.subr.mxu0 0.0
    %623 = vmatpush1.msra.mxu0 0.0
    %624 = vmatprep.subr.mxu0 0.0
    %625 = vmatpush1.msra.mxu0 0.0
    %626 = vmatprep.subr.mxu0 0.0
    %627 = vmatpush1.msra.mxu0 0.0
    %628 = vmatprep.subr.mxu0 0.0
    %629 = vmatpush1.msra.mxu0 0.0
    %630 = vmatprep.subr.mxu0 0.0
    %631 = vmatpush1.msra.mxu0 0.0
    %632 = vmatprep.subr.mxu0 0.0
    %633 = vmatpush1.msra.mxu0 0.0
    %634 = vmatprep.subr.mxu0 0.0
    %635 = vmatpush1.msra.mxu0 0.0
    %636 = vmatprep.subr.mxu0 0.0
    %637 = vmatpush1.msra.mxu0 0.0
    %638 = vmatprep.subr.mxu0 0.0
    %639 = vmatpush1.msra.mxu0 0.0
    %640 = vmatprep.subr.mxu0 0.0
    %641 = vmatpush1.msra.mxu0 0.0
    %642 = vmatprep.subr.mxu0 0.0
    %643 = vmatpush1.msra.mxu0 0.0
    %644 = vmatprep.subr.mxu0 0.0
    %645 = vmatpush1.msra.mxu0 0.0
    %646 = vmatprep.subr.mxu0 0.0
    %647 = vmatpush1.msra.mxu0 0.0
    %648 = vmatprep.subr.mxu0 0.0
    %649 = vmatpush1.msra.mxu0 0.0
    %650 = vmatprep.subr.mxu0 0.0
    %651 = vmatpush1.msra.mxu0 0.0
    %652 = vmatprep.subr.mxu0 0.0
    %653 = vmatpush1.msra.mxu0 0.0
    %654 = vmatprep.subr.mxu0 0.0
    %655 = vmatpush1.msra.mxu0 0.0
    %656 = vmatprep.subr.mxu0 0.0
    %657 = vmatpush1.msra.mxu0 0.0
    %658 = vmatprep.subr.mxu0 0.0
    %659 = vmatpush1.msra.mxu0 0.0
    %660 = vmatprep.subr.mxu0 0.0
    %661 = vmatpush1.msra.mxu0 0.0
    %662 = vmatprep.subr.mxu0 0.0
    %663 = vmatpush1.msra.mxu0 0.0
    %664 = vmatprep.subr.mxu0 0.0
    %665 = vmatpush1.msra.mxu0 0.0
    %666 = vmatprep.subr.mxu0 0.0
    %667 = vmatpush1.msra.mxu0 0.0
    %668 = vmatprep.mubr.f32.mxu0 0.0
    %669 = vmatmul.mubr.f32.gmra.mrb[0].mxu0 %v405
    %v670 = vpop.f32.mrb[0].mxu0
    %v671 = vadd.f32 %v602, %v670
    %v672 = vpop.f32.mrb[0].mxu0
    %673 = vdwg.mxu0
    %v674 = vadd.f32 %v588, %v671
    %v675 = vxor.u32 %v674, 2147483648
    %v676 = vmul.f32 %v675, 1.442695
    %v677 = vpow.pop %v676
    %v678 = vadd.f32 %v677, 1.0
    %v679 = vrcp.pop %v678
    %v680 = vmul.f32 1.0, %v679
    %682 = vrot.lane.b32.xlu0 %v671, 64
    %v683 = vpop.permute.xlu0 %682
    %v685 = vmul.f32 %v680, %v683
    %687 = vrot.lane.b32.xlu0 %v685, 64
    %v688 = vpop.permute.xlu0 %687
    %v690 = vadd.f32 %v588, %v688
    %v691 = vtanh.pop %v690
    %v692 = vsub.f32 1.0, %v680
    %694 = vrot.lane.b32.xlu0 %v691, 96
    %v695 = vpop.permute.xlu0 %694
    %v697 = vmul.f32 %v692, %v695
    %v698 = vmul.f32 %v680, 0.0
    %v699 = vadd.f32 %v697, %v698
    %701 = vrot.lane.b32.xlu0 %v699, 96
    %v702 = vpop.permute.xlu0 %701
    %vm704 = vcmask 257024
    %705 = vst.msk [vmem:[#allocation3] sm:$0xf] %vm704, %v702
    %s706 = scalar_lea.vmem [#allocation2], 4
    %v707 = vld [vmem:[%s706] sm:$0xf]
    %v708 = vld [vmem:[#allocation7] sm:$0xff]
    %v709 = vld [vmem:[#allocation7 + $0x8] sm:$0xff]
    %v710 = vld [vmem:[#allocation7 + $0x10] sm:$0xff]
    %v711 = vld [vmem:[#allocation7 + $0x18] sm:$0xff]
    %v712 = vld [vmem:[#allocation9] sm:$0x1]
    %v714 = vlaneseq
    %v715 = vshrl.u32 %v714, 7
    %v716 = vsub.s32 0, %v715
    %v717 = vrot.slane %v712, %v716
    %719 = vmatprep.subr.mxu0 0.0
    %720 = vmatpush1.msra.mxu0 %v708
    %721 = vmatprep.subr.mxu0 0.0
    %722 = vmatpush1.msra.mxu0 %v709
    %723 = vmatprep.subr.mxu0 0.0
    %724 = vmatpush1.msra.mxu0 %v710
    %725 = vmatprep.subr.mxu0 0.0
    %726 = vmatpush1.msra.mxu0 %v711
    %727 = vmatprep.subr.mxu0 0.0
    %728 = vmatpush1.msra.mxu0 0.0
    %729 = vmatprep.subr.mxu0 0.0
    %730 = vmatpush1.msra.mxu0 0.0
    %731 = vmatprep.subr.mxu0 0.0
    %732 = vmatpush1.msra.mxu0 0.0
    %733 = vmatprep.subr.mxu0 0.0
    %734 = vmatpush1.msra.mxu0 0.0
    %735 = vmatprep.subr.mxu0 0.0
    %736 = vmatpush1.msra.mxu0 0.0
    %737 = vmatprep.subr.mxu0 0.0
    %738 = vmatpush1.msra.mxu0 0.0
    %739 = vmatprep.subr.mxu0 0.0
    %740 = vmatpush1.msra.mxu0 0.0
    %741 = vmatprep.subr.mxu0 0.0
    %742 = vmatpush1.msra.mxu0 0.0
    %743 = vmatprep.subr.mxu0 0.0
    %744 = vmatpush1.msra.mxu0 0.0
    %745 = vmatprep.subr.mxu0 0.0
    %746 = vmatpush1.msra.mxu0 0.0
    %747 = vmatprep.subr.mxu0 0.0
    %748 = vmatpush1.msra.mxu0 0.0
    %749 = vmatprep.subr.mxu0 0.0
    %750 = vmatpush1.msra.mxu0 0.0
    %751 = vmatprep.subr.mxu0 0.0
    %752 = vmatpush1.msra.mxu0 0.0
    %753 = vmatprep.subr.mxu0 0.0
    %754 = vmatpush1.msra.mxu0 0.0
    %755 = vmatprep.subr.mxu0 0.0
    %756 = vmatpush1.msra.mxu0 0.0
    %757 = vmatprep.subr.mxu0 0.0
    %758 = vmatpush1.msra.mxu0 0.0
    %759 = vmatprep.subr.mxu0 0.0
    %760 = vmatpush1.msra.mxu0 0.0
    %761 = vmatprep.subr.mxu0 0.0
    %762 = vmatpush1.msra.mxu0 0.0
    %763 = vmatprep.subr.mxu0 0.0
    %764 = vmatpush1.msra.mxu0 0.0
    %765 = vmatprep.subr.mxu0 0.0
    %766 = vmatpush1.msra.mxu0 0.0
    %767 = vmatprep.subr.mxu0 0.0
    %768 = vmatpush1.msra.mxu0 0.0
    %769 = vmatprep.subr.mxu0 0.0
    %770 = vmatpush1.msra.mxu0 0.0
    %771 = vmatprep.subr.mxu0 0.0
    %772 = vmatpush1.msra.mxu0 0.0
    %773 = vmatprep.subr.mxu0 0.0
    %774 = vmatpush1.msra.mxu0 0.0
    %775 = vmatprep.subr.mxu0 0.0
    %776 = vmatpush1.msra.mxu0 0.0
    %777 = vmatprep.subr.mxu0 0.0
    %778 = vmatpush1.msra.mxu0 0.0
    %779 = vmatprep.subr.mxu0 0.0
    %780 = vmatpush1.msra.mxu0 0.0
    %781 = vmatprep.subr.mxu0 0.0
    %782 = vmatpush1.msra.mxu0 0.0
    %783 = vmatprep.mubr.f32.mxu0 0.0
    %784 = vmatmul.mubr.f32.gmra.mrb[0].mxu0 %v519
    %v785 = vpop.f32.mrb[0].mxu0
    %v786 = vadd.f32 %v717, %v785
    %v787 = vpop.f32.mrb[0].mxu0
    %788 = vdwg.mxu0
    %v789 = vadd.f32 %v707, %v786
    %v790 = vxor.u32 %v789, 2147483648
    %v791 = vmul.f32 %v790, 1.442695
    %v792 = vpow.pop %v791
    %v793 = vadd.f32 %v792, 1.0
    %v794 = vrcp.pop %v793
    %v795 = vmul.f32 1.0, %v794
    %797 = vrot.lane.b32.xlu0 %v786, 64
    %v798 = vpop.permute.xlu0 %797
    %v800 = vmul.f32 %v795, %v798
    %802 = vrot.lane.b32.xlu0 %v800, 64
    %v803 = vpop.permute.xlu0 %802
    %v805 = vadd.f32 %v707, %v803
    %v806 = vtanh.pop %v805
    %v807 = vsub.f32 1.0, %v795
    %809 = vrot.lane.b32.xlu0 %v806, 96
    %v810 = vpop.permute.xlu0 %809
    %v812 = vmul.f32 %v807, %v810
    %v813 = vmul.f32 %v795, %v502
    %v814 = vadd.f32 %v812, %v813
    %v815 = vld [vmem:[%s503] sm:$0xff]
    %v816 = vld [vmem:[%s503 + $0x8] sm:$0xff]
    %v817 = vld [vmem:[%s503 + $0x10] sm:$0xff]
    %v818 = vld [vmem:[%s503 + $0x18] sm:$0xff]
    %v819 = vld [vmem:[%s508] sm:$0x1]
    %v821 = vlaneseq
    %v822 = vshrl.u32 %v821, 7
    %v823 = vsub.s32 0, %v822
    %v824 = vrot.slane %v819, %v823
    %827 = vrot.lane.b32.xlu0 %v814, 96
    %v828 = vpop.permute.xlu0 %827
    %v829 = vsel %vm273, %v828, 0
    %831 = vmatprep.subr.mxu0 0.0
    %832 = vmatpush1.msra.mxu0 %v815
    %833 = vmatprep.subr.mxu0 0.0
    %834 = vmatpush1.msra.mxu0 %v816
    %835 = vmatprep.subr.mxu0 0.0
    %836 = vmatpush1.msra.mxu0 %v817
    %837 = vmatprep.subr.mxu0 0.0
    %838 = vmatpush1.msra.mxu0 %v818
    %839 = vmatprep.subr.mxu0 0.0
    %840 = vmatpush1.msra.mxu0 0.0
    %841 = vmatprep.subr.mxu0 0.0
    %842 = vmatpush1.msra.mxu0 0.0
    %843 = vmatprep.subr.mxu0 0.0
    %844 = vmatpush1.msra.mxu0 0.0
    %845 = vmatprep.subr.mxu0 0.0
    %846 = vmatpush1.msra.mxu0 0.0
    %847 = vmatprep.subr.mxu0 0.0
    %848 = vmatpush1.msra.mxu0 0.0
    %849 = vmatprep.subr.mxu0 0.0
    %850 = vmatpush1.msra.mxu0 0.0
    %851 = vmatprep.subr.mxu0 0.0
    %852 = vmatpush1.msra.mxu0 0.0
    %853 = vmatprep.subr.mxu0 0.0
    %854 = vmatpush1.msra.mxu0 0.0
    %855 = vmatprep.subr.mxu0 0.0
    %856 = vmatpush1.msra.mxu0 0.0
    %857 = vmatprep.subr.mxu0 0.0
    %858 = vmatpush1.msra.mxu0 0.0
    %859 = vmatprep.subr.mxu0 0.0
    %860 = vmatpush1.msra.mxu0 0.0
    %861 = vmatprep.subr.mxu0 0.0
    %862 = vmatpush1.msra.mxu0 0.0
    %863 = vmatprep.subr.mxu0 0.0
    %864 = vmatpush1.msra.mxu0 0.0
    %865 = vmatprep.subr.mxu0 0.0
    %866 = vmatpush1.msra.mxu0 0.0
    %867 = vmatprep.subr.mxu0 0.0
    %868 = vmatpush1.msra.mxu0 0.0
    %869 = vmatprep.subr.mxu0 0.0
    %870 = vmatpush1.msra.mxu0 0.0
    %871 = vmatprep.subr.mxu0 0.0
    %872 = vmatpush1.msra.mxu0 0.0
    %873 = vmatprep.subr.mxu0 0.0
    %874 = vmatpush1.msra.mxu0 0.0
    %875 = vmatprep.subr.mxu0 0.0
    %876 = vmatpush1.msra.mxu0 0.0
    %877 = vmatprep.subr.mxu0 0.0
    %878 = vmatpush1.msra.mxu0 0.0
    %879 = vmatprep.subr.mxu0 0.0
    %880 = vmatpush1.msra.mxu0 0.0
    %881 = vmatprep.subr.mxu0 0.0
    %882 = vmatpush1.msra.mxu0 0.0
    %883 = vmatprep.subr.mxu0 0.0
    %884 = vmatpush1.msra.mxu0 0.0
    %885 = vmatprep.subr.mxu0 0.0
    %886 = vmatpush1.msra.mxu0 0.0
    %887 = vmatprep.subr.mxu0 0.0
    %888 = vmatpush1.msra.mxu0 0.0
    %889 = vmatprep.subr.mxu0 0.0
    %890 = vmatpush1.msra.mxu0 0.0
    %891 = vmatprep.subr.mxu0 0.0
    %892 = vmatpush1.msra.mxu0 0.0
    %893 = vmatprep.subr.mxu0 0.0
    %894 = vmatpush1.msra.mxu0 0.0
    %895 = vmatprep.mubr.f32.mxu0 0.0
    %896 = vmatmul.mubr.f32.gmra.mrb[0].mxu0 %v829
    %v897 = vpop.f32.mrb[0].mxu0
    %v898 = vadd.f32 %v824, %v897
    %v899 = vpop.f32.mrb[0].mxu0
    %900 = vdwg.mxu0
    %v901 = vld [vmem:[%s591] sm:$0xff]
    %v902 = vld [vmem:[%s591 + $0x8] sm:$0xff]
    %v903 = vld [vmem:[%s591 + $0x10] sm:$0xff]
    %v904 = vld [vmem:[%s591 + $0x18] sm:$0xff]
    %v905 = vld [vmem:[%s596] sm:$0x1]
    %v907 = vlaneseq
    %v908 = vshrl.u32 %v907, 7
    %v909 = vsub.s32 0, %v908
    %v910 = vrot.slane %v905, %v909
    %v912 = vsel %vm273, %v702, 0
    %914 = vmatprep.subr.mxu0 0.0
    %915 = vmatpush1.msra.mxu0 %v901
    %916 = vmatprep.subr.mxu0 0.0
    %917 = vmatpush1.msra.mxu0 %v902
    %918 = vmatprep.subr.mxu0 0.0
    %919 = vmatpush1.msra.mxu0 %v903
    %920 = vmatprep.subr.mxu0 0.0
    %921 = vmatpush1.msra.mxu0 %v904
    %922 = vmatprep.subr.mxu0 0.0
    %923 = vmatpush1.msra.mxu0 0.0
    %924 = vmatprep.subr.mxu0 0.0
    %925 = vmatpush1.msra.mxu0 0.0
    %926 = vmatprep.subr.mxu0 0.0
    %927 = vmatpush1.msra.mxu0 0.0
    %928 = vmatprep.subr.mxu0 0.0
    %929 = vmatpush1.msra.mxu0 0.0
    %930 = vmatprep.subr.mxu0 0.0
    %931 = vmatpush1.msra.mxu0 0.0
    %932 = vmatprep.subr.mxu0 0.0
    %933 = vmatpush1.msra.mxu0 0.0
    %934 = vmatprep.subr.mxu0 0.0
    %935 = vmatpush1.msra.mxu0 0.0
    %936 = vmatprep.subr.mxu0 0.0
    %937 = vmatpush1.msra.mxu0 0.0
    %938 = vmatprep.subr.mxu0 0.0
    %939 = vmatpush1.msra.mxu0 0.0
    %940 = vmatprep.subr.mxu0 0.0
    %941 = vmatpush1.msra.mxu0 0.0
    %942 = vmatprep.subr.mxu0 0.0
    %943 = vmatpush1.msra.mxu0 0.0
    %944 = vmatprep.subr.mxu0 0.0
    %945 = vmatpush1.msra.mxu0 0.0
    %946 = vmatprep.subr.mxu0 0.0
    %947 = vmatpush1.msra.mxu0 0.0
    %948 = vmatprep.subr.mxu0 0.0
    %949 = vmatpush1.msra.mxu0 0.0
    %950 = vmatprep.subr.mxu0 0.0
    %951 = vmatpush1.msra.mxu0 0.0
    %952 = vmatprep.subr.mxu0 0.0
    %953 = vmatpush1.msra.mxu0 0.0
    %954 = vmatprep.subr.mxu0 0.0
    %955 = vmatpush1.msra.mxu0 0.0
    %956 = vmatprep.subr.mxu0 0.0
    %957 = vmatpush1.msra.mxu0 0.0
    %958 = vmatprep.subr.mxu0 0.0
    %959 = vmatpush1.msra.mxu0 0.0
    %960 = vmatprep.subr.mxu0 0.0
    %961 = vmatpush1.msra.mxu0 0.0
    %962 = vmatprep.subr.mxu0 0.0
    %963 = vmatpush1.msra.mxu0 0.0
    %964 = vmatprep.subr.mxu0 0.0
    %965 = vmatpush1.msra.mxu0 0.0
    %966 = vmatprep.subr.mxu0 0.0
    %967 = vmatpush1.msra.mxu0 0.0
    %968 = vmatprep.subr.mxu0 0.0
    %969 = vmatpush1.msra.mxu0 0.0
    %970 = vmatprep.subr.mxu0 0.0
    %971 = vmatpush1.msra.mxu0 0.0
    %972 = vmatprep.subr.mxu0 0.0
    %973 = vmatpush1.msra.mxu0 0.0
    %974 = vmatprep.subr.mxu0 0.0
    %975 = vmatpush1.msra.mxu0 0.0
    %976 = vmatprep.subr.mxu0 0.0
    %977 = vmatpush1.msra.mxu0 0.0
    %978 = vmatprep.mubr.f32.mxu0 0.0
    %979 = vmatmul.mubr.f32.gmra.mrb[0].mxu0 %v912
    %v980 = vpop.f32.mrb[0].mxu0
    %v981 = vadd.f32 %v910, %v980
    %v982 = vpop.f32.mrb[0].mxu0
    %983 = vdwg.mxu0
    %v984 = vadd.f32 %v898, %v981
    %v985 = vxor.u32 %v984, 2147483648
    %v986 = vmul.f32 %v985, 1.442695
    %v987 = vpow.pop %v986
    %v988 = vadd.f32 %v987, 1.0
    %v989 = vrcp.pop %v988
    %v990 = vmul.f32 1.0, %v989
    %992 = vrot.lane.b32.xlu0 %v981, 64
    %v993 = vpop.permute.xlu0 %992
    %v995 = vmul.f32 %v990, %v993
    %997 = vrot.lane.b32.xlu0 %v995, 64
    %v998 = vpop.permute.xlu0 %997
    %v1000 = vadd.f32 %v898, %v998
    %v1001 = vtanh.pop %v1000
    %v1002 = vsub.f32 1.0, %v990
    %1004 = vrot.lane.b32.xlu0 %v1001, 96
    %v1005 = vpop.permute.xlu0 %1004
    %v1007 = vmul.f32 %v1002, %v1005
    %v1008 = vmul.f32 %v990, %v699
    %v1009 = vadd.f32 %v1007, %v1008
    %1011 = vrot.lane.b32.xlu0 %v1009, 96
    %v1012 = vpop.permute.xlu0 %1011
    %s1014 = scalar_lea.vmem [#allocation3], 4
    %1015 = vst.msk [vmem:[%s1014] sm:$0xf] %vm704, %v1012
    %s1016 = scalar_lea.vmem [#allocation2], 8
    %v1017 = vld [vmem:[%s1016] sm:$0xf]
    %v1018 = vld [vmem:[#allocation7] sm:$0xff]
    %v1019 = vld [vmem:[#allocation7 + $0x8] sm:$0xff]
    %v1020 = vld [vmem:[#allocation7 + $0x10] sm:$0xff]
    %v1021 = vld [vmem:[#allocation7 + $0x18] sm:$0xff]
    %v1022 = vld [vmem:[#allocation9] sm:$0x1]
    %v1024 = vlaneseq
    %v1025 = vshrl.u32 %v1024, 7
    %v1026 = vsub.s32 0, %v1025
    %v1027 = vrot.slane %v1022, %v1026
    %1029 = vmatprep.subr.mxu0 0.0
    %1030 = vmatpush1.msra.mxu0 %v1018
    %1031 = vmatprep.subr.mxu0 0.0
    %1032 = vmatpush1.msra.mxu0 %v1019
    %1033 = vmatprep.subr.mxu0 0.0
    %1034 = vmatpush1.msra.mxu0 %v1020
    %1035 = vmatprep.subr.mxu0 0.0
    %1036 = vmatpush1.msra.mxu0 %v1021
    %1037 = vmatprep.subr.mxu0 0.0
    %1038 = vmatpush1.msra.mxu0 0.0
    %1039 = vmatprep.subr.mxu0 0.0
    %1040 = vmatpush1.msra.mxu0 0.0
    %1041 = vmatprep.subr.mxu0 0.0
    %1042 = vmatpush1.msra.mxu0 0.0
    %1043 = vmatprep.subr.mxu0 0.0
    %1044 = vmatpush1.msra.mxu0 0.0
    %1045 = vmatprep.subr.mxu0 0.0
    %1046 = vmatpush1.msra.mxu0 0.0
    %1047 = vmatprep.subr.mxu0 0.0
    %1048 = vmatpush1.msra.mxu0 0.0
    %1049 = vmatprep.subr.mxu0 0.0
    %1050 = vmatpush1.msra.mxu0 0.0
    %1051 = vmatprep.subr.mxu0 0.0
    %1052 = vmatpush1.msra.mxu0 0.0
    %1053 = vmatprep.subr.mxu0 0.0
    %1054 = vmatpush1.msra.mxu0 0.0
    %1055 = vmatprep.subr.mxu0 0.0
    %1056 = vmatpush1.msra.mxu0 0.0
    %1057 = vmatprep.subr.mxu0 0.0
    %1058 = vmatpush1.msra.mxu0 0.0
    %1059 = vmatprep.subr.mxu0 0.0
    %1060 = vmatpush1.msra.mxu0 0.0
    %1061 = vmatprep.subr.mxu0 0.0
    %1062 = vmatpush1.msra.mxu0 0.0
    %1063 = vmatprep.subr.mxu0 0.0
    %1064 = vmatpush1.msra.mxu0 0.0
    %1065 = vmatprep.subr.mxu0 0.0
    %1066 = vmatpush1.msra.mxu0 0.0
    %1067 = vmatprep.subr.mxu0 0.0
    %1068 = vmatpush1.msra.mxu0 0.0
    %1069 = vmatprep.subr.mxu0 0.0
    %1070 = vmatpush1.msra.mxu0 0.0
    %1071 = vmatprep.subr.mxu0 0.0
    %1072 = vmatpush1.msra.mxu0 0.0
    %1073 = vmatprep.subr.mxu0 0.0
    %1074 = vmatpush1.msra.mxu0 0.0
    %1075 = vmatprep.subr.mxu0 0.0
    %1076 = vmatpush1.msra.mxu0 0.0
    %1077 = vmatprep.subr.mxu0 0.0
    %1078 = vmatpush1.msra.mxu0 0.0
    %1079 = vmatprep.subr.mxu0 0.0
    %1080 = vmatpush1.msra.mxu0 0.0
    %1081 = vmatprep.subr.mxu0 0.0
    %1082 = vmatpush1.msra.mxu0 0.0
    %1083 = vmatprep.subr.mxu0 0.0
    %1084 = vmatpush1.msra.mxu0 0.0
    %1085 = vmatprep.subr.mxu0 0.0
    %1086 = vmatpush1.msra.mxu0 0.0
    %1087 = vmatprep.subr.mxu0 0.0
    %1088 = vmatpush1.msra.mxu0 0.0
    %1089 = vmatprep.subr.mxu0 0.0
    %1090 = vmatpush1.msra.mxu0 0.0
    %1091 = vmatprep.subr.mxu0 0.0
    %1092 = vmatpush1.msra.mxu0 0.0
    %1093 = vmatprep.mubr.f32.mxu0 0.0
    %1094 = vmatmul.mubr.f32.gmra.mrb[0].mxu0 %v829
    %v1095 = vpop.f32.mrb[0].mxu0
    %v1096 = vadd.f32 %v1027, %v1095
    %v1097 = vpop.f32.mrb[0].mxu0
    %1098 = vdwg.mxu0
    %v1099 = vadd.f32 %v1017, %v1096
    %v1100 = vxor.u32 %v1099, 2147483648
    %v1101 = vmul.f32 %v1100, 1.442695
    %v1102 = vpow.pop %v1101
    %v1103 = vadd.f32 %v1102, 1.0
    %v1104 = vrcp.pop %v1103
    %v1105 = vmul.f32 1.0, %v1104
    %1107 = vrot.lane.b32.xlu0 %v1096, 64
    %v1108 = vpop.permute.xlu0 %1107
    %v1110 = vmul.f32 %v1105, %v1108
    %1112 = vrot.lane.b32.xlu0 %v1110, 64
    %v1113 = vpop.permute.xlu0 %1112
    %v1115 = vadd.f32 %v1017, %v1113
    %v1116 = vtanh.pop %v1115
    %v1117 = vsub.f32 1.0, %v1105
    %1119 = vrot.lane.b32.xlu0 %v1116, 96
    %v1120 = vpop.permute.xlu0 %1119
    %v1122 = vmul.f32 %v1117, %v1120
    %v1123 = vmul.f32 %v1105, %v814
    %v1124 = vadd.f32 %v1122, %v1123
    %v1125 = vld [vmem:[%s503] sm:$0xff]
    %v1126 = vld [vmem:[%s503 + $0x8] sm:$0xff]
    %v1127 = vld [vmem:[%s503 + $0x10] sm:$0xff]
    %v1128 = vld [vmem:[%s503 + $0x18] sm:$0xff]
    %v1129 = vld [vmem:[%s508] sm:$0x1]
    %v1131 = vlaneseq
    %v1132 = vshrl.u32 %v1131, 7
    %v1133 = vsub.s32 0, %v1132
    %v1134 = vrot.slane %v1129, %v1133
    %1137 = vrot.lane.b32.xlu0 %v1124, 96
    %v1138 = vpop.permute.xlu0 %1137
    %v1139 = vsel %vm273, %v1138, 0
    %1141 = vmatprep.subr.mxu0 0.0
    %1142 = vmatpush1.msra.mxu0 %v1125
    %1143 = vmatprep.subr.mxu0 0.0
    %1144 = vmatpush1.msra.mxu0 %v1126
    %1145 = vmatprep.subr.mxu0 0.0
    %1146 = vmatpush1.msra.mxu0 %v1127
    %1147 = vmatprep.subr.mxu0 0.0
    %1148 = vmatpush1.msra.mxu0 %v1128
    %1149 = vmatprep.subr.mxu0 0.0
    %1150 = vmatpush1.msra.mxu0 0.0
    %1151 = vmatprep.subr.mxu0 0.0
    %1152 = vmatpush1.msra.mxu0 0.0
    %1153 = vmatprep.subr.mxu0 0.0
    %1154 = vmatpush1.msra.mxu0 0.0
    %1155 = vmatprep.subr.mxu0 0.0
    %1156 = vmatpush1.msra.mxu0 0.0
    %1157 = vmatprep.subr.mxu0 0.0
    %1158 = vmatpush1.msra.mxu0 0.0
    %1159 = vmatprep.subr.mxu0 0.0
    %1160 = vmatpush1.msra.mxu0 0.0
    %1161 = vmatprep.subr.mxu0 0.0
    %1162 = vmatpush1.msra.mxu0 0.0
    %1163 = vmatprep.subr.mxu0 0.0
    %1164 = vmatpush1.msra.mxu0 0.0
    %1165 = vmatprep.subr.mxu0 0.0
    %1166 = vmatpush1.msra.mxu0 0.0
    %1167 = vmatprep.subr.mxu0 0.0
    %1168 = vmatpush1.msra.mxu0 0.0
    %1169 = vmatprep.subr.mxu0 0.0
    %1170 = vmatpush1.msra.mxu0 0.0
    %1171 = vmatprep.subr.mxu0 0.0
    %1172 = vmatpush1.msra.mxu0 0.0
    %1173 = vmatprep.subr.mxu0 0.0
    %1174 = vmatpush1.msra.mxu0 0.0
    %1175 = vmatprep.subr.mxu0 0.0
    %1176 = vmatpush1.msra.mxu0 0.0
    %1177 = vmatprep.subr.mxu0 0.0
    %1178 = vmatpush1.msra.mxu0 0.0
    %1179 = vmatprep.subr.mxu0 0.0
    %1180 = vmatpush1.msra.mxu0 0.0
    %1181 = vmatprep.subr.mxu0 0.0
    %1182 = vmatpush1.msra.mxu0 0.0
    %1183 = vmatprep.subr.mxu0 0.0
    %1184 = vmatpush1.msra.mxu0 0.0
    %1185 = vmatprep.subr.mxu0 0.0
    %1186 = vmatpush1.msra.mxu0 0.0
    %1187 = vmatprep.subr.mxu0 0.0
    %1188 = vmatpush1.msra.mxu0 0.0
    %1189 = vmatprep.subr.mxu0 0.0
    %1190 = vmatpush1.msra.mxu0 0.0
    %1191 = vmatprep.subr.mxu0 0.0
    %1192 = vmatpush1.msra.mxu0 0.0
    %1193 = vmatprep.subr.mxu0 0.0
    %1194 = vmatpush1.msra.mxu0 0.0
    %1195 = vmatprep.subr.mxu0 0.0
    %1196 = vmatpush1.msra.mxu0 0.0
    %1197 = vmatprep.subr.mxu0 0.0
    %1198 = vmatpush1.msra.mxu0 0.0
    %1199 = vmatprep.subr.mxu0 0.0
    %1200 = vmatpush1.msra.mxu0 0.0
    %1201 = vmatprep.subr.mxu0 0.0
    %1202 = vmatpush1.msra.mxu0 0.0
    %1203 = vmatprep.subr.mxu0 0.0
    %1204 = vmatpush1.msra.mxu0 0.0
    %1205 = vmatprep.mubr.f32.mxu0 0.0
    %1206 = vmatmul.mubr.f32.gmra.mrb[0].mxu0 %v1139
    %v1207 = vpop.f32.mrb[0].mxu0
    %v1208 = vadd.f32 %v1134, %v1207
    %v1209 = vpop.f32.mrb[0].mxu0
    %1210 = vdwg.mxu0
    %v1211 = vld [vmem:[%s591] sm:$0xff]
    %v1212 = vld [vmem:[%s591 + $0x8] sm:$0xff]
    %v1213 = vld [vmem:[%s591 + $0x10] sm:$0xff]
    %v1214 = vld [vmem:[%s591 + $0x18] sm:$0xff]
    %v1215 = vld [vmem:[%s596] sm:$0x1]
    %v1217 = vlaneseq
    %v1218 = vshrl.u32 %v1217, 7
    %v1219 = vsub.s32 0, %v1218
    %v1220 = vrot.slane %v1215, %v1219
    %v1222 = vsel %vm273, %v1012, 0
    %1224 = vmatprep.subr.mxu0 0.0
    %1225 = vmatpush1.msra.mxu0 %v1211
    %1226 = vmatprep.subr.mxu0 0.0
    %1227 = vmatpush1.msra.mxu0 %v1212
    %1228 = vmatprep.subr.mxu0 0.0
    %1229 = vmatpush1.msra.mxu0 %v1213
    %1230 = vmatprep.subr.mxu0 0.0
    %1231 = vmatpush1.msra.mxu0 %v1214
    %1232 = vmatprep.subr.mxu0 0.0
    %1233 = vmatpush1.msra.mxu0 0.0
    %1234 = vmatprep.subr.mxu0 0.0
    %1235 = vmatpush1.msra.mxu0 0.0
    %1236 = vmatprep.subr.mxu0 0.0
    %1237 = vmatpush1.msra.mxu0 0.0
    %1238 = vmatprep.subr.mxu0 0.0
    %1239 = vmatpush1.msra.mxu0 0.0
    %1240 = vmatprep.subr.mxu0 0.0
    %1241 = vmatpush1.msra.mxu0 0.0
    %1242 = vmatprep.subr.mxu0 0.0
    %1243 = vmatpush1.msra.mxu0 0.0
    %1244 = vmatprep.subr.mxu0 0.0
    %1245 = vmatpush1.msra.mxu0 0.0
    %1246 = vmatprep.subr.mxu0 0.0
    %1247 = vmatpush1.msra.mxu0 0.0
    %1248 = vmatprep.subr.mxu0 0.0
    %1249 = vmatpush1.msra.mxu0 0.0
    %1250 = vmatprep.subr.mxu0 0.0
    %1251 = vmatpush1.msra.mxu0 0.0
    %1252 = vmatprep.subr.mxu0 0.0
    %1253 = vmatpush1.msra.mxu0 0.0
    %1254 = vmatprep.subr.mxu0 0.0
    %1255 = vmatpush1.msra.mxu0 0.0
    %1256 = vmatprep.subr.mxu0 0.0
    %1257 = vmatpush1.msra.mxu0 0.0
    %1258 = vmatprep.subr.mxu0 0.0
    %1259 = vmatpush1.msra.mxu0 0.0
    %1260 = vmatprep.subr.mxu0 0.0
    %1261 = vmatpush1.msra.mxu0 0.0
    %1262 = vmatprep.subr.mxu0 0.0
    %1263 = vmatpush1.msra.mxu0 0.0
    %1264 = vmatprep.subr.mxu0 0.0
    %1265 = vmatpush1.msra.mxu0 0.0
    %1266 = vmatprep.subr.mxu0 0.0
    %1267 = vmatpush1.msra.mxu0 0.0
    %1268 = vmatprep.subr.mxu0 0.0
    %1269 = vmatpush1.msra.mxu0 0.0
    %1270 = vmatprep.subr.mxu0 0.0
    %1271 = vmatpush1.msra.mxu0 0.0
    %1272 = vmatprep.subr.mxu0 0.0
    %1273 = vmatpush1.msra.mxu0 0.0
    %1274 = vmatprep.subr.mxu0 0.0
    %1275 = vmatpush1.msra.mxu0 0.0
    %1276 = vmatprep.subr.mxu0 0.0
    %1277 = vmatpush1.msra.mxu0 0.0
    %1278 = vmatprep.subr.mxu0 0.0
    %1279 = vmatpush1.msra.mxu0 0.0
    %1280 = vmatprep.subr.mxu0 0.0
    %1281 = vmatpush1.msra.mxu0 0.0
    %1282 = vmatprep.subr.mxu0 0.0
    %1283 = vmatpush1.msra.mxu0 0.0
    %1284 = vmatprep.subr.mxu0 0.0
    %1285 = vmatpush1.msra.mxu0 0.0
    %1286 = vmatprep.subr.mxu0 0.0
    %1287 = vmatpush1.msra.mxu0 0.0
    %1288 = vmatprep.mubr.f32.mxu0 0.0
    %1289 = vmatmul.mubr.f32.gmra.mrb[0].mxu0 %v1222
    %v1290 = vpop.f32.mrb[0].mxu0
    %v1291 = vadd.f32 %v1220, %v1290
    %v1292 = vpop.f32.mrb[0].mxu0
    %1293 = vdwg.mxu0
    %v1294 = vadd.f32 %v1208, %v1291
    %v1295 = vxor.u32 %v1294, 2147483648
    %v1296 = vmul.f32 %v1295, 1.442695
    %v1297 = vpow.pop %v1296
    %v1298 = vadd.f32 %v1297, 1.0
    %v1299 = vrcp.pop %v1298
    %v1300 = vmul.f32 1.0, %v1299
    %1302 = vrot.lane.b32.xlu0 %v1291, 64
    %v1303 = vpop.permute.xlu0 %1302
    %v1305 = vmul.f32 %v1300, %v1303
    %1307 = vrot.lane.b32.xlu0 %v1305, 64
    %v1308 = vpop.permute.xlu0 %1307
    %v1310 = vadd.f32 %v1208, %v1308
    %v1311 = vtanh.pop %v1310
    %v1312 = vsub.f32 1.0, %v1300
    %1314 = vrot.lane.b32.xlu0 %v1311, 96
    %v1315 = vpop.permute.xlu0 %1314
    %v1317 = vmul.f32 %v1312, %v1315
    %v1318 = vmul.f32 %v1300, %v1009
    %v1319 = vadd.f32 %v1317, %v1318
    %1321 = vrot.lane.b32.xlu0 %v1319, 96
    %v1322 = vpop.permute.xlu0 %1321
    %s1324 = scalar_lea.vmem [#allocation3], 8
    %1325 = vst.msk [vmem:[%s1324] sm:$0xf] %vm704, %v1322
    %s1326 = scalar_lea.vmem [#allocation2], 12
    %v1327 = vld [vmem:[%s1326] sm:$0xf]
    %v1328 = vld [vmem:[#allocation7] sm:$0xff]
    %v1329 = vld [vmem:[#allocation7 + $0x8] sm:$0xff]
    %v1330 = vld [vmem:[#allocation7 + $0x10] sm:$0xff]
    %v1331 = vld [vmem:[#allocation7 + $0x18] sm:$0xff]
    %v1332 = vld [vmem:[#allocation9] sm:$0x1]
    %v1334 = vlaneseq
    %v1335 = vshrl.u32 %v1334, 7
    %v1336 = vsub.s32 0, %v1335
    %v1337 = vrot.slane %v1332, %v1336
    %1339 = vmatprep.subr.mxu0 0.0
    %1340 = vmatpush1.msra.mxu0 %v1328
    %1341 = vmatprep.subr.mxu0 0.0
    %1342 = vmatpush1.msra.mxu0 %v1329
    %1343 = vmatprep.subr.mxu0 0.0
    %1344 = vmatpush1.msra.mxu0 %v1330
    %1345 = vmatprep.subr.mxu0 0.0
    %1346 = vmatpush1.msra.mxu0 %v1331
    %1347 = vmatprep.subr.mxu0 0.0
    %1348 = vmatpush1.msra.mxu0 0.0
    %1349 = vmatprep.subr.mxu0 0.0
    %1350 = vmatpush1.msra.mxu0 0.0
    %1351 = vmatprep.subr.mxu0 0.0
    %1352 = vmatpush1.msra.mxu0 0.0
    %1353 = vmatprep.subr.mxu0 0.0
    %1354 = vmatpush1.msra.mxu0 0.0
    %1355 = vmatprep.subr.mxu0 0.0
    %1356 = vmatpush1.msra.mxu0 0.0
    %1357 = vmatprep.subr.mxu0 0.0
    %1358 = vmatpush1.msra.mxu0 0.0
    %1359 = vmatprep.subr.mxu0 0.0
    %1360 = vmatpush1.msra.mxu0 0.0
    %1361 = vmatprep.subr.mxu0 0.0
    %1362 = vmatpush1.msra.mxu0 0.0
    %1363 = vmatprep.subr.mxu0 0.0
    %1364 = vmatpush1.msra.mxu0 0.0
    %1365 = vmatprep.subr.mxu0 0.0
    %1366 = vmatpush1.msra.mxu0 0.0
    %1367 = vmatprep.subr.mxu0 0.0
    %1368 = vmatpush1.msra.mxu0 0.0
    %1369 = vmatprep.subr.mxu0 0.0
    %1370 = vmatpush1.msra.mxu0 0.0
    %1371 = vmatprep.subr.mxu0 0.0
    %1372 = vmatpush1.msra.mxu0 0.0
    %1373 = vmatprep.subr.mxu0 0.0
    %1374 = vmatpush1.msra.mxu0 0.0
    %1375 = vmatprep.subr.mxu0 0.0
    %1376 = vmatpush1.msra.mxu0 0.0
    %1377 = vmatprep.subr.mxu0 0.0
    %1378 = vmatpush1.msra.mxu0 0.0
    %1379 = vmatprep.subr.mxu0 0.0
    %1380 = vmatpush1.msra.mxu0 0.0
    %1381 = vmatprep.subr.mxu0 0.0
    %1382 = vmatpush1.msra.mxu0 0.0
    %1383 = vmatprep.subr.mxu0 0.0
    %1384 = vmatpush1.msra.mxu0 0.0
    %1385 = vmatprep.subr.mxu0 0.0
    %1386 = vmatpush1.msra.mxu0 0.0
    %1387 = vmatprep.subr.mxu0 0.0
    %1388 = vmatpush1.msra.mxu0 0.0
    %1389 = vmatprep.subr.mxu0 0.0
    %1390 = vmatpush1.msra.mxu0 0.0
    %1391 = vmatprep.subr.mxu0 0.0
    %1392 = vmatpush1.msra.mxu0 0.0
    %1393 = vmatprep.subr.mxu0 0.0
    %1394 = vmatpush1.msra.mxu0 0.0
    %1395 = vmatprep.subr.mxu0 0.0
    %1396 = vmatpush1.msra.mxu0 0.0
    %1397 = vmatprep.subr.mxu0 0.0
    %1398 = vmatpush1.msra.mxu0 0.0
    %1399 = vmatprep.subr.mxu0 0.0
    %1400 = vmatpush1.msra.mxu0 0.0
    %1401 = vmatprep.subr.mxu0 0.0
    %1402 = vmatpush1.msra.mxu0 0.0
    %1403 = vmatprep.mubr.f32.mxu0 0.0
    %1404 = vmatmul.mubr.f32.gmra.mrb[0].mxu0 %v1139
    %v1405 = vpop.f32.mrb[0].mxu0
    %v1406 = vadd.f32 %v1337, %v1405
    %v1407 = vpop.f32.mrb[0].mxu0
    %1408 = vdwg.mxu0
    %v1409 = vadd.f32 %v1327, %v1406
    %v1410 = vxor.u32 %v1409, 2147483648
    %v1411 = vmul.f32 %v1410, 1.442695
    %v1412 = vpow.pop %v1411
    %v1413 = vadd.f32 %v1412, 1.0
    %v1414 = vrcp.pop %v1413
    %v1415 = vmul.f32 1.0, %v1414
    %1417 = vrot.lane.b32.xlu0 %v1406, 64
    %v1418 = vpop.permute.xlu0 %1417
    %v1420 = vmul.f32 %v1415, %v1418
    %1422 = vrot.lane.b32.xlu0 %v1420, 64
    %v1423 = vpop.permute.xlu0 %1422
    %v1425 = vadd.f32 %v1327, %v1423
    %v1426 = vtanh.pop %v1425
    %v1427 = vsub.f32 1.0, %v1415
    %1429 = vrot.lane.b32.xlu0 %v1426, 96
    %v1430 = vpop.permute.xlu0 %1429
    %v1432 = vmul.f32 %v1427, %v1430
    %v1433 = vmul.f32 %v1415, %v1124
    %v1434 = vadd.f32 %v1432, %v1433
    %v1435 = vld [vmem:[%s503] sm:$0xff]
    %v1436 = vld [vmem:[%s503 + $0x8] sm:$0xff]
    %v1437 = vld [vmem:[%s503 + $0x10] sm:$0xff]
    %v1438 = vld [vmem:[%s503 + $0x18] sm:$0xff]
    %v1439 = vld [vmem:[%s508] sm:$0x1]
    %v1441 = vlaneseq
    %v1442 = vshrl.u32 %v1441, 7
    %v1443 = vsub.s32 0, %v1442
    %v1444 = vrot.slane %v1439, %v1443
    %1447 = vrot.lane.b32.xlu0 %v1434, 96
    %v1448 = vpop.permute.xlu0 %1447
    %v1449 = vsel %vm273, %v1448, 0
    %1451 = vmatprep.subr.mxu0 0.0
    %1452 = vmatpush1.msra.mxu0 %v1435
    %1453 = vmatprep.subr.mxu0 0.0
    %1454 = vmatpush1.msra.mxu0 %v1436
    %1455 = vmatprep.subr.mxu0 0.0
    %1456 = vmatpush1.msra.mxu0 %v1437
    %1457 = vmatprep.subr.mxu0 0.0
    %1458 = vmatpush1.msra.mxu0 %v1438
    %1459 = vmatprep.subr.mxu0 0.0
    %1460 = vmatpush1.msra.mxu0 0.0
    %1461 = vmatprep.subr.mxu0 0.0
    %1462 = vmatpush1.msra.mxu0 0.0
    %1463 = vmatprep.subr.mxu0 0.0
    %1464 = vmatpush1.msra.mxu0 0.0
    %1465 = vmatprep.subr.mxu0 0.0
    %1466 = vmatpush1.msra.mxu0 0.0
    %1467 = vmatprep.subr.mxu0 0.0
    %1468 = vmatpush1.msra.mxu0 0.0
    %1469 = vmatprep.subr.mxu0 0.0
    %1470 = vmatpush1.msra.mxu0 0.0
    %1471 = vmatprep.subr.mxu0 0.0
    %1472 = vmatpush1.msra.mxu0 0.0
    %1473 = vmatprep.subr.mxu0 0.0
    %1474 = vmatpush1.msra.mxu0 0.0
    %1475 = vmatprep.subr.mxu0 0.0
    %1476 = vmatpush1.msra.mxu0 0.0
    %1477 = vmatprep.subr.mxu0 0.0
    %1478 = vmatpush1.msra.mxu0 0.0
    %1479 = vmatprep.subr.mxu0 0.0
    %1480 = vmatpush1.msra.mxu0 0.0
    %1481 = vmatprep.subr.mxu0 0.0
    %1482 = vmatpush1.msra.mxu0 0.0
    %1483 = vmatprep.subr.mxu0 0.0
    %1484 = vmatpush1.msra.mxu0 0.0
    %1485 = vmatprep.subr.mxu0 0.0
    %1486 = vmatpush1.msra.mxu0 0.0
    %1487 = vmatprep.subr.mxu0 0.0
    %1488 = vmatpush1.msra.mxu0 0.0
    %1489 = vmatprep.subr.mxu0 0.0
    %1490 = vmatpush1.msra.mxu0 0.0
    %1491 = vmatprep.subr.mxu0 0.0
    %1492 = vmatpush1.msra.mxu0 0.0
    %1493 = vmatprep.subr.mxu0 0.0
    %1494 = vmatpush1.msra.mxu0 0.0
    %1495 = vmatprep.subr.mxu0 0.0
    %1496 = vmatpush1.msra.mxu0 0.0
    %1497 = vmatprep.subr.mxu0 0.0
    %1498 = vmatpush1.msra.mxu0 0.0
    %1499 = vmatprep.subr.mxu0 0.0
    %1500 = vmatpush1.msra.mxu0 0.0
    %1501 = vmatprep.subr.mxu0 0.0
    %1502 = vmatpush1.msra.mxu0 0.0
    %1503 = vmatprep.subr.mxu0 0.0
    %1504 = vmatpush1.msra.mxu0 0.0
    %1505 = vmatprep.subr.mxu0 0.0
    %1506 = vmatpush1.msra.mxu0 0.0
    %1507 = vmatprep.subr.mxu0 0.0
    %1508 = vmatpush1.msra.mxu0 0.0
    %1509 = vmatprep.subr.mxu0 0.0
    %1510 = vmatpush1.msra.mxu0 0.0
    %1511 = vmatprep.subr.mxu0 0.0
    %1512 = vmatpush1.msra.mxu0 0.0
    %1513 = vmatprep.subr.mxu0 0.0
    %1514 = vmatpush1.msra.mxu0 0.0
    %1515 = vmatprep.mubr.f32.mxu0 0.0
    %1516 = vmatmul.mubr.f32.gmra.mrb[0].mxu0 %v1449
    %v1517 = vpop.f32.mrb[0].mxu0
    %v1518 = vadd.f32 %v1444, %v1517
    %v1519 = vpop.f32.mrb[0].mxu0
    %1520 = vdwg.mxu0
    %v1521 = vld [vmem:[%s591] sm:$0xff]
    %v1522 = vld [vmem:[%s591 + $0x8] sm:$0xff]
    %v1523 = vld [vmem:[%s591 + $0x10] sm:$0xff]
    %v1524 = vld [vmem:[%s591 + $0x18] sm:$0xff]
    %v1525 = vld [vmem:[%s596] sm:$0x1]
    %v1527 = vlaneseq
    %v1528 = vshrl.u32 %v1527, 7
    %v1529 = vsub.s32 0, %v1528
    %v1530 = vrot.slane %v1525, %v1529
    %v1532 = vsel %vm273, %v1322, 0
    %1534 = vmatprep.subr.mxu0 0.0
    %1535 = vmatpush1.msra.mxu0 %v1521
    %1536 = vmatprep.subr.mxu0 0.0
    %1537 = vmatpush1.msra.mxu0 %v1522
    %1538 = vmatprep.subr.mxu0 0.0
    %1539 = vmatpush1.msra.mxu0 %v1523
    %1540 = vmatprep.subr.mxu0 0.0
    %1541 = vmatpush1.msra.mxu0 %v1524
    %1542 = vmatprep.subr.mxu0 0.0
    %1543 = vmatpush1.msra.mxu0 0.0
    %1544 = vmatprep.subr.mxu0 0.0
    %1545 = vmatpush1.msra.mxu0 0.0
    %1546 = vmatprep.subr.mxu0 0.0
    %1547 = vmatpush1.msra.mxu0 0.0
    %1548 = vmatprep.subr.mxu0 0.0
    %1549 = vmatpush1.msra.mxu0 0.0
    %1550 = vmatprep.subr.mxu0 0.0
    %1551 = vmatpush1.msra.mxu0 0.0
    %1552 = vmatprep.subr.mxu0 0.0
    %1553 = vmatpush1.msra.mxu0 0.0
    %1554 = vmatprep.subr.mxu0 0.0
    %1555 = vmatpush1.msra.mxu0 0.0
    %1556 = vmatprep.subr.mxu0 0.0
    %1557 = vmatpush1.msra.mxu0 0.0
    %1558 = vmatprep.subr.mxu0 0.0
    %1559 = vmatpush1.msra.mxu0 0.0
    %1560 = vmatprep.subr.mxu0 0.0
    %1561 = vmatpush1.msra.mxu0 0.0
    %1562 = vmatprep.subr.mxu0 0.0
    %1563 = vmatpush1.msra.mxu0 0.0
    %1564 = vmatprep.subr.mxu0 0.0
    %1565 = vmatpush1.msra.mxu0 0.0
    %1566 = vmatprep.subr.mxu0 0.0
    %1567 = vmatpush1.msra.mxu0 0.0
    %1568 = vmatprep.subr.mxu0 0.0
    %1569 = vmatpush1.msra.mxu0 0.0
    %1570 = vmatprep.subr.mxu0 0.0
    %1571 = vmatpush1.msra.mxu0 0.0
    %1572 = vmatprep.subr.mxu0 0.0
    %1573 = vmatpush1.msra.mxu0 0.0
    %1574 = vmatprep.subr.mxu0 0.0
    %1575 = vmatpush1.msra.mxu0 0.0
    %1576 = vmatprep.subr.mxu0 0.0
    %1577 = vmatpush1.msra.mxu0 0.0
    %1578 = vmatprep.subr.mxu0 0.0
    %1579 = vmatpush1.msra.mxu0 0.0
    %1580 = vmatprep.subr.mxu0 0.0
    %1581 = vmatpush1.msra.mxu0 0.0
    %1582 = vmatprep.subr.mxu0 0.0
    %1583 = vmatpush1.msra.mxu0 0.0
    %1584 = vmatprep.subr.mxu0 0.0
    %1585 = vmatpush1.msra.mxu0 0.0
    %1586 = vmatprep.subr.mxu0 0.0
    %1587 = vmatpush1.msra.mxu0 0.0
    %1588 = vmatprep.subr.mxu0 0.0
    %1589 = vmatpush1.msra.mxu0 0.0
    %1590 = vmatprep.subr.mxu0 0.0
    %1591 = vmatpush1.msra.mxu0 0.0
    %1592 = vmatprep.subr.mxu0 0.0
    %1593 = vmatpush1.msra.mxu0 0.0
    %1594 = vmatprep.subr.mxu0 0.0
    %1595 = vmatpush1.msra.mxu0 0.0
    %1596 = vmatprep.subr.mxu0 0.0
    %1597 = vmatpush1.msra.mxu0 0.0
    %1598 = vmatprep.mubr.f32.mxu0 0.0
    %1599 = vmatmul.mubr.f32.gmra.mrb[0].mxu0 %v1532
    %v1600 = vpop.f32.mrb[0].mxu0
    %v1601 = vadd.f32 %v1530, %v1600
    %v1602 = vpop.f32.mrb[0].mxu0
    %1603 = vdwg.mxu0
    %v1604 = vadd.f32 %v1518, %v1601
    %v1605 = vxor.u32 %v1604, 2147483648
    %v1606 = vmul.f32 %v1605, 1.442695
    %v1607 = vpow.pop %v1606
    %v1608 = vadd.f32 %v1607, 1.0
    %v1609 = vrcp.pop %v1608
    %v1610 = vmul.f32 1.0, %v1609
    %1612 = vrot.lane.b32.xlu0 %v1601, 64
    %v1613 = vpop.permute.xlu0 %1612
    %v1615 = vmul.f32 %v1610, %v1613
    %1617 = vrot.lane.b32.xlu0 %v1615, 64
    %v1618 = vpop.permute.xlu0 %1617
    %v1620 = vadd.f32 %v1518, %v1618
    %v1621 = vtanh.pop %v1620
    %v1622 = vsub.f32 1.0, %v1610
    %1624 = vrot.lane.b32.xlu0 %v1621, 96
    %v1625 = vpop.permute.xlu0 %1624
    %v1627 = vmul.f32 %v1622, %v1625
    %v1628 = vmul.f32 %v1610, %v1319
    %v1629 = vadd.f32 %v1627, %v1628
    %1631 = vrot.lane.b32.xlu0 %v1629, 96
    %v1632 = vpop.permute.xlu0 %1631
    %s1634 = scalar_lea.vmem [#allocation3], 12
    %1635 = vst.msk [vmem:[%s1634] sm:$0xf] %vm704, %v1632
    %s1636 = scalar_lea.vmem [#allocation2], 16
    %v1637 = vld [vmem:[%s1636] sm:$0xf]
    %v1638 = vld [vmem:[#allocation7] sm:$0xff]
    %v1639 = vld [vmem:[#allocation7 + $0x8] sm:$0xff]
    %v1640 = vld [vmem:[#allocation7 + $0x10] sm:$0xff]
    %v1641 = vld [vmem:[#allocation7 + $0x18] sm:$0xff]
    %v1642 = vld [vmem:[#allocation9] sm:$0x1]
    %v1644 = vlaneseq
    %v1645 = vshrl.u32 %v1644, 7
    %v1646 = vsub.s32 0, %v1645
    %v1647 = vrot.slane %v1642, %v1646
    %1649 = vmatprep.subr.mxu0 0.0
    %1650 = vmatpush1.msra.mxu0 %v1638
    %1651 = vmatprep.subr.mxu0 0.0
    %1652 = vmatpush1.msra.mxu0 %v1639
    %1653 = vmatprep.subr.mxu0 0.0
    %1654 = vmatpush1.msra.mxu0 %v1640
    %1655 = vmatprep.subr.mxu0 0.0
    %1656 = vmatpush1.msra.mxu0 %v1641
    %1657 = vmatprep.subr.mxu0 0.0
    %1658 = vmatpush1.msra.mxu0 0.0
    %1659 = vmatprep.subr.mxu0 0.0
    %1660 = vmatpush1.msra.mxu0 0.0
    %1661 = vmatprep.subr.mxu0 0.0
    %1662 = vmatpush1.msra.mxu0 0.0
    %1663 = vmatprep.subr.mxu0 0.0
    %1664 = vmatpush1.msra.mxu0 0.0
    %1665 = vmatprep.subr.mxu0 0.0
    %1666 = vmatpush1.msra.mxu0 0.0
    %1667 = vmatprep.subr.mxu0 0.0
    %1668 = vmatpush1.msra.mxu0 0.0
    %1669 = vmatprep.subr.mxu0 0.0
    %1670 = vmatpush1.msra.mxu0 0.0
    %1671 = vmatprep.subr.mxu0 0.0
    %1672 = vmatpush1.msra.mxu0 0.0
    %1673 = vmatprep.subr.mxu0 0.0
    %1674 = vmatpush1.msra.mxu0 0.0
    %1675 = vmatprep.subr.mxu0 0.0
    %1676 = vmatpush1.msra.mxu0 0.0
    %1677 = vmatprep.subr.mxu0 0.0
    %1678 = vmatpush1.msra.mxu0 0.0
    %1679 = vmatprep.subr.mxu0 0.0
    %1680 = vmatpush1.msra.mxu0 0.0
    %1681 = vmatprep.subr.mxu0 0.0
    %1682 = vmatpush1.msra.mxu0 0.0
    %1683 = vmatprep.subr.mxu0 0.0
    %1684 = vmatpush1.msra.mxu0 0.0
    %1685 = vmatprep.subr.mxu0 0.0
    %1686 = vmatpush1.msra.mxu0 0.0
    %1687 = vmatprep.subr.mxu0 0.0
    %1688 = vmatpush1.msra.mxu0 0.0
    %1689 = vmatprep.subr.mxu0 0.0
    %1690 = vmatpush1.msra.mxu0 0.0
    %1691 = vmatprep.subr.mxu0 0.0
    %1692 = vmatpush1.msra.mxu0 0.0
    %1693 = vmatprep.subr.mxu0 0.0
    %1694 = vmatpush1.msra.mxu0 0.0
    %1695 = vmatprep.subr.mxu0 0.0
    %1696 = vmatpush1.msra.mxu0 0.0
    %1697 = vmatprep.subr.mxu0 0.0
    %1698 = vmatpush1.msra.mxu0 0.0
    %1699 = vmatprep.subr.mxu0 0.0
    %1700 = vmatpush1.msra.mxu0 0.0
    %1701 = vmatprep.subr.mxu0 0.0
    %1702 = vmatpush1.msra.mxu0 0.0
    %1703 = vmatprep.subr.mxu0 0.0
    %1704 = vmatpush1.msra.mxu0 0.0
    %1705 = vmatprep.subr.mxu0 0.0
    %1706 = vmatpush1.msra.mxu0 0.0
    %1707 = vmatprep.subr.mxu0 0.0
    %1708 = vmatpush1.msra.mxu0 0.0
    %1709 = vmatprep.subr.mxu0 0.0
    %1710 = vmatpush1.msra.mxu0 0.0
    %1711 = vmatprep.subr.mxu0 0.0
    %1712 = vmatpush1.msra.mxu0 0.0
    %1713 = vmatprep.mubr.f32.mxu0 0.0
    %1714 = vmatmul.mubr.f32.gmra.mrb[0].mxu0 %v1449
    %v1715 = vpop.f32.mrb[0].mxu0
    %v1716 = vadd.f32 %v1647, %v1715
    %v1717 = vpop.f32.mrb[0].mxu0
    %1718 = vdwg.mxu0
    %v1719 = vadd.f32 %v1637, %v1716
    %v1720 = vxor.u32 %v1719, 2147483648
    %v1721 = vmul.f32 %v1720, 1.442695
    %v1722 = vpow.pop %v1721
    %v1723 = vadd.f32 %v1722, 1.0
    %v1724 = vrcp.pop %v1723
    %v1725 = vmul.f32 1.0, %v1724
    %1727 = vrot.lane.b32.xlu0 %v1716, 64
    %v1728 = vpop.permute.xlu0 %1727
    %v1730 = vmul.f32 %v1725, %v1728
    %1732 = vrot.lane.b32.xlu0 %v1730, 64
    %v1733 = vpop.permute.xlu0 %1732
    %v1735 = vadd.f32 %v1637, %v1733
    %v1736 = vtanh.pop %v1735
    %v1737 = vsub.f32 1.0, %v1725
    %1739 = vrot.lane.b32.xlu0 %v1736, 96
    %v1740 = vpop.permute.xlu0 %1739
    %v1742 = vmul.f32 %v1737, %v1740
    %v1743 = vmul.f32 %v1725, %v1434
    %v1744 = vadd.f32 %v1742, %v1743
    %v1745 = vld [vmem:[%s503] sm:$0xff]
    %v1746 = vld [vmem:[%s503 + $0x8] sm:$0xff]
    %v1747 = vld [vmem:[%s503 + $0x10] sm:$0xff]
    %v1748 = vld [vmem:[%s503 + $0x18] sm:$0xff]
    %v1749 = vld [vmem:[%s508] sm:$0x1]
    %v1751 = vlaneseq
    %v1752 = vshrl.u32 %v1751, 7
    %v1753 = vsub.s32 0, %v1752
    %v1754 = vrot.slane %v1749, %v1753
    %1757 = vrot.lane.b32.xlu0 %v1744, 96
    %v1758 = vpop.permute.xlu0 %1757
    %v1759 = vsel %vm273, %v1758, 0
    %1761 = vmatprep.subr.mxu0 0.0
    %1762 = vmatpush1.msra.mxu0 %v1745
    %1763 = vmatprep.subr.mxu0 0.0
    %1764 = vmatpush1.msra.mxu0 %v1746
    %1765 = vmatprep.subr.mxu0 0.0
    %1766 = vmatpush1.msra.mxu0 %v1747
    %1767 = vmatprep.subr.mxu0 0.0
    %1768 = vmatpush1.msra.mxu0 %v1748
    %1769 = vmatprep.subr.mxu0 0.0
    %1770 = vmatpush1.msra.mxu0 0.0
    %1771 = vmatprep.subr.mxu0 0.0
    %1772 = vmatpush1.msra.mxu0 0.0
    %1773 = vmatprep.subr.mxu0 0.0
    %1774 = vmatpush1.msra.mxu0 0.0
    %1775 = vmatprep.subr.mxu0 0.0
    %1776 = vmatpush1.msra.mxu0 0.0
    %1777 = vmatprep.subr.mxu0 0.0
    %1778 = vmatpush1.msra.mxu0 0.0
    %1779 = vmatprep.subr.mxu0 0.0
    %1780 = vmatpush1.msra.mxu0 0.0
    %1781 = vmatprep.subr.mxu0 0.0
    %1782 = vmatpush1.msra.mxu0 0.0
    %1783 = vmatprep.subr.mxu0 0.0
    %1784 = vmatpush1.msra.mxu0 0.0
    %1785 = vmatprep.subr.mxu0 0.0
    %1786 = vmatpush1.msra.mxu0 0.0
    %1787 = vmatprep.subr.mxu0 0.0
    %1788 = vmatpush1.msra.mxu0 0.0
    %1789 = vmatprep.subr.mxu0 0.0
    %1790 = vmatpush1.msra.mxu0 0.0
    %1791 = vmatprep.subr.mxu0 0.0
    %1792 = vmatpush1.msra.mxu0 0.0
    %1793 = vmatprep.subr.mxu0 0.0
    %1794 = vmatpush1.msra.mxu0 0.0
    %1795 = vmatprep.subr.mxu0 0.0
    %1796 = vmatpush1.msra.mxu0 0.0
    %1797 = vmatprep.subr.mxu0 0.0
    %1798 = vmatpush1.msra.mxu0 0.0
    %1799 = vmatprep.subr.mxu0 0.0
    %1800 = vmatpush1.msra.mxu0 0.0
    %1801 = vmatprep.subr.mxu0 0.0
    %1802 = vmatpush1.msra.mxu0 0.0
    %1803 = vmatprep.subr.mxu0 0.0
    %1804 = vmatpush1.msra.mxu0 0.0
    %1805 = vmatprep.subr.mxu0 0.0
    %1806 = vmatpush1.msra.mxu0 0.0
    %1807 = vmatprep.subr.mxu0 0.0
    %1808 = vmatpush1.msra.mxu0 0.0
    %1809 = vmatprep.subr.mxu0 0.0
    %1810 = vmatpush1.msra.mxu0 0.0
    %1811 = vmatprep.subr.mxu0 0.0
    %1812 = vmatpush1.msra.mxu0 0.0
    %1813 = vmatprep.subr.mxu0 0.0
    %1814 = vmatpush1.msra.mxu0 0.0
    %1815 = vmatprep.subr.mxu0 0.0
    %1816 = vmatpush1.msra.mxu0 0.0
    %1817 = vmatprep.subr.mxu0 0.0
    %1818 = vmatpush1.msra.mxu0 0.0
    %1819 = vmatprep.subr.mxu0 0.0
    %1820 = vmatpush1.msra.mxu0 0.0
    %1821 = vmatprep.subr.mxu0 0.0
    %1822 = vmatpush1.msra.mxu0 0.0
    %1823 = vmatprep.subr.mxu0 0.0
    %1824 = vmatpush1.msra.mxu0 0.0
    %1825 = vmatprep.mubr.f32.mxu0 0.0
    %1826 = vmatmul.mubr.f32.gmra.mrb[0].mxu0 %v1759
    %v1827 = vpop.f32.mrb[0].mxu0
    %v1828 = vadd.f32 %v1754, %v1827
    %v1829 = vpop.f32.mrb[0].mxu0
    %1830 = vdwg.mxu0
    %v1831 = vld [vmem:[%s591] sm:$0xff]
    %v1832 = vld [vmem:[%s591 + $0x8] sm:$0xff]
    %v1833 = vld [vmem:[%s591 + $0x10] sm:$0xff]
    %v1834 = vld [vmem:[%s591 + $0x18] sm:$0xff]
    %v1835 = vld [vmem:[%s596] sm:$0x1]
    %v1837 = vlaneseq
    %v1838 = vshrl.u32 %v1837, 7
    %v1839 = vsub.s32 0, %v1838
    %v1840 = vrot.slane %v1835, %v1839
    %v1842 = vsel %vm273, %v1632, 0
    %1844 = vmatprep.subr.mxu0 0.0
    %1845 = vmatpush1.msra.mxu0 %v1831
    %1846 = vmatprep.subr.mxu0 0.0
    %1847 = vmatpush1.msra.mxu0 %v1832
    %1848 = vmatprep.subr.mxu0 0.0
    %1849 = vmatpush1.msra.mxu0 %v1833
    %1850 = vmatprep.subr.mxu0 0.0
    %1851 = vmatpush1.msra.mxu0 %v1834
    %1852 = vmatprep.subr.mxu0 0.0
    %1853 = vmatpush1.msra.mxu0 0.0
    %1854 = vmatprep.subr.mxu0 0.0
    %1855 = vmatpush1.msra.mxu0 0.0
    %1856 = vmatprep.subr.mxu0 0.0
    %1857 = vmatpush1.msra.mxu0 0.0
    %1858 = vmatprep.subr.mxu0 0.0
    %1859 = vmatpush1.msra.mxu0 0.0
    %1860 = vmatprep.subr.mxu0 0.0
    %1861 = vmatpush1.msra.mxu0 0.0
    %1862 = vmatprep.subr.mxu0 0.0
    %1863 = vmatpush1.msra.mxu0 0.0
    %1864 = vmatprep.subr.mxu0 0.0
    %1865 = vmatpush1.msra.mxu0 0.0
    %1866 = vmatprep.subr.mxu0 0.0
    %1867 = vmatpush1.msra.mxu0 0.0
    %1868 = vmatprep.subr.mxu0 0.0
    %1869 = vmatpush1.msra.mxu0 0.0
    %1870 = vmatprep.subr.mxu0 0.0
    %1871 = vmatpush1.msra.mxu0 0.0
    %1872 = vmatprep.subr.mxu0 0.0
    %1873 = vmatpush1.msra.mxu0 0.0
    %1874 = vmatprep.subr.mxu0 0.0
    %1875 = vmatpush1.msra.mxu0 0.0
    %1876 = vmatprep.subr.mxu0 0.0
    %1877 = vmatpush1.msra.mxu0 0.0
    %1878 = vmatprep.subr.mxu0 0.0
    %1879 = vmatpush1.msra.mxu0 0.0
    %1880 = vmatprep.subr.mxu0 0.0
    %1881 = vmatpush1.msra.mxu0 0.0
    %1882 = vmatprep.subr.mxu0 0.0
    %1883 = vmatpush1.msra.mxu0 0.0
    %1884 = vmatprep.subr.mxu0 0.0
    %1885 = vmatpush1.msra.mxu0 0.0
    %1886 = vmatprep.subr.mxu0 0.0
    %1887 = vmatpush1.msra.mxu0 0.0
    %1888 = vmatprep.subr.mxu0 0.0
    %1889 = vmatpush1.msra.mxu0 0.0
    %1890 = vmatprep.subr.mxu0 0.0
    %1891 = vmatpush1.msra.mxu0 0.0
    %1892 = vmatprep.subr.mxu0 0.0
    %1893 = vmatpush1.msra.mxu0 0.0
    %1894 = vmatprep.subr.mxu0 0.0
    %1895 = vmatpush1.msra.mxu0 0.0
    %1896 = vmatprep.subr.mxu0 0.0
    %1897 = vmatpush1.msra.mxu0 0.0
    %1898 = vmatprep.subr.mxu0 0.0
    %1899 = vmatpush1.msra.mxu0 0.0
    %1900 = vmatprep.subr.mxu0 0.0
    %1901 = vmatpush1.msra.mxu0 0.0
    %1902 = vmatprep.subr.mxu0 0.0
    %1903 = vmatpush1.msra.mxu0 0.0
    %1904 = vmatprep.subr.mxu0 0.0
    %1905 = vmatpush1.msra.mxu0 0.0
    %1906 = vmatprep.subr.mxu0 0.0
    %1907 = vmatpush1.msra.mxu0 0.0
    %1908 = vmatprep.mubr.f32.mxu0 0.0
    %1909 = vmatmul.mubr.f32.gmra.mrb[0].mxu0 %v1842
    %v1910 = vpop.f32.mrb[0].mxu0
    %v1911 = vadd.f32 %v1840, %v1910
    %v1912 = vpop.f32.mrb[0].mxu0
    %1913 = vdwg.mxu0
    %v1914 = vadd.f32 %v1828, %v1911
    %v1915 = vxor.u32 %v1914, 2147483648
    %v1916 = vmul.f32 %v1915, 1.442695
    %v1917 = vpow.pop %v1916
    %v1918 = vadd.f32 %v1917, 1.0
    %v1919 = vrcp.pop %v1918
    %v1920 = vmul.f32 1.0, %v1919
    %1922 = vrot.lane.b32.xlu0 %v1911, 64
    %v1923 = vpop.permute.xlu0 %1922
    %v1925 = vmul.f32 %v1920, %v1923
    %1927 = vrot.lane.b32.xlu0 %v1925, 64
    %v1928 = vpop.permute.xlu0 %1927
    %v1930 = vadd.f32 %v1828, %v1928
    %v1931 = vtanh.pop %v1930
    %v1932 = vsub.f32 1.0, %v1920
    %1934 = vrot.lane.b32.xlu0 %v1931, 96
    %v1935 = vpop.permute.xlu0 %1934
    %v1937 = vmul.f32 %v1932, %v1935
    %v1938 = vmul.f32 %v1920, %v1629
    %v1939 = vadd.f32 %v1937, %v1938
    %1941 = vrot.lane.b32.xlu0 %v1939, 96
    %v1942 = vpop.permute.xlu0 %1941
    %s1944 = scalar_lea.vmem [#allocation3], 16
    %1945 = vst.msk [vmem:[%s1944] sm:$0xf] %vm704, %v1942
    %s1946 = scalar_lea.vmem [#allocation2], 20
    %v1947 = vld [vmem:[%s1946] sm:$0xf]
    %v1948 = vld [vmem:[#allocation7] sm:$0xff]
    %v1949 = vld [vmem:[#allocation7 + $0x8] sm:$0xff]
    %v1950 = vld [vmem:[#allocation7 + $0x10] sm:$0xff]
    %v1951 = vld [vmem:[#allocation7 + $0x18] sm:$0xff]
    %v1952 = vld [vmem:[#allocation9] sm:$0x1]
    %v1954 = vlaneseq
    %v1955 = vshrl.u32 %v1954, 7
    %v1956 = vsub.s32 0, %v1955
    %v1957 = vrot.slane %v1952, %v1956
    %1959 = vmatprep.subr.mxu0 0.0
    %1960 = vmatpush1.msra.mxu0 %v1948
    %1961 = vmatprep.subr.mxu0 0.0
    %1962 = vmatpush1.msra.mxu0 %v1949
    %1963 = vmatprep.subr.mxu0 0.0
    %1964 = vmatpush1.msra.mxu0 %v1950
    %1965 = vmatprep.subr.mxu0 0.0
    %1966 = vmatpush1.msra.mxu0 %v1951
    %1967 = vmatprep.subr.mxu0 0.0
    %1968 = vmatpush1.msra.mxu0 0.0
    %1969 = vmatprep.subr.mxu0 0.0
    %1970 = vmatpush1.msra.mxu0 0.0
    %1971 = vmatprep.subr.mxu0 0.0
    %1972 = vmatpush1.msra.mxu0 0.0
    %1973 = vmatprep.subr.mxu0 0.0
    %1974 = vmatpush1.msra.mxu0 0.0
    %1975 = vmatprep.subr.mxu0 0.0
    %1976 = vmatpush1.msra.mxu0 0.0
    %1977 = vmatprep.subr.mxu0 0.0
    %1978 = vmatpush1.msra.mxu0 0.0
    %1979 = vmatprep.subr.mxu0 0.0
    %1980 = vmatpush1.msra.mxu0 0.0
    %1981 = vmatprep.subr.mxu0 0.0
    %1982 = vmatpush1.msra.mxu0 0.0
    %1983 = vmatprep.subr.mxu0 0.0
    %1984 = vmatpush1.msra.mxu0 0.0
    %1985 = vmatprep.subr.mxu0 0.0
    %1986 = vmatpush1.msra.mxu0 0.0
    %1987 = vmatprep.subr.mxu0 0.0
    %1988 = vmatpush1.msra.mxu0 0.0
    %1989 = vmatprep.subr.mxu0 0.0
    %1990 = vmatpush1.msra.mxu0 0.0
    %1991 = vmatprep.subr.mxu0 0.0
    %1992 = vmatpush1.msra.mxu0 0.0
    %1993 = vmatprep.subr.mxu0 0.0
    %1994 = vmatpush1.msra.mxu0 0.0
    %1995 = vmatprep.subr.mxu0 0.0
    %1996 = vmatpush1.msra.mxu0 0.0
    %1997 = vmatprep.subr.mxu0 0.0
    %1998 = vmatpush1.msra.mxu0 0.0
    %1999 = vmatprep.subr.mxu0 0.0
    %2000 = vmatpush1.msra.mxu0 0.0
    %2001 = vmatprep.subr.mxu0 0.0
    %2002 = vmatpush1.msra.mxu0 0.0
    %2003 = vmatprep.subr.mxu0 0.0
    %2004 = vmatpush1.msra.mxu0 0.0
    %2005 = vmatprep.subr.mxu0 0.0
    %2006 = vmatpush1.msra.mxu0 0.0
    %2007 = vmatprep.subr.mxu0 0.0
    %2008 = vmatpush1.msra.mxu0 0.0
    %2009 = vmatprep.subr.mxu0 0.0
    %2010 = vmatpush1.msra.mxu0 0.0
    %2011 = vmatprep.subr.mxu0 0.0
    %2012 = vmatpush1.msra.mxu0 0.0
    %2013 = vmatprep.subr.mxu0 0.0
    %2014 = vmatpush1.msra.mxu0 0.0
    %2015 = vmatprep.subr.mxu0 0.0
    %2016 = vmatpush1.msra.mxu0 0.0
    %2017 = vmatprep.subr.mxu0 0.0
    %2018 = vmatpush1.msra.mxu0 0.0
    %2019 = vmatprep.subr.mxu0 0.0
    %2020 = vmatpush1.msra.mxu0 0.0
    %2021 = vmatprep.subr.mxu0 0.0
    %2022 = vmatpush1.msra.mxu0 0.0
    %2023 = vmatprep.mubr.f32.mxu0 0.0
    %2024 = vmatmul.mubr.f32.gmra.mrb[0].mxu0 %v1759
    %v2025 = vpop.f32.mrb[0].mxu0
    %v2026 = vadd.f32 %v1957, %v2025
    %v2027 = vpop.f32.mrb[0].mxu0
    %2028 = vdwg.mxu0
    %v2029 = vadd.f32 %v1947, %v2026
    %v2030 = vxor.u32 %v2029, 2147483648
    %v2031 = vmul.f32 %v2030, 1.442695
    %v2032 = vpow.pop %v2031
    %v2033 = vadd.f32 %v2032, 1.0
    %v2034 = vrcp.pop %v2033
    %v2035 = vmul.f32 1.0, %v2034
    %2037 = vrot.lane.b32.xlu0 %v2026, 64
    %v2038 = vpop.permute.xlu0 %2037
    %v2040 = vmul.f32 %v2035, %v2038
    %2042 = vrot.lane.b32.xlu0 %v2040, 64
    %v2043 = vpop.permute.xlu0 %2042
    %v2045 = vadd.f32 %v1947, %v2043
    %v2046 = vtanh.pop %v2045
    %v2047 = vsub.f32 1.0, %v2035
    %2049 = vrot.lane.b32.xlu0 %v2046, 96
    %v2050 = vpop.permute.xlu0 %2049
    %v2052 = vmul.f32 %v2047, %v2050
    %v2053 = vmul.f32 %v2035, %v1744
    %v2054 = vadd.f32 %v2052, %v2053
    %v2055 = vld [vmem:[%s503] sm:$0xff]
    %v2056 = vld [vmem:[%s503 + $0x8] sm:$0xff]
    %v2057 = vld [vmem:[%s503 + $0x10] sm:$0xff]
    %v2058 = vld [vmem:[%s503 + $0x18] sm:$0xff]
    %v2059 = vld [vmem:[%s508] sm:$0x1]
    %v2061 = vlaneseq
    %v2062 = vshrl.u32 %v2061, 7
    %v2063 = vsub.s32 0, %v2062
    %v2064 = vrot.slane %v2059, %v2063
    %2067 = vrot.lane.b32.xlu0 %v2054, 96
    %v2068 = vpop.permute.xlu0 %2067
    %v2069 = vsel %vm273, %v2068, 0
    %2071 = vmatprep.subr.mxu0 0.0
    %2072 = vmatpush1.msra.mxu0 %v2055
    %2073 = vmatprep.subr.mxu0 0.0
    %2074 = vmatpush1.msra.mxu0 %v2056
    %2075 = vmatprep.subr.mxu0 0.0
    %2076 = vmatpush1.msra.mxu0 %v2057
    %2077 = vmatprep.subr.mxu0 0.0
    %2078 = vmatpush1.msra.mxu0 %v2058
    %2079 = vmatprep.subr.mxu0 0.0
    %2080 = vmatpush1.msra.mxu0 0.0
    %2081 = vmatprep.subr.mxu0 0.0
    %2082 = vmatpush1.msra.mxu0 0.0
    %2083 = vmatprep.subr.mxu0 0.0
    %2084 = vmatpush1.msra.mxu0 0.0
    %2085 = vmatprep.subr.mxu0 0.0
    %2086 = vmatpush1.msra.mxu0 0.0
    %2087 = vmatprep.subr.mxu0 0.0
    %2088 = vmatpush1.msra.mxu0 0.0
    %2089 = vmatprep.subr.mxu0 0.0
    %2090 = vmatpush1.msra.mxu0 0.0
    %2091 = vmatprep.subr.mxu0 0.0
    %2092 = vmatpush1.msra.mxu0 0.0
    %2093 = vmatprep.subr.mxu0 0.0
    %2094 = vmatpush1.msra.mxu0 0.0
    %2095 = vmatprep.subr.mxu0 0.0
    %2096 = vmatpush1.msra.mxu0 0.0
    %2097 = vmatprep.subr.mxu0 0.0
    %2098 = vmatpush1.msra.mxu0 0.0
    %2099 = vmatprep.subr.mxu0 0.0
    %2100 = vmatpush1.msra.mxu0 0.0
    %2101 = vmatprep.subr.mxu0 0.0
    %2102 = vmatpush1.msra.mxu0 0.0
    %2103 = vmatprep.subr.mxu0 0.0
    %2104 = vmatpush1.msra.mxu0 0.0
    %2105 = vmatprep.subr.mxu0 0.0
    %2106 = vmatpush1.msra.mxu0 0.0
    %2107 = vmatprep.subr.mxu0 0.0
    %2108 = vmatpush1.msra.mxu0 0.0
    %2109 = vmatprep.subr.mxu0 0.0
    %2110 = vmatpush1.msra.mxu0 0.0
    %2111 = vmatprep.subr.mxu0 0.0
    %2112 = vmatpush1.msra.mxu0 0.0
    %2113 = vmatprep.subr.mxu0 0.0
    %2114 = vmatpush1.msra.mxu0 0.0
    %2115 = vmatprep.subr.mxu0 0.0
    %2116 = vmatpush1.msra.mxu0 0.0
    %2117 = vmatprep.subr.mxu0 0.0
    %2118 = vmatpush1.msra.mxu0 0.0
    %2119 = vmatprep.subr.mxu0 0.0
    %2120 = vmatpush1.msra.mxu0 0.0
    %2121 = vmatprep.subr.mxu0 0.0
    %2122 = vmatpush1.msra.mxu0 0.0
    %2123 = vmatprep.subr.mxu0 0.0
    %2124 = vmatpush1.msra.mxu0 0.0
    %2125 = vmatprep.subr.mxu0 0.0
    %2126 = vmatpush1.msra.mxu0 0.0
    %2127 = vmatprep.subr.mxu0 0.0
    %2128 = vmatpush1.msra.mxu0 0.0
    %2129 = vmatprep.subr.mxu0 0.0
    %2130 = vmatpush1.msra.mxu0 0.0
    %2131 = vmatprep.subr.mxu0 0.0
    %2132 = vmatpush1.msra.mxu0 0.0
    %2133 = vmatprep.subr.mxu0 0.0
    %2134 = vmatpush1.msra.mxu0 0.0
    %2135 = vmatprep.mubr.f32.mxu0 0.0
    %2136 = vmatmul.mubr.f32.gmra.mrb[0].mxu0 %v2069
    %v2137 = vpop.f32.mrb[0].mxu0
    %v2138 = vadd.f32 %v2064, %v2137
    %v2139 = vpop.f32.mrb[0].mxu0
    %2140 = vdwg.mxu0
    %v2141 = vld [vmem:[%s591] sm:$0xff]
    %v2142 = vld [vmem:[%s591 + $0x8] sm:$0xff]
    %v2143 = vld [vmem:[%s591 + $0x10] sm:$0xff]
    %v2144 = vld [vmem:[%s591 + $0x18] sm:$0xff]
    %v2145 = vld [vmem:[%s596] sm:$0x1]
    %v2147 = vlaneseq
    %v2148 = vshrl.u32 %v2147, 7
    %v2149 = vsub.s32 0, %v2148
    %v2150 = vrot.slane %v2145, %v2149
    %v2152 = vsel %vm273, %v1942, 0
    %2154 = vmatprep.subr.mxu0 0.0
    %2155 = vmatpush1.msra.mxu0 %v2141
    %2156 = vmatprep.subr.mxu0 0.0
    %2157 = vmatpush1.msra.mxu0 %v2142
    %2158 = vmatprep.subr.mxu0 0.0
    %2159 = vmatpush1.msra.mxu0 %v2143
    %2160 = vmatprep.subr.mxu0 0.0
    %2161 = vmatpush1.msra.mxu0 %v2144
    %2162 = vmatprep.subr.mxu0 0.0
    %2163 = vmatpush1.msra.mxu0 0.0
    %2164 = vmatprep.subr.mxu0 0.0
    %2165 = vmatpush1.msra.mxu0 0.0
    %2166 = vmatprep.subr.mxu0 0.0
    %2167 = vmatpush1.msra.mxu0 0.0
    %2168 = vmatprep.subr.mxu0 0.0
    %2169 = vmatpush1.msra.mxu0 0.0
    %2170 = vmatprep.subr.mxu0 0.0
    %2171 = vmatpush1.msra.mxu0 0.0
    %2172 = vmatprep.subr.mxu0 0.0
    %2173 = vmatpush1.msra.mxu0 0.0
    %2174 = vmatprep.subr.mxu0 0.0
    %2175 = vmatpush1.msra.mxu0 0.0
    %2176 = vmatprep.subr.mxu0 0.0
    %2177 = vmatpush1.msra.mxu0 0.0
    %2178 = vmatprep.subr.mxu0 0.0
    %2179 = vmatpush1.msra.mxu0 0.0
    %2180 = vmatprep.subr.mxu0 0.0
    %2181 = vmatpush1.msra.mxu0 0.0
    %2182 = vmatprep.subr.mxu0 0.0
    %2183 = vmatpush1.msra.mxu0 0.0
    %2184 = vmatprep.subr.mxu0 0.0
    %2185 = vmatpush1.msra.mxu0 0.0
    %2186 = vmatprep.subr.mxu0 0.0
    %2187 = vmatpush1.msra.mxu0 0.0
    %2188 = vmatprep.subr.mxu0 0.0
    %2189 = vmatpush1.msra.mxu0 0.0
    %2190 = vmatprep.subr.mxu0 0.0
    %2191 = vmatpush1.msra.mxu0 0.0
    %2192 = vmatprep.subr.mxu0 0.0
    %2193 = vmatpush1.msra.mxu0 0.0
    %2194 = vmatprep.subr.mxu0 0.0
    %2195 = vmatpush1.msra.mxu0 0.0
    %2196 = vmatprep.subr.mxu0 0.0
    %2197 = vmatpush1.msra.mxu0 0.0
    %2198 = vmatprep.subr.mxu0 0.0
    %2199 = vmatpush1.msra.mxu0 0.0
    %2200 = vmatprep.subr.mxu0 0.0
    %2201 = vmatpush1.msra.mxu0 0.0
    %2202 = vmatprep.subr.mxu0 0.0
    %2203 = vmatpush1.msra.mxu0 0.0
    %2204 = vmatprep.subr.mxu0 0.0
    %2205 = vmatpush1.msra.mxu0 0.0
    %2206 = vmatprep.subr.mxu0 0.0
    %2207 = vmatpush1.msra.mxu0 0.0
    %2208 = vmatprep.subr.mxu0 0.0
    %2209 = vmatpush1.msra.mxu0 0.0
    %2210 = vmatprep.subr.mxu0 0.0
    %2211 = vmatpush1.msra.mxu0 0.0
    %2212 = vmatprep.subr.mxu0 0.0
    %2213 = vmatpush1.msra.mxu0 0.0
    %2214 = vmatprep.subr.mxu0 0.0
    %2215 = vmatpush1.msra.mxu0 0.0
    %2216 = vmatprep.subr.mxu0 0.0
    %2217 = vmatpush1.msra.mxu0 0.0
    %2218 = vmatprep.mubr.f32.mxu0 0.0
    %2219 = vmatmul.mubr.f32.gmra.mrb[0].mxu0 %v2152
    %v2220 = vpop.f32.mrb[0].mxu0
    %v2221 = vadd.f32 %v2150, %v2220
    %v2222 = vpop.f32.mrb[0].mxu0
    %2223 = vdwg.mxu0
    %v2224 = vadd.f32 %v2138, %v2221
    %v2225 = vxor.u32 %v2224, 2147483648
    %v2226 = vmul.f32 %v2225, 1.442695
    %v2227 = vpow.pop %v2226
    %v2228 = vadd.f32 %v2227, 1.0
    %v2229 = vrcp.pop %v2228
    %v2230 = vmul.f32 1.0, %v2229
    %2232 = vrot.lane.b32.xlu0 %v2221, 64
    %v2233 = vpop.permute.xlu0 %2232
    %v2235 = vmul.f32 %v2230, %v2233
    %2237 = vrot.lane.b32.xlu0 %v2235, 64
    %v2238 = vpop.permute.xlu0 %2237
    %v2240 = vadd.f32 %v2138, %v2238
    %v2241 = vtanh.pop %v2240
    %v2242 = vsub.f32 1.0, %v2230
    %2244 = vrot.lane.b32.xlu0 %v2241, 96
    %v2245 = vpop.permute.xlu0 %2244
    %v2247 = vmul.f32 %v2242, %v2245
    %v2248 = vmul.f32 %v2230, %v1939
    %v2249 = vadd.f32 %v2247, %v2248
    %2251 = vrot.lane.b32.xlu0 %v2249, 96
    %v2252 = vpop.permute.xlu0 %2251
    %s2254 = scalar_lea.vmem [#allocation3], 20
    %2255 = vst.msk [vmem:[%s2254] sm:$0xf] %vm704, %v2252
    %s2256 = scalar_lea.vmem [#allocation2], 24
    %v2257 = vld [vmem:[%s2256] sm:$0xf]
    %v2258 = vld [vmem:[#allocation7] sm:$0xff]
    %v2259 = vld [vmem:[#allocation7 + $0x8] sm:$0xff]
    %v2260 = vld [vmem:[#allocation7 + $0x10] sm:$0xff]
    %v2261 = vld [vmem:[#allocation7 + $0x18] sm:$0xff]
    %v2262 = vld [vmem:[#allocation9] sm:$0x1]
    %v2264 = vlaneseq
    %v2265 = vshrl.u32 %v2264, 7
    %v2266 = vsub.s32 0, %v2265
    %v2267 = vrot.slane %v2262, %v2266
    %2269 = vmatprep.subr.mxu0 0.0
    %2270 = vmatpush1.msra.mxu0 %v2258
    %2271 = vmatprep.subr.mxu0 0.0
    %2272 = vmatpush1.msra.mxu0 %v2259
    %2273 = vmatprep.subr.mxu0 0.0
    %2274 = vmatpush1.msra.mxu0 %v2260
    %2275 = vmatprep.subr.mxu0 0.0
    %2276 = vmatpush1.msra.mxu0 %v2261
    %2277 = vmatprep.subr.mxu0 0.0
    %2278 = vmatpush1.msra.mxu0 0.0
    %2279 = vmatprep.subr.mxu0 0.0
    %2280 = vmatpush1.msra.mxu0 0.0
    %2281 = vmatprep.subr.mxu0 0.0
    %2282 = vmatpush1.msra.mxu0 0.0
    %2283 = vmatprep.subr.mxu0 0.0
    %2284 = vmatpush1.msra.mxu0 0.0
    %2285 = vmatprep.subr.mxu0 0.0
    %2286 = vmatpush1.msra.mxu0 0.0
    %2287 = vmatprep.subr.mxu0 0.0
    %2288 = vmatpush1.msra.mxu0 0.0
    %2289 = vmatprep.subr.mxu0 0.0
    %2290 = vmatpush1.msra.mxu0 0.0
    %2291 = vmatprep.subr.mxu0 0.0
    %2292 = vmatpush1.msra.mxu0 0.0
    %2293 = vmatprep.subr.mxu0 0.0
    %2294 = vmatpush1.msra.mxu0 0.0
    %2295 = vmatprep.subr.mxu0 0.0
    %2296 = vmatpush1.msra.mxu0 0.0
    %2297 = vmatprep.subr.mxu0 0.0
    %2298 = vmatpush1.msra.mxu0 0.0
    %2299 = vmatprep.subr.mxu0 0.0
    %2300 = vmatpush1.msra.mxu0 0.0
    %2301 = vmatprep.subr.mxu0 0.0
    %2302 = vmatpush1.msra.mxu0 0.0
    %2303 = vmatprep.subr.mxu0 0.0
    %2304 = vmatpush1.msra.mxu0 0.0
    %2305 = vmatprep.subr.mxu0 0.0
    %2306 = vmatpush1.msra.mxu0 0.0
    %2307 = vmatprep.subr.mxu0 0.0
    %2308 = vmatpush1.msra.mxu0 0.0
    %2309 = vmatprep.subr.mxu0 0.0
    %2310 = vmatpush1.msra.mxu0 0.0
    %2311 = vmatprep.subr.mxu0 0.0
    %2312 = vmatpush1.msra.mxu0 0.0
    %2313 = vmatprep.subr.mxu0 0.0
    %2314 = vmatpush1.msra.mxu0 0.0
    %2315 = vmatprep.subr.mxu0 0.0
    %2316 = vmatpush1.msra.mxu0 0.0
    %2317 = vmatprep.subr.mxu0 0.0
    %2318 = vmatpush1.msra.mxu0 0.0
    %2319 = vmatprep.subr.mxu0 0.0
    %2320 = vmatpush1.msra.mxu0 0.0
    %2321 = vmatprep.subr.mxu0 0.0
    %2322 = vmatpush1.msra.mxu0 0.0
    %2323 = vmatprep.subr.mxu0 0.0
    %2324 = vmatpush1.msra.mxu0 0.0
    %2325 = vmatprep.subr.mxu0 0.0
    %2326 = vmatpush1.msra.mxu0 0.0
    %2327 = vmatprep.subr.mxu0 0.0
    %2328 = vmatpush1.msra.mxu0 0.0
    %2329 = vmatprep.subr.mxu0 0.0
    %2330 = vmatpush1.msra.mxu0 0.0
    %2331 = vmatprep.subr.mxu0 0.0
    %2332 = vmatpush1.msra.mxu0 0.0
    %2333 = vmatprep.mubr.f32.mxu0 0.0
    %2334 = vmatmul.mubr.f32.gmra.mrb[0].mxu0 %v2069
    %v2335 = vpop.f32.mrb[0].mxu0
    %v2336 = vadd.f32 %v2267, %v2335
    %v2337 = vpop.f32.mrb[0].mxu0
    %2338 = vdwg.mxu0
    %v2339 = vadd.f32 %v2257, %v2336
    %v2340 = vxor.u32 %v2339, 2147483648
    %v2341 = vmul.f32 %v2340, 1.442695
    %v2342 = vpow.pop %v2341
    %v2343 = vadd.f32 %v2342, 1.0
    %v2344 = vrcp.pop %v2343
    %v2345 = vmul.f32 1.0, %v2344
    %2347 = vrot.lane.b32.xlu0 %v2336, 64
    %v2348 = vpop.permute.xlu0 %2347
    %v2350 = vmul.f32 %v2345, %v2348
    %2352 = vrot.lane.b32.xlu0 %v2350, 64
    %v2353 = vpop.permute.xlu0 %2352
    %v2355 = vadd.f32 %v2257, %v2353
    %v2356 = vtanh.pop %v2355
    %v2357 = vsub.f32 1.0, %v2345
    %2359 = vrot.lane.b32.xlu0 %v2356, 96
    %v2360 = vpop.permute.xlu0 %2359
    %v2362 = vmul.f32 %v2357, %v2360
    %v2363 = vmul.f32 %v2345, %v2054
    %v2364 = vadd.f32 %v2362, %v2363
    %v2365 = vld [vmem:[%s503] sm:$0xff]
    %v2366 = vld [vmem:[%s503 + $0x8] sm:$0xff]
    %v2367 = vld [vmem:[%s503 + $0x10] sm:$0xff]
    %v2368 = vld [vmem:[%s503 + $0x18] sm:$0xff]
    %v2369 = vld [vmem:[%s508] sm:$0x1]
    %v2371 = vlaneseq
    %v2372 = vshrl.u32 %v2371, 7
    %v2373 = vsub.s32 0, %v2372
    %v2374 = vrot.slane %v2369, %v2373
    %2377 = vrot.lane.b32.xlu0 %v2364, 96
    %v2378 = vpop.permute.xlu0 %2377
    %v2379 = vsel %vm273, %v2378, 0
    %2381 = vmatprep.subr.mxu0 0.0
    %2382 = vmatpush1.msra.mxu0 %v2365
    %2383 = vmatprep.subr.mxu0 0.0
    %2384 = vmatpush1.msra.mxu0 %v2366
    %2385 = vmatprep.subr.mxu0 0.0
    %2386 = vmatpush1.msra.mxu0 %v2367
    %2387 = vmatprep.subr.mxu0 0.0
    %2388 = vmatpush1.msra.mxu0 %v2368
    %2389 = vmatprep.subr.mxu0 0.0
    %2390 = vmatpush1.msra.mxu0 0.0
    %2391 = vmatprep.subr.mxu0 0.0
    %2392 = vmatpush1.msra.mxu0 0.0
    %2393 = vmatprep.subr.mxu0 0.0
    %2394 = vmatpush1.msra.mxu0 0.0
    %2395 = vmatprep.subr.mxu0 0.0
    %2396 = vmatpush1.msra.mxu0 0.0
    %2397 = vmatprep.subr.mxu0 0.0
    %2398 = vmatpush1.msra.mxu0 0.0
    %2399 = vmatprep.subr.mxu0 0.0
    %2400 = vmatpush1.msra.mxu0 0.0
    %2401 = vmatprep.subr.mxu0 0.0
    %2402 = vmatpush1.msra.mxu0 0.0
    %2403 = vmatprep.subr.mxu0 0.0
    %2404 = vmatpush1.msra.mxu0 0.0
    %2405 = vmatprep.subr.mxu0 0.0
    %2406 = vmatpush1.msra.mxu0 0.0
    %2407 = vmatprep.subr.mxu0 0.0
    %2408 = vmatpush1.msra.mxu0 0.0
    %2409 = vmatprep.subr.mxu0 0.0
    %2410 = vmatpush1.msra.mxu0 0.0
    %2411 = vmatprep.subr.mxu0 0.0
    %2412 = vmatpush1.msra.mxu0 0.0
    %2413 = vmatprep.subr.mxu0 0.0
    %2414 = vmatpush1.msra.mxu0 0.0
    %2415 = vmatprep.subr.mxu0 0.0
    %2416 = vmatpush1.msra.mxu0 0.0
    %2417 = vmatprep.subr.mxu0 0.0
    %2418 = vmatpush1.msra.mxu0 0.0
    %2419 = vmatprep.subr.mxu0 0.0
    %2420 = vmatpush1.msra.mxu0 0.0
    %2421 = vmatprep.subr.mxu0 0.0
    %2422 = vmatpush1.msra.mxu0 0.0
    %2423 = vmatprep.subr.mxu0 0.0
    %2424 = vmatpush1.msra.mxu0 0.0
    %2425 = vmatprep.subr.mxu0 0.0
    %2426 = vmatpush1.msra.mxu0 0.0
    %2427 = vmatprep.subr.mxu0 0.0
    %2428 = vmatpush1.msra.mxu0 0.0
    %2429 = vmatprep.subr.mxu0 0.0
    %2430 = vmatpush1.msra.mxu0 0.0
    %2431 = vmatprep.subr.mxu0 0.0
    %2432 = vmatpush1.msra.mxu0 0.0
    %2433 = vmatprep.subr.mxu0 0.0
    %2434 = vmatpush1.msra.mxu0 0.0
    %2435 = vmatprep.subr.mxu0 0.0
    %2436 = vmatpush1.msra.mxu0 0.0
    %2437 = vmatprep.subr.mxu0 0.0
    %2438 = vmatpush1.msra.mxu0 0.0
    %2439 = vmatprep.subr.mxu0 0.0
    %2440 = vmatpush1.msra.mxu0 0.0
    %2441 = vmatprep.subr.mxu0 0.0
    %2442 = vmatpush1.msra.mxu0 0.0
    %2443 = vmatprep.subr.mxu0 0.0
    %2444 = vmatpush1.msra.mxu0 0.0
    %2445 = vmatprep.mubr.f32.mxu0 0.0
    %2446 = vmatmul.mubr.f32.gmra.mrb[0].mxu0 %v2379
    %v2447 = vpop.f32.mrb[0].mxu0
    %v2448 = vadd.f32 %v2374, %v2447
    %v2449 = vpop.f32.mrb[0].mxu0
    %2450 = vdwg.mxu0
    %v2451 = vld [vmem:[%s591] sm:$0xff]
    %v2452 = vld [vmem:[%s591 + $0x8] sm:$0xff]
    %v2453 = vld [vmem:[%s591 + $0x10] sm:$0xff]
    %v2454 = vld [vmem:[%s591 + $0x18] sm:$0xff]
    %v2455 = vld [vmem:[%s596] sm:$0x1]
    %v2457 = vlaneseq
    %v2458 = vshrl.u32 %v2457, 7
    %v2459 = vsub.s32 0, %v2458
    %v2460 = vrot.slane %v2455, %v2459
    %v2462 = vsel %vm273, %v2252, 0
    %2464 = vmatprep.subr.mxu0 0.0
    %2465 = vmatpush1.msra.mxu0 %v2451
    %2466 = vmatprep.subr.mxu0 0.0
    %2467 = vmatpush1.msra.mxu0 %v2452
    %2468 = vmatprep.subr.mxu0 0.0
    %2469 = vmatpush1.msra.mxu0 %v2453
    %2470 = vmatprep.subr.mxu0 0.0
    %2471 = vmatpush1.msra.mxu0 %v2454
    %2472 = vmatprep.subr.mxu0 0.0
    %2473 = vmatpush1.msra.mxu0 0.0
    %2474 = vmatprep.subr.mxu0 0.0
    %2475 = vmatpush1.msra.mxu0 0.0
    %2476 = vmatprep.subr.mxu0 0.0
    %2477 = vmatpush1.msra.mxu0 0.0
    %2478 = vmatprep.subr.mxu0 0.0
    %2479 = vmatpush1.msra.mxu0 0.0
    %2480 = vmatprep.subr.mxu0 0.0
    %2481 = vmatpush1.msra.mxu0 0.0
    %2482 = vmatprep.subr.mxu0 0.0
    %2483 = vmatpush1.msra.mxu0 0.0
    %2484 = vmatprep.subr.mxu0 0.0
    %2485 = vmatpush1.msra.mxu0 0.0
    %2486 = vmatprep.subr.mxu0 0.0
    %2487 = vmatpush1.msra.mxu0 0.0
    %2488 = vmatprep.subr.mxu0 0.0
    %2489 = vmatpush1.msra.mxu0 0.0
    %2490 = vmatprep.subr.mxu0 0.0
    %2491 = vmatpush1.msra.mxu0 0.0
    %2492 = vmatprep.subr.mxu0 0.0
    %2493 = vmatpush1.msra.mxu0 0.0
    %2494 = vmatprep.subr.mxu0 0.0
    %2495 = vmatpush1.msra.mxu0 0.0
    %2496 = vmatprep.subr.mxu0 0.0
    %2497 = vmatpush1.msra.mxu0 0.0
    %2498 = vmatprep.subr.mxu0 0.0
    %2499 = vmatpush1.msra.mxu0 0.0
    %2500 = vmatprep.subr.mxu0 0.0
    %2501 = vmatpush1.msra.mxu0 0.0
    %2502 = vmatprep.subr.mxu0 0.0
    %2503 = vmatpush1.msra.mxu0 0.0
    %2504 = vmatprep.subr.mxu0 0.0
    %2505 = vmatpush1.msra.mxu0 0.0
    %2506 = vmatprep.subr.mxu0 0.0
    %2507 = vmatpush1.msra.mxu0 0.0
    %2508 = vmatprep.subr.mxu0 0.0
    %2509 = vmatpush1.msra.mxu0 0.0
    %2510 = vmatprep.subr.mxu0 0.0
    %2511 = vmatpush1.msra.mxu0 0.0
    %2512 = vmatprep.subr.mxu0 0.0
    %2513 = vmatpush1.msra.mxu0 0.0
    %2514 = vmatprep.subr.mxu0 0.0
    %2515 = vmatpush1.msra.mxu0 0.0
    %2516 = vmatprep.subr.mxu0 0.0
    %2517 = vmatpush1.msra.mxu0 0.0
    %2518 = vmatprep.subr.mxu0 0.0
    %2519 = vmatpush1.msra.mxu0 0.0
    %2520 = vmatprep.subr.mxu0 0.0
    %2521 = vmatpush1.msra.mxu0 0.0
    %2522 = vmatprep.subr.mxu0 0.0
    %2523 = vmatpush1.msra.mxu0 0.0
    %2524 = vmatprep.subr.mxu0 0.0
    %2525 = vmatpush1.msra.mxu0 0.0
    %2526 = vmatprep.subr.mxu0 0.0
    %2527 = vmatpush1.msra.mxu0 0.0
    %2528 = vmatprep.mubr.f32.mxu0 0.0
    %2529 = vmatmul.mubr.f32.gmra.mrb[0].mxu0 %v2462
    %v2530 = vpop.f32.mrb[0].mxu0
    %v2531 = vadd.f32 %v2460, %v2530
    %v2532 = vpop.f32.mrb[0].mxu0
    %2533 = vdwg.mxu0
    %v2534 = vadd.f32 %v2448, %v2531
    %v2535 = vxor.u32 %v2534, 2147483648
    %v2536 = vmul.f32 %v2535, 1.442695
    %v2537 = vpow.pop %v2536
    %v2538 = vadd.f32 %v2537, 1.0
    %v2539 = vrcp.pop %v2538
    %v2540 = vmul.f32 1.0, %v2539
    %2542 = vrot.lane.b32.xlu0 %v2531, 64
    %v2543 = vpop.permute.xlu0 %2542
    %v2545 = vmul.f32 %v2540, %v2543
    %2547 = vrot.lane.b32.xlu0 %v2545, 64
    %v2548 = vpop.permute.xlu0 %2547
    %v2550 = vadd.f32 %v2448, %v2548
    %v2551 = vtanh.pop %v2550
    %v2552 = vsub.f32 1.0, %v2540
    %2554 = vrot.lane.b32.xlu0 %v2551, 96
    %v2555 = vpop.permute.xlu0 %2554
    %v2557 = vmul.f32 %v2552, %v2555
    %v2558 = vmul.f32 %v2540, %v2249
    %v2559 = vadd.f32 %v2557, %v2558
    %2561 = vrot.lane.b32.xlu0 %v2559, 96
    %v2562 = vpop.permute.xlu0 %2561
    %s2564 = scalar_lea.vmem [#allocation3], 24
    %2565 = vst.msk [vmem:[%s2564] sm:$0xf] %vm704, %v2562
    %s2566 = scalar_lea.vmem [#allocation2], 28
    %v2567 = vld [vmem:[%s2566] sm:$0xf]
    %v2568 = vld [vmem:[#allocation7] sm:$0xff]
    %v2569 = vld [vmem:[#allocation7 + $0x8] sm:$0xff]
    %v2570 = vld [vmem:[#allocation7 + $0x10] sm:$0xff]
    %v2571 = vld [vmem:[#allocation7 + $0x18] sm:$0xff]
    %v2572 = vld [vmem:[#allocation9] sm:$0x1]
    %v2574 = vlaneseq
    %v2575 = vshrl.u32 %v2574, 7
    %v2576 = vsub.s32 0, %v2575
    %v2577 = vrot.slane %v2572, %v2576
    %2579 = vmatprep.subr.mxu0 0.0
    %2580 = vmatpush1.msra.mxu0 %v2568
    %2581 = vmatprep.subr.mxu0 0.0
    %2582 = vmatpush1.msra.mxu0 %v2569
    %2583 = vmatprep.subr.mxu0 0.0
    %2584 = vmatpush1.msra.mxu0 %v2570
    %2585 = vmatprep.subr.mxu0 0.0
    %2586 = vmatpush1.msra.mxu0 %v2571
    %2587 = vmatprep.subr.mxu0 0.0
    %2588 = vmatpush1.msra.mxu0 0.0
    %2589 = vmatprep.subr.mxu0 0.0
    %2590 = vmatpush1.msra.mxu0 0.0
    %2591 = vmatprep.subr.mxu0 0.0
    %2592 = vmatpush1.msra.mxu0 0.0
    %2593 = vmatprep.subr.mxu0 0.0
    %2594 = vmatpush1.msra.mxu0 0.0
    %2595 = vmatprep.subr.mxu0 0.0
    %2596 = vmatpush1.msra.mxu0 0.0
    %2597 = vmatprep.subr.mxu0 0.0
    %2598 = vmatpush1.msra.mxu0 0.0
    %2599 = vmatprep.subr.mxu0 0.0
    %2600 = vmatpush1.msra.mxu0 0.0
    %2601 = vmatprep.subr.mxu0 0.0
    %2602 = vmatpush1.msra.mxu0 0.0
    %2603 = vmatprep.subr.mxu0 0.0
    %2604 = vmatpush1.msra.mxu0 0.0
    %2605 = vmatprep.subr.mxu0 0.0
    %2606 = vmatpush1.msra.mxu0 0.0
    %2607 = vmatprep.subr.mxu0 0.0
    %2608 = vmatpush1.msra.mxu0 0.0
    %2609 = vmatprep.subr.mxu0 0.0
    %2610 = vmatpush1.msra.mxu0 0.0
    %2611 = vmatprep.subr.mxu0 0.0
    %2612 = vmatpush1.msra.mxu0 0.0
    %2613 = vmatprep.subr.mxu0 0.0
    %2614 = vmatpush1.msra.mxu0 0.0
    %2615 = vmatprep.subr.mxu0 0.0
    %2616 = vmatpush1.msra.mxu0 0.0
    %2617 = vmatprep.subr.mxu0 0.0
    %2618 = vmatpush1.msra.mxu0 0.0
    %2619 = vmatprep.subr.mxu0 0.0
    %2620 = vmatpush1.msra.mxu0 0.0
    %2621 = vmatprep.subr.mxu0 0.0
    %2622 = vmatpush1.msra.mxu0 0.0
    %2623 = vmatprep.subr.mxu0 0.0
    %2624 = vmatpush1.msra.mxu0 0.0
    %2625 = vmatprep.subr.mxu0 0.0
    %2626 = vmatpush1.msra.mxu0 0.0
    %2627 = vmatprep.subr.mxu0 0.0
    %2628 = vmatpush1.msra.mxu0 0.0
    %2629 = vmatprep.subr.mxu0 0.0
    %2630 = vmatpush1.msra.mxu0 0.0
    %2631 = vmatprep.subr.mxu0 0.0
    %2632 = vmatpush1.msra.mxu0 0.0
    %2633 = vmatprep.subr.mxu0 0.0
    %2634 = vmatpush1.msra.mxu0 0.0
    %2635 = vmatprep.subr.mxu0 0.0
    %2636 = vmatpush1.msra.mxu0 0.0
    %2637 = vmatprep.subr.mxu0 0.0
    %2638 = vmatpush1.msra.mxu0 0.0
    %2639 = vmatprep.subr.mxu0 0.0
    %2640 = vmatpush1.msra.mxu0 0.0
    %2641 = vmatprep.subr.mxu0 0.0
    %2642 = vmatpush1.msra.mxu0 0.0
    %2643 = vmatprep.mubr.f32.mxu0 0.0
    %2644 = vmatmul.mubr.f32.gmra.mrb[0].mxu0 %v2379
    %v2645 = vpop.f32.mrb[0].mxu0
    %v2646 = vadd.f32 %v2577, %v2645
    %v2647 = vpop.f32.mrb[0].mxu0
    %2648 = vdwg.mxu0
    %v2649 = vadd.f32 %v2567, %v2646
    %v2650 = vxor.u32 %v2649, 2147483648
    %v2651 = vmul.f32 %v2650, 1.442695
    %v2652 = vpow.pop %v2651
    %v2653 = vadd.f32 %v2652, 1.0
    %v2654 = vrcp.pop %v2653
    %v2655 = vmul.f32 1.0, %v2654
    %2657 = vrot.lane.b32.xlu0 %v2646, 64
    %v2658 = vpop.permute.xlu0 %2657
    %v2660 = vmul.f32 %v2655, %v2658
    %2662 = vrot.lane.b32.xlu0 %v2660, 64
    %v2663 = vpop.permute.xlu0 %2662
    %v2665 = vadd.f32 %v2567, %v2663
    %v2666 = vtanh.pop %v2665
    %v2667 = vsub.f32 1.0, %v2655
    %2669 = vrot.lane.b32.xlu0 %v2666, 96
    %v2670 = vpop.permute.xlu0 %2669
    %v2672 = vmul.f32 %v2667, %v2670
    %v2673 = vmul.f32 %v2655, %v2364
    %v2674 = vadd.f32 %v2672, %v2673
    %v2675 = vld [vmem:[%s503] sm:$0xff]
    %v2676 = vld [vmem:[%s503 + $0x8] sm:$0xff]
    %v2677 = vld [vmem:[%s503 + $0x10] sm:$0xff]
    %v2678 = vld [vmem:[%s503 + $0x18] sm:$0xff]
    %v2679 = vld [vmem:[%s508] sm:$0x1]
    %v2681 = vlaneseq
    %v2682 = vshrl.u32 %v2681, 7
    %v2683 = vsub.s32 0, %v2682
    %v2684 = vrot.slane %v2679, %v2683
    %2687 = vrot.lane.b32.xlu0 %v2674, 96
    %v2688 = vpop.permute.xlu0 %2687
    %v2689 = vsel %vm273, %v2688, 0
    %2691 = vmatprep.subr.mxu0 0.0
    %2692 = vmatpush1.msra.mxu0 %v2675
    %2693 = vmatprep.subr.mxu0 0.0
    %2694 = vmatpush1.msra.mxu0 %v2676
    %2695 = vmatprep.subr.mxu0 0.0
    %2696 = vmatpush1.msra.mxu0 %v2677
    %2697 = vmatprep.subr.mxu0 0.0
    %2698 = vmatpush1.msra.mxu0 %v2678
    %2699 = vmatprep.subr.mxu0 0.0
    %2700 = vmatpush1.msra.mxu0 0.0
    %2701 = vmatprep.subr.mxu0 0.0
    %2702 = vmatpush1.msra.mxu0 0.0
    %2703 = vmatprep.subr.mxu0 0.0
    %2704 = vmatpush1.msra.mxu0 0.0
    %2705 = vmatprep.subr.mxu0 0.0
    %2706 = vmatpush1.msra.mxu0 0.0
    %2707 = vmatprep.subr.mxu0 0.0
    %2708 = vmatpush1.msra.mxu0 0.0
    %2709 = vmatprep.subr.mxu0 0.0
    %2710 = vmatpush1.msra.mxu0 0.0
    %2711 = vmatprep.subr.mxu0 0.0
    %2712 = vmatpush1.msra.mxu0 0.0
    %2713 = vmatprep.subr.mxu0 0.0
    %2714 = vmatpush1.msra.mxu0 0.0
    %2715 = vmatprep.subr.mxu0 0.0
    %2716 = vmatpush1.msra.mxu0 0.0
    %2717 = vmatprep.subr.mxu0 0.0
    %2718 = vmatpush1.msra.mxu0 0.0
    %2719 = vmatprep.subr.mxu0 0.0
    %2720 = vmatpush1.msra.mxu0 0.0
    %2721 = vmatprep.subr.mxu0 0.0
    %2722 = vmatpush1.msra.mxu0 0.0
    %2723 = vmatprep.subr.mxu0 0.0
    %2724 = vmatpush1.msra.mxu0 0.0
    %2725 = vmatprep.subr.mxu0 0.0
    %2726 = vmatpush1.msra.mxu0 0.0
    %2727 = vmatprep.subr.mxu0 0.0
    %2728 = vmatpush1.msra.mxu0 0.0
    %2729 = vmatprep.subr.mxu0 0.0
    %2730 = vmatpush1.msra.mxu0 0.0
    %2731 = vmatprep.subr.mxu0 0.0
    %2732 = vmatpush1.msra.mxu0 0.0
    %2733 = vmatprep.subr.mxu0 0.0
    %2734 = vmatpush1.msra.mxu0 0.0
    %2735 = vmatprep.subr.mxu0 0.0
    %2736 = vmatpush1.msra.mxu0 0.0
    %2737 = vmatprep.subr.mxu0 0.0
    %2738 = vmatpush1.msra.mxu0 0.0
    %2739 = vmatprep.subr.mxu0 0.0
    %2740 = vmatpush1.msra.mxu0 0.0
    %2741 = vmatprep.subr.mxu0 0.0
    %2742 = vmatpush1.msra.mxu0 0.0
    %2743 = vmatprep.subr.mxu0 0.0
    %2744 = vmatpush1.msra.mxu0 0.0
    %2745 = vmatprep.subr.mxu0 0.0
    %2746 = vmatpush1.msra.mxu0 0.0
    %2747 = vmatprep.subr.mxu0 0.0
    %2748 = vmatpush1.msra.mxu0 0.0
    %2749 = vmatprep.subr.mxu0 0.0
    %2750 = vmatpush1.msra.mxu0 0.0
    %2751 = vmatprep.subr.mxu0 0.0
    %2752 = vmatpush1.msra.mxu0 0.0
    %2753 = vmatprep.subr.mxu0 0.0
    %2754 = vmatpush1.msra.mxu0 0.0
    %2755 = vmatprep.mubr.f32.mxu0 0.0
    %2756 = vmatmul.mubr.f32.gmra.mrb[0].mxu0 %v2689
    %v2757 = vpop.f32.mrb[0].mxu0
    %v2758 = vadd.f32 %v2684, %v2757
    %v2759 = vpop.f32.mrb[0].mxu0
    %2760 = vdwg.mxu0
    %v2761 = vld [vmem:[%s591] sm:$0xff]
    %v2762 = vld [vmem:[%s591 + $0x8] sm:$0xff]
    %v2763 = vld [vmem:[%s591 + $0x10] sm:$0xff]
    %v2764 = vld [vmem:[%s591 + $0x18] sm:$0xff]
    %v2765 = vld [vmem:[%s596] sm:$0x1]
    %v2767 = vlaneseq
    %v2768 = vshrl.u32 %v2767, 7
    %v2769 = vsub.s32 0, %v2768
    %v2770 = vrot.slane %v2765, %v2769
    %v2772 = vsel %vm273, %v2562, 0
    %2774 = vmatprep.subr.mxu0 0.0
    %2775 = vmatpush1.msra.mxu0 %v2761
    %2776 = vmatprep.subr.mxu0 0.0
    %2777 = vmatpush1.msra.mxu0 %v2762
    %2778 = vmatprep.subr.mxu0 0.0
    %2779 = vmatpush1.msra.mxu0 %v2763
    %2780 = vmatprep.subr.mxu0 0.0
    %2781 = vmatpush1.msra.mxu0 %v2764
    %2782 = vmatprep.subr.mxu0 0.0
    %2783 = vmatpush1.msra.mxu0 0.0
    %2784 = vmatprep.subr.mxu0 0.0
    %2785 = vmatpush1.msra.mxu0 0.0
    %2786 = vmatprep.subr.mxu0 0.0
    %2787 = vmatpush1.msra.mxu0 0.0
    %2788 = vmatprep.subr.mxu0 0.0
    %2789 = vmatpush1.msra.mxu0 0.0
    %2790 = vmatprep.subr.mxu0 0.0
    %2791 = vmatpush1.msra.mxu0 0.0
    %2792 = vmatprep.subr.mxu0 0.0
    %2793 = vmatpush1.msra.mxu0 0.0
    %2794 = vmatprep.subr.mxu0 0.0
    %2795 = vmatpush1.msra.mxu0 0.0
    %2796 = vmatprep.subr.mxu0 0.0
    %2797 = vmatpush1.msra.mxu0 0.0
    %2798 = vmatprep.subr.mxu0 0.0
    %2799 = vmatpush1.msra.mxu0 0.0
    %2800 = vmatprep.subr.mxu0 0.0
    %2801 = vmatpush1.msra.mxu0 0.0
    %2802 = vmatprep.subr.mxu0 0.0
    %2803 = vmatpush1.msra.mxu0 0.0
    %2804 = vmatprep.subr.mxu0 0.0
    %2805 = vmatpush1.msra.mxu0 0.0
    %2806 = vmatprep.subr.mxu0 0.0
    %2807 = vmatpush1.msra.mxu0 0.0
    %2808 = vmatprep.subr.mxu0 0.0
    %2809 = vmatpush1.msra.mxu0 0.0
    %2810 = vmatprep.subr.mxu0 0.0
    %2811 = vmatpush1.msra.mxu0 0.0
    %2812 = vmatprep.subr.mxu0 0.0
    %2813 = vmatpush1.msra.mxu0 0.0
    %2814 = vmatprep.subr.mxu0 0.0
    %2815 = vmatpush1.msra.mxu0 0.0
    %2816 = vmatprep.subr.mxu0 0.0
    %2817 = vmatpush1.msra.mxu0 0.0
    %2818 = vmatprep.subr.mxu0 0.0
    %2819 = vmatpush1.msra.mxu0 0.0
    %2820 = vmatprep.subr.mxu0 0.0
    %2821 = vmatpush1.msra.mxu0 0.0
    %2822 = vmatprep.subr.mxu0 0.0
    %2823 = vmatpush1.msra.mxu0 0.0
    %2824 = vmatprep.subr.mxu0 0.0
    %2825 = vmatpush1.msra.mxu0 0.0
    %2826 = vmatprep.subr.mxu0 0.0
    %2827 = vmatpush1.msra.mxu0 0.0
    %2828 = vmatprep.subr.mxu0 0.0
    %2829 = vmatpush1.msra.mxu0 0.0
    %2830 = vmatprep.subr.mxu0 0.0
    %2831 = vmatpush1.msra.mxu0 0.0
    %2832 = vmatprep.subr.mxu0 0.0
    %2833 = vmatpush1.msra.mxu0 0.0
    %2834 = vmatprep.subr.mxu0 0.0
    %2835 = vmatpush1.msra.mxu0 0.0
    %2836 = vmatprep.subr.mxu0 0.0
    %2837 = vmatpush1.msra.mxu0 0.0
    %2838 = vmatprep.mubr.f32.mxu0 0.0
    %2839 = vmatmul.mubr.f32.gmra.mrb[0].mxu0 %v2772
    %v2840 = vpop.f32.mrb[0].mxu0
    %v2841 = vadd.f32 %v2770, %v2840
    %v2842 = vpop.f32.mrb[0].mxu0
    %2843 = vdwg.mxu0
    %v2844 = vadd.f32 %v2758, %v2841
    %v2845 = vxor.u32 %v2844, 2147483648
    %v2846 = vmul.f32 %v2845, 1.442695
    %v2847 = vpow.pop %v2846
    %v2848 = vadd.f32 %v2847, 1.0
    %v2849 = vrcp.pop %v2848
    %v2850 = vmul.f32 1.0, %v2849
    %2852 = vrot.lane.b32.xlu0 %v2841, 64
    %v2853 = vpop.permute.xlu0 %2852
    %v2855 = vmul.f32 %v2850, %v2853
    %2857 = vrot.lane.b32.xlu0 %v2855, 64
    %v2858 = vpop.permute.xlu0 %2857
    %v2860 = vadd.f32 %v2758, %v2858
    %v2861 = vtanh.pop %v2860
    %v2862 = vsub.f32 1.0, %v2850
    %2864 = vrot.lane.b32.xlu0 %v2861, 96
    %v2865 = vpop.permute.xlu0 %2864
    %v2867 = vmul.f32 %v2862, %v2865
    %v2868 = vmul.f32 %v2850, %v2559
    %v2869 = vadd.f32 %v2867, %v2868
    %2871 = vrot.lane.b32.xlu0 %v2869, 96
    %v2872 = vpop.permute.xlu0 %2871
    %s2874 = scalar_lea.vmem [#allocation3], 28
    %2875 = vst.msk [vmem:[%s2874] sm:$0xf] %vm704, %v2872
    %v2876 = vld [vmem:[#allocation3] sm:$0xf]
    %v2877 = vld [vmem:[#allocation3 + $0x4] sm:$0xf]
    %v2878 = vld [vmem:[#allocation3 + $0x8] sm:$0xf]
    %v2879 = vld [vmem:[#allocation3 + $0xc] sm:$0xf]
    %v2880 = vld [vmem:[#allocation3 + $0x10] sm:$0xf]
    %v2881 = vld [vmem:[#allocation3 + $0x14] sm:$0xf]
    %v2882 = vld [vmem:[#allocation3 + $0x18] sm:$0xf]
    %v2883 = vld [vmem:[#allocation3 + $0x1c] sm:$0xf]
    %v2884 = vld [vmem:[%s6] sm:$0xff]
    %v2885 = vld [vmem:[%s6 + $0x8] sm:$0xff]
    %v2886 = vld [vmem:[%s6 + $0x10] sm:$0xff]
    %v2887 = vld [vmem:[%s6 + $0x18] sm:$0xff]
    %v2888 = vld [vmem:[%s7] sm:$0x1]
    %v2890 = vlaneseq
    %v2891 = vshrl.u32 %v2890, 7
    %v2892 = vsub.s32 0, %v2891
    %v2893 = vrot.slane %v2888, %v2892
    %v2903 = vcombine.low %v2876, %v2877
    %v2904 = vcombine.low %v2878, %v2879
    %v2905 = vcombine.low %v2880, %v2881
    %v2906 = vcombine.low %v2882, %v2883
    %v2907 = vsel %vm273, %v2903, 0
    %v2909 = vsel %vm273, %v2904, 0
    %v2911 = vsel %vm273, %v2905, 0
    %v2913 = vsel %vm273, %v2906, 0
    %2915 = vmatprep.subr.mxu0 0.0
    %2916 = vmatpush1.msra.mxu0 %v2884
    %2917 = vmatprep.subr.mxu0 0.0
    %2918 = vmatpush1.msra.mxu0 %v2885
    %2919 = vmatprep.subr.mxu0 0.0
    %2920 = vmatpush1.msra.mxu0 %v2886
    %2921 = vmatprep.subr.mxu0 0.0
    %2922 = vmatpush1.msra.mxu0 %v2887
    %2923 = vmatprep.subr.mxu0 0.0
    %2924 = vmatpush1.msra.mxu0 0.0
    %2925 = vmatprep.subr.mxu0 0.0
    %2926 = vmatpush1.msra.mxu0 0.0
    %2927 = vmatprep.subr.mxu0 0.0
    %2928 = vmatpush1.msra.mxu0 0.0
    %2929 = vmatprep.subr.mxu0 0.0
    %2930 = vmatpush1.msra.mxu0 0.0
    %2931 = vmatprep.subr.mxu0 0.0
    %2932 = vmatpush1.msra.mxu0 0.0
    %2933 = vmatprep.subr.mxu0 0.0
    %2934 = vmatpush1.msra.mxu0 0.0
    %2935 = vmatprep.subr.mxu0 0.0
    %2936 = vmatpush1.msra.mxu0 0.0
    %2937 = vmatprep.subr.mxu0 0.0
    %2938 = vmatpush1.msra.mxu0 0.0
    %2939 = vmatprep.subr.mxu0 0.0
    %2940 = vmatpush1.msra.mxu0 0.0
    %2941 = vmatprep.subr.mxu0 0.0
    %2942 = vmatpush1.msra.mxu0 0.0
    %2943 = vmatprep.subr.mxu0 0.0
    %2944 = vmatpush1.msra.mxu0 0.0
    %2945 = vmatprep.subr.mxu0 0.0
    %2946 = vmatpush1.msra.mxu0 0.0
    %2947 = vmatprep.subr.mxu0 0.0
    %2948 = vmatpush1.msra.mxu0 0.0
    %2949 = vmatprep.subr.mxu0 0.0
    %2950 = vmatpush1.msra.mxu0 0.0
    %2951 = vmatprep.subr.mxu0 0.0
    %2952 = vmatpush1.msra.mxu0 0.0
    %2953 = vmatprep.subr.mxu0 0.0
    %2954 = vmatpush1.msra.mxu0 0.0
    %2955 = vmatprep.subr.mxu0 0.0
    %2956 = vmatpush1.msra.mxu0 0.0
    %2957 = vmatprep.subr.mxu0 0.0
    %2958 = vmatpush1.msra.mxu0 0.0
    %2959 = vmatprep.subr.mxu0 0.0
    %2960 = vmatpush1.msra.mxu0 0.0
    %2961 = vmatprep.subr.mxu0 0.0
    %2962 = vmatpush1.msra.mxu0 0.0
    %2963 = vmatprep.subr.mxu0 0.0
    %2964 = vmatpush1.msra.mxu0 0.0
    %2965 = vmatprep.subr.mxu0 0.0
    %2966 = vmatpush1.msra.mxu0 0.0
    %2967 = vmatprep.subr.mxu0 0.0
    %2968 = vmatpush1.msra.mxu0 0.0
    %2969 = vmatprep.subr.mxu0 0.0
    %2970 = vmatpush1.msra.mxu0 0.0
    %2971 = vmatprep.subr.mxu0 0.0
    %2972 = vmatpush1.msra.mxu0 0.0
    %2973 = vmatprep.subr.mxu0 0.0
    %2974 = vmatpush1.msra.mxu0 0.0
    %2975 = vmatprep.subr.mxu0 0.0
    %2976 = vmatpush1.msra.mxu0 0.0
    %2977 = vmatprep.subr.mxu0 0.0
    %2978 = vmatpush1.msra.mxu0 0.0
    %2979 = vmatprep.mubr.f32.mxu0 0.0
    %2980 = vmatmul.mubr.f32.gmra.mrb[0].mxu0 %v2907
    %v2981 = vpop.f32.mrb[0].mxu0
    %v2982 = vadd.f32 %v2893, %v2981
    %v2983 = vpop.f32.mrb[0].mxu0
    %2984 = vmatprep.mubr.f32.mxu0 0.0
    %2985 = vmatmul.mubr.f32.gmra.mrb[0].mxu0 %v2909
    %v2986 = vpop.f32.mrb[0].mxu0
    %v2987 = vadd.f32 %v2893, %v2986
    %v2988 = vpop.f32.mrb[0].mxu0
    %2989 = vmatprep.mubr.f32.mxu0 0.0
    %2990 = vmatmul.mubr.f32.gmra.mrb[0].mxu0 %v2911
    %v2991 = vpop.f32.mrb[0].mxu0
    %v2992 = vadd.f32 %v2893, %v2991
    %v2993 = vpop.f32.mrb[0].mxu0
    %2994 = vmatprep.mubr.f32.mxu0 0.0
    %2995 = vmatmul.mubr.f32.gmra.mrb[0].mxu0 %v2913
    %v2996 = vpop.f32.mrb[0].mxu0
    %v2997 = vadd.f32 %v2893, %v2996
    %v2998 = vpop.f32.mrb[0].mxu0
    %2999 = vdwg.mxu0
    %v3004 = vcombine.high %v2982, %v2982
    %v3005 = vcombine.high %v2987, %v2987
    %v3006 = vcombine.high %v2992, %v2992
    %v3007 = vcombine.high %v2997, %v2997
    %vm3012 = vcmask 125952
    %3013 = vst.msk [vmem:[#allocation10] sm:$0xf] %vm3012, %v2982
    %3014 = vst.msk [vmem:[#allocation10 + $0x4] sm:$0xf] %vm3012, %v3004
    %3015 = vst.msk [vmem:[#allocation10 + $0x8] sm:$0xf] %vm3012, %v2987
    %3016 = vst.msk [vmem:[#allocation10 + $0xc] sm:$0xf] %vm3012, %v3005
    %3017 = vst.msk [vmem:[#allocation10 + $0x10] sm:$0xf] %vm3012, %v2992
    %3018 = vst.msk [vmem:[#allocation10 + $0x14] sm:$0xf] %vm3012, %v3006
    %3019 = vst.msk [vmem:[#allocation10 + $0x18] sm:$0xf] %vm3012, %v2997
    %3020 = vst.msk [vmem:[#allocation10 + $0x1c] sm:$0xf] %vm3012, %v3007
    // Predicated region
    $region46: #{tpu_custom_call.1} parent=1 // pred_check
      _
    $region47: #{tpu_custom_call.1} parent=1 // pred_check_branch
      %3022 = sbr.rel (0) target = $region49
    $region48: #{tpu_custom_call.1} parent=1 // pred_region
      %s3024 = ssub.s32 512, 512
      %3025 = vsyncadd [#allocation6], %s3024
      %s3026 = sshll.u32 [#allocation10], 4
      %s3027 = int_to_ptr.vmem [resolvable:$true] %s3026
      %3032 = dma.vmem_to_hbm [thread:$0]  %s3027, 512, %s8, [#allocation6], 64, 64, 4
    $region49: #{tpu_custom_call.1} parent=1 // pred_fallthru
      _
    // Predicated region
    $region50: #{tpu_custom_call.1} parent=1 // pred_check
      _
    $region51: #{tpu_custom_call.1} parent=1 // pred_check_branch
      %3034 = sbr.rel (0) target = $region53
    $region52: #{tpu_custom_call.1} parent=1 // pred_region
      %3035 = dma.done [#allocation6], 512
    $region53: #{tpu_custom_call.1} parent=1 // pred_fallthru
      _
    %3036 = vsyncpa [#allocation5], 1
    %3037 = vsyncpa [#allocation8], 1
    %3038 = vsyncpa [#allocation6], 1

</llo_original>
